<compile_context>
chip_gen: v6e
topology: v6e:2x2x1
jax: 0.10.0
libtpu: 0.0.40
codegen_flags: <defaults>
</compile_context>

<pallas_src>
import math
import jax
import jax.numpy as jnp
from jax.experimental import pallas as pl
from jax.experimental.pallas import tpu as pltpu

# ----- model config (small, consistent with the module) -----
L = 8           # sequence length
N = 2           # batch
D_MODEL = 32
N_HEADS = 4
D_FF = 64
N_EXPERTS = 4
D_HEAD = D_MODEL // N_HEADS
T = N * L       # total tokens processed per kernel call
LN_EPS = 1e-5


def _layer_norm(z, w, b):
    mu = jnp.mean(z, axis=-1, keepdims=True)
    var = jnp.mean((z - mu) * (z - mu), axis=-1, keepdims=True)
    return (z - mu) * jax.lax.rsqrt(var + LN_EPS) * w + b


def titan_block_kernel(
    x_ref,            # (T, E)       tokens, batch-major ([b0 tokens..., b1 tokens...])
    ipw_t_ref,        # (E, 3E)      in_proj weight^T, q columns pre-scaled by 1/sqrt(Dh)
    ipb_ref,          # (1, 3E)      in_proj bias, q part pre-scaled
    opw_t_ref,        # (E, E)       out_proj weight^T
    opb_ref,          # (1, E)
    n1w_ref, n1b_ref, # (1, E)
    gw_t_ref,         # (E, n_experts)
    gb_ref,           # (1, n_experts)
    exp_ref,          # (n_experts, n_experts*d_ff)  block-ones expander (constant)
    w1_all_ref,       # (E, n_experts*d_ff)          experts' first layer, lane-concatenated
    b1_all_ref,       # (1, n_experts*d_ff)
    w2_all_ref,       # (n_experts*d_ff, E)          experts' second layer, sublane-stacked
    b2_all_ref,       # (n_experts, E)
    n2w_ref, n2b_ref, # (1, E)
    o_ref,            # (T, E)
):
    x = x_ref[...]                                                           # (T, E)

    # ---------- multi-head self-attention (q=k=v=x, no mask) ----------
    # one wide in_proj matmul over all tokens; q scale already folded into weights/bias
    qkv = jnp.dot(x, ipw_t_ref[...], preferred_element_type=jnp.float32) + ipb_ref[...]  # (T, 3E)

    opw_t = opw_t_ref[...]                                                   # (E, E)
    attended_rows = []
    for n in range(N):
        qkv_n = qkv[n * L:(n + 1) * L, :]                                    # (L, 3E)
        acc = jnp.zeros((L, D_MODEL), dtype=jnp.float32)
        for h in range(N_HEADS):
            q = qkv_n[:, h * D_HEAD:(h + 1) * D_HEAD]                                    # (L, Dh)
            k = qkv_n[:, D_MODEL + h * D_HEAD:D_MODEL + (h + 1) * D_HEAD]                # (L, Dh)
            v = qkv_n[:, 2 * D_MODEL + h * D_HEAD:2 * D_MODEL + (h + 1) * D_HEAD]        # (L, Dh)
            s = jnp.dot(q, k.T, preferred_element_type=jnp.float32)                      # (L, L)
            s = s - jnp.max(s, axis=-1, keepdims=True)
            p = jnp.exp(s)
            p = p * pl.reciprocal(jnp.sum(p, axis=-1, keepdims=True), approx=True)
            ho = jnp.dot(p, v, preferred_element_type=jnp.float32)                       # (L, Dh)
            # fold out_proj into the head loop: no lane-axis concat of head outputs
            acc = acc + jnp.dot(ho, opw_t[h * D_HEAD:(h + 1) * D_HEAD, :],
                                preferred_element_type=jnp.float32)                      # (L, E)
        attended_rows.append(acc)
    attended = jnp.concatenate(attended_rows, axis=0) + opb_ref[...]        # (T, E), sublane concat

    # ---------- residual + norm1 ----------
    x1 = _layer_norm(x + attended, n1w_ref[...], n1b_ref[...])              # (T, E)

    # ---------- gated mixture of experts (4 experts fused into two 256-wide matmuls) ----------
    logits = jnp.dot(x1, gw_t_ref[...], preferred_element_type=jnp.float32) + gb_ref[...]  # (T, nE)
    logits = logits - jnp.max(logits, axis=-1, keepdims=True)
    g = jnp.exp(logits)
    gate = g * pl.reciprocal(jnp.sum(g, axis=-1, keepdims=True), approx=True)              # (T, nE)

    h1 = jnp.dot(x1, w1_all_ref[...], preferred_element_type=jnp.float32) + b1_all_ref[...]  # (T, nE*dff)
    h1 = jnp.maximum(h1, 0.0)                                                # ReLU
    gate_wide = jnp.dot(gate, exp_ref[...], preferred_element_type=jnp.float32)              # (T, nE*dff)
    moe = (jnp.dot(h1 * gate_wide, w2_all_ref[...], preferred_element_type=jnp.float32)
           + jnp.dot(gate, b2_all_ref[...], preferred_element_type=jnp.float32))             # (T, E)

    # ---------- residual + norm2 ----------
    y = _layer_norm(x1 + moe, n2w_ref[...], n2b_ref[...])
    o_ref[...] = y.astype(o_ref.dtype)


def titan_transformer_block(x_lne, params):
    """x_lne: (L, N, E) float32, like torch (seq, batch, d_model). Returns (L, N, E)."""
    # flatten to a batch-major (T, E) token slab for the single-shot kernel
    x_flat = jnp.transpose(x_lne, (1, 0, 2)).reshape(T, D_MODEL)

    in_arrays = [
        x_flat,
        params["in_proj_w_t"], params["in_proj_b"],
        params["out_proj_w_t"], params["out_proj_b"],
        params["norm1_w"], params["norm1_b"],
        params["gate_w_t"], params["gate_b"],
        params["expander"],
        params["w1_all"], params["b1_all"],
        params["w2_all"], params["b2_all"],
        params["norm2_w"], params["norm2_b"],
    ]

    vmem_spec = pl.BlockSpec(memory_space=pltpu.MemorySpace.VMEM)  # whole array resident in VMEM

    out = pl.pallas_call(
        titan_block_kernel,
        out_shape=jax.ShapeDtypeStruct((T, D_MODEL), jnp.float32),
        in_specs=[vmem_spec] * len(in_arrays),
        out_specs=vmem_spec,
    )(*in_arrays)

    return jnp.transpose(out.reshape(N, L, D_MODEL), (1, 0, 2))  # back to (L, N, E)


def init_params(key):
    ks = jax.random.split(key, 10)
    s = 0.02
    scale = 1.0 / math.sqrt(D_HEAD)
    p = {}

    # nn.MultiheadAttention: in_proj (3E, E), out_proj (E, E). Fold q-scale into q rows of
    # in_proj weight and bias (identical to scaling q after in_proj), then pre-transpose.
    in_proj_w = s * jax.random.normal(ks[0], (3 * D_MODEL, D_MODEL))
    in_proj_b = s * jax.random.normal(ks[1], (3 * D_MODEL,))
    q_scale = jnp.concatenate([jnp.full((D_MODEL,), scale, jnp.float32),
                               jnp.ones((2 * D_MODEL,), jnp.float32)])
    p["in_proj_w_t"] = (in_proj_w * q_scale[:, None]).T          # (E, 3E)
    p["in_proj_b"] = (in_proj_b * q_scale)[None, :]              # (1, 3E)

    out_proj_w = s * jax.random.normal(ks[2], (D_MODEL, D_MODEL))
    p["out_proj_w_t"] = out_proj_w.T                             # (E, E)
    p["out_proj_b"] = (s * jax.random.normal(ks[3], (D_MODEL,)))[None, :]

    # LayerNorms (torch defaults: weight=1, bias=0)
    p["norm1_w"] = jnp.ones((1, D_MODEL), jnp.float32)
    p["norm1_b"] = jnp.zeros((1, D_MODEL), jnp.float32)
    p["norm2_w"] = jnp.ones((1, D_MODEL), jnp.float32)
    p["norm2_b"] = jnp.zeros((1, D_MODEL), jnp.float32)

    # gate: Linear(d_model, n_experts)
    gate_w = s * jax.random.normal(ks[4], (N_EXPERTS, D_MODEL))
    p["gate_w_t"] = gate_w.T                                     # (E, nE)
    p["gate_b"] = (s * jax.random.normal(ks[5], (N_EXPERTS,)))[None, :]

    # experts: Linear(E, d_ff) -> ReLU -> Linear(d_ff, E); fuse all experts into two wide matmuls.
    w1 = s * jax.random.normal(ks[6], (N_EXPERTS, D_FF, D_MODEL))   # torch weight shape per expert
    b1 = s * jax.random.normal(ks[7], (N_EXPERTS, D_FF))
    w2 = s * jax.random.normal(ks[8], (N_EXPERTS, D_MODEL, D_FF))
    b2 = s * jax.random.normal(ks[9], (N_EXPERTS, D_MODEL))

    # w1_all[:, e*dff:(e+1)*dff] = w1[e].T ; w2_all[e*dff:(e+1)*dff, :] = w2[e].T
    p["w1_all"] = jnp.transpose(w1, (2, 0, 1)).reshape(D_MODEL, N_EXPERTS * D_FF)   # (E, nE*dff)
    p["b1_all"] = b1.reshape(1, N_EXPERTS * D_FF)                                   # (1, nE*dff)
    p["w2_all"] = jnp.transpose(w2, (0, 2, 1)).reshape(N_EXPERTS * D_FF, D_MODEL)   # (nE*dff, E)
    p["b2_all"] = b2                                                                # (nE, E)

    # constant block-ones expander: row e has ones in columns [e*dff, (e+1)*dff)
    p["expander"] = jnp.repeat(jnp.eye(N_EXPERTS, dtype=jnp.float32), D_FF, axis=1)  # (nE, nE*dff)

    return {k: v.astype(jnp.float32) for k, v in p.items()}


if __name__ == "__main__":
    key = jax.random.PRNGKey(0)
    k_x, k_p = jax.random.split(key)
    x = jax.random.normal(k_x, (L, N, D_MODEL), dtype=jnp.float32)  # (seq, batch, d_model)
    params = init_params(k_p)

    y = titan_transformer_block(x, params)
    y = jax.block_until_ready(y)
    assert y.shape == (L, N, D_MODEL) and y.dtype == jnp.float32
    assert bool(jnp.all(jnp.isfinite(y)))
    print("KERNEL_OK")
</pallas_src>

<mosaic_0001>
module attributes {stable_mosaic.version = 11 : i64} {
  func.func @titan_block_kernel(%arg0: memref<16x32xf32, #tpu.memory_space<vmem>>, %arg1: memref<32x96xf32, #tpu.memory_space<vmem>>, %arg2: memref<1x96xf32, #tpu.memory_space<vmem>>, %arg3: memref<32x32xf32, #tpu.memory_space<vmem>>, %arg4: memref<1x32xf32, #tpu.memory_space<vmem>>, %arg5: memref<1x32xf32, #tpu.memory_space<vmem>>, %arg6: memref<1x32xf32, #tpu.memory_space<vmem>>, %arg7: memref<32x4xf32, #tpu.memory_space<vmem>>, %arg8: memref<1x4xf32, #tpu.memory_space<vmem>>, %arg9: memref<4x256xf32, #tpu.memory_space<vmem>>, %arg10: memref<32x256xf32, #tpu.memory_space<vmem>>, %arg11: memref<1x256xf32, #tpu.memory_space<vmem>>, %arg12: memref<256x32xf32, #tpu.memory_space<vmem>>, %arg13: memref<4x32xf32, #tpu.memory_space<vmem>>, %arg14: memref<1x32xf32, #tpu.memory_space<vmem>>, %arg15: memref<1x32xf32, #tpu.memory_space<vmem>>, %arg16: memref<16x32xf32, #tpu.memory_space<vmem>>) attributes {dimension_semantics = [], scalar_prefetch = 0 : i64, scratch_operands = 0 : i64, tpu.core_type = #tpu.core_type<tc>} {
    %c0 = arith.constant 0 : index
    %c0_0 = arith.constant 0 : index
    %0 = vector.load %arg0[%c0, %c0_0] : memref<16x32xf32, #tpu.memory_space<vmem>>, vector<16x32xf32>
    %c0_1 = arith.constant 0 : index
    %c0_2 = arith.constant 0 : index
    %1 = vector.load %arg1[%c0_1, %c0_2] : memref<32x96xf32, #tpu.memory_space<vmem>>, vector<32x96xf32>
    %cst = arith.constant dense<0.000000e+00> : vector<16x96xf32>
    %2 = tpu.matmul %0, %1, %cst {dimension_numbers = #tpu.dot_dimension_numbers<[1], [0], [0], [1], [0, 0, 1, 1], [], []>} : vector<16x32xf32>, vector<32x96xf32>, vector<16x96xf32> -> vector<16x96xf32>
    %c0_3 = arith.constant 0 : index
    %c0_4 = arith.constant 0 : index
    %3 = vector.load %arg2[%c0_3, %c0_4] : memref<1x96xf32, #tpu.memory_space<vmem>>, vector<1x96xf32>
    %4 = vector.broadcast %3 : vector<1x96xf32> to vector<16x96xf32>
    %5 = arith.addf %2, %4 : vector<16x96xf32>
    %c0_5 = arith.constant 0 : index
    %c0_6 = arith.constant 0 : index
    %6 = vector.load %arg3[%c0_5, %c0_6] : memref<32x32xf32, #tpu.memory_space<vmem>>, vector<32x32xf32>
    %7 = vector.extract_strided_slice %5 {offsets = [0, 0], sizes = [8, 96], strides = [1, 1]} : vector<16x96xf32> to vector<8x96xf32>
    %cst_7 = arith.constant 0.000000e+00 : f32
    %8 = vector.broadcast %cst_7 : f32 to vector<8x32xf32>
    %9 = vector.extract_strided_slice %7 {offsets = [0, 0], sizes = [8, 8], strides = [1, 1]} : vector<8x96xf32> to vector<8x8xf32>
    %10 = vector.extract_strided_slice %7 {offsets = [0, 32], sizes = [8, 8], strides = [1, 1]} : vector<8x96xf32> to vector<8x8xf32>
    %11 = vector.extract_strided_slice %7 {offsets = [0, 64], sizes = [8, 8], strides = [1, 1]} : vector<8x96xf32> to vector<8x8xf32>
    %12 = tpu.transpose %10, [1, 0] : vector<8x8xf32> -> vector<8x8xf32>
    %cst_8 = arith.constant dense<0.000000e+00> : vector<8x8xf32>
    %13 = tpu.matmul %9, %12, %cst_8 {dimension_numbers = #tpu.dot_dimension_numbers<[1], [0], [0], [1], [0, 0, 1, 1], [], []>} : vector<8x8xf32>, vector<8x8xf32>, vector<8x8xf32> -> vector<8x8xf32>
    %cst_9 = arith.constant dense<0xFF800000> : vector<8xf32>
    %14 = vector.multi_reduction <maximumf>, %13, %cst_9 [1] : vector<8x8xf32> to vector<8xf32>
    %15 = vector.shape_cast %14 : vector<8xf32> to vector<8x1xf32>
    %16 = vector.broadcast %15 : vector<8x1xf32> to vector<8x8xf32>
    %17 = arith.subf %13, %16 : vector<8x8xf32>
    %18 = math.exp %17 : vector<8x8xf32>
    %cst_10 = arith.constant dense<0.000000e+00> : vector<8xf32>
    %19 = vector.multi_reduction <add>, %18, %cst_10 [1] : vector<8x8xf32> to vector<8xf32>
    %20 = vector.shape_cast %19 : vector<8xf32> to vector<8x1xf32>
    %21 = tpu.reciprocal %20 {approx = true} : vector<8x1xf32> -> vector<8x1xf32>
    %22 = vector.broadcast %21 : vector<8x1xf32> to vector<8x8xf32>
    %23 = arith.mulf %18, %22 : vector<8x8xf32>
    %cst_11 = arith.constant dense<0.000000e+00> : vector<8x8xf32>
    %24 = tpu.matmul %23, %11, %cst_11 {dimension_numbers = #tpu.dot_dimension_numbers<[1], [0], [0], [1], [0, 0, 1, 1], [], []>} : vector<8x8xf32>, vector<8x8xf32>, vector<8x8xf32> -> vector<8x8xf32>
    %25 = vector.extract_strided_slice %6 {offsets = [0, 0], sizes = [8, 32], strides = [1, 1]} : vector<32x32xf32> to vector<8x32xf32>
    %cst_12 = arith.constant dense<0.000000e+00> : vector<8x32xf32>
    %26 = tpu.matmul %24, %25, %cst_12 {dimension_numbers = #tpu.dot_dimension_numbers<[1], [0], [0], [1], [0, 0, 1, 1], [], []>} : vector<8x8xf32>, vector<8x32xf32>, vector<8x32xf32> -> vector<8x32xf32>
    %27 = arith.addf %8, %26 : vector<8x32xf32>
    %28 = vector.extract_strided_slice %7 {offsets = [0, 8], sizes = [8, 8], strides = [1, 1]} : vector<8x96xf32> to vector<8x8xf32>
    %29 = vector.extract_strided_slice %7 {offsets = [0, 40], sizes = [8, 8], strides = [1, 1]} : vector<8x96xf32> to vector<8x8xf32>
    %30 = vector.extract_strided_slice %7 {offsets = [0, 72], sizes = [8, 8], strides = [1, 1]} : vector<8x96xf32> to vector<8x8xf32>
    %31 = tpu.transpose %29, [1, 0] : vector<8x8xf32> -> vector<8x8xf32>
    %cst_13 = arith.constant dense<0.000000e+00> : vector<8x8xf32>
    %32 = tpu.matmul %28, %31, %cst_13 {dimension_numbers = #tpu.dot_dimension_numbers<[1], [0], [0], [1], [0, 0, 1, 1], [], []>} : vector<8x8xf32>, vector<8x8xf32>, vector<8x8xf32> -> vector<8x8xf32>
    %cst_14 = arith.constant dense<0xFF800000> : vector<8xf32>
    %33 = vector.multi_reduction <maximumf>, %32, %cst_14 [1] : vector<8x8xf32> to vector<8xf32>
    %34 = vector.shape_cast %33 : vector<8xf32> to vector<8x1xf32>
    %35 = vector.broadcast %34 : vector<8x1xf32> to vector<8x8xf32>
    %36 = arith.subf %32, %35 : vector<8x8xf32>
    %37 = math.exp %36 : vector<8x8xf32>
    %cst_15 = arith.constant dense<0.000000e+00> : vector<8xf32>
    %38 = vector.multi_reduction <add>, %37, %cst_15 [1] : vector<8x8xf32> to vector<8xf32>
    %39 = vector.shape_cast %38 : vector<8xf32> to vector<8x1xf32>
    %40 = tpu.reciprocal %39 {approx = true} : vector<8x1xf32> -> vector<8x1xf32>
    %41 = vector.broadcast %40 : vector<8x1xf32> to vector<8x8xf32>
    %42 = arith.mulf %37, %41 : vector<8x8xf32>
    %cst_16 = arith.constant dense<0.000000e+00> : vector<8x8xf32>
    %43 = tpu.matmul %42, %30, %cst_16 {dimension_numbers = #tpu.dot_dimension_numbers<[1], [0], [0], [1], [0, 0, 1, 1], [], []>} : vector<8x8xf32>, vector<8x8xf32>, vector<8x8xf32> -> vector<8x8xf32>
    %44 = vector.extract_strided_slice %6 {offsets = [8, 0], sizes = [8, 32], strides = [1, 1]} : vector<32x32xf32> to vector<8x32xf32>
    %cst_17 = arith.constant dense<0.000000e+00> : vector<8x32xf32>
    %45 = tpu.matmul %43, %44, %cst_17 {dimension_numbers = #tpu.dot_dimension_numbers<[1], [0], [0], [1], [0, 0, 1, 1], [], []>} : vector<8x8xf32>, vector<8x32xf32>, vector<8x32xf32> -> vector<8x32xf32>
    %46 = arith.addf %27, %45 : vector<8x32xf32>
    %47 = vector.extract_strided_slice %7 {offsets = [0, 16], sizes = [8, 8], strides = [1, 1]} : vector<8x96xf32> to vector<8x8xf32>
    %48 = vector.extract_strided_slice %7 {offsets = [0, 48], sizes = [8, 8], strides = [1, 1]} : vector<8x96xf32> to vector<8x8xf32>
    %49 = vector.extract_strided_slice %7 {offsets = [0, 80], sizes = [8, 8], strides = [1, 1]} : vector<8x96xf32> to vector<8x8xf32>
    %50 = tpu.transpose %48, [1, 0] : vector<8x8xf32> -> vector<8x8xf32>
    %cst_18 = arith.constant dense<0.000000e+00> : vector<8x8xf32>
    %51 = tpu.matmul %47, %50, %cst_18 {dimension_numbers = #tpu.dot_dimension_numbers<[1], [0], [0], [1], [0, 0, 1, 1], [], []>} : vector<8x8xf32>, vector<8x8xf32>, vector<8x8xf32> -> vector<8x8xf32>
    %cst_19 = arith.constant dense<0xFF800000> : vector<8xf32>
    %52 = vector.multi_reduction <maximumf>, %51, %cst_19 [1] : vector<8x8xf32> to vector<8xf32>
    %53 = vector.shape_cast %52 : vector<8xf32> to vector<8x1xf32>
    %54 = vector.broadcast %53 : vector<8x1xf32> to vector<8x8xf32>
    %55 = arith.subf %51, %54 : vector<8x8xf32>
    %56 = math.exp %55 : vector<8x8xf32>
    %cst_20 = arith.constant dense<0.000000e+00> : vector<8xf32>
    %57 = vector.multi_reduction <add>, %56, %cst_20 [1] : vector<8x8xf32> to vector<8xf32>
    %58 = vector.shape_cast %57 : vector<8xf32> to vector<8x1xf32>
    %59 = tpu.reciprocal %58 {approx = true} : vector<8x1xf32> -> vector<8x1xf32>
    %60 = vector.broadcast %59 : vector<8x1xf32> to vector<8x8xf32>
    %61 = arith.mulf %56, %60 : vector<8x8xf32>
    %cst_21 = arith.constant dense<0.000000e+00> : vector<8x8xf32>
    %62 = tpu.matmul %61, %49, %cst_21 {dimension_numbers = #tpu.dot_dimension_numbers<[1], [0], [0], [1], [0, 0, 1, 1], [], []>} : vector<8x8xf32>, vector<8x8xf32>, vector<8x8xf32> -> vector<8x8xf32>
    %63 = vector.extract_strided_slice %6 {offsets = [16, 0], sizes = [8, 32], strides = [1, 1]} : vector<32x32xf32> to vector<8x32xf32>
    %cst_22 = arith.constant dense<0.000000e+00> : vector<8x32xf32>
    %64 = tpu.matmul %62, %63, %cst_22 {dimension_numbers = #tpu.dot_dimension_numbers<[1], [0], [0], [1], [0, 0, 1, 1], [], []>} : vector<8x8xf32>, vector<8x32xf32>, vector<8x32xf32> -> vector<8x32xf32>
    %65 = arith.addf %46, %64 : vector<8x32xf32>
    %66 = vector.extract_strided_slice %7 {offsets = [0, 24], sizes = [8, 8], strides = [1, 1]} : vector<8x96xf32> to vector<8x8xf32>
    %67 = vector.extract_strided_slice %7 {offsets = [0, 56], sizes = [8, 8], strides = [1, 1]} : vector<8x96xf32> to vector<8x8xf32>
    %68 = vector.extract_strided_slice %7 {offsets = [0, 88], sizes = [8, 8], strides = [1, 1]} : vector<8x96xf32> to vector<8x8xf32>
    %69 = tpu.transpose %67, [1, 0] : vector<8x8xf32> -> vector<8x8xf32>
    %cst_23 = arith.constant dense<0.000000e+00> : vector<8x8xf32>
    %70 = tpu.matmul %66, %69, %cst_23 {dimension_numbers = #tpu.dot_dimension_numbers<[1], [0], [0], [1], [0, 0, 1, 1], [], []>} : vector<8x8xf32>, vector<8x8xf32>, vector<8x8xf32> -> vector<8x8xf32>
    %cst_24 = arith.constant dense<0xFF800000> : vector<8xf32>
    %71 = vector.multi_reduction <maximumf>, %70, %cst_24 [1] : vector<8x8xf32> to vector<8xf32>
    %72 = vector.shape_cast %71 : vector<8xf32> to vector<8x1xf32>
    %73 = vector.broadcast %72 : vector<8x1xf32> to vector<8x8xf32>
    %74 = arith.subf %70, %73 : vector<8x8xf32>
    %75 = math.exp %74 : vector<8x8xf32>
    %cst_25 = arith.constant dense<0.000000e+00> : vector<8xf32>
    %76 = vector.multi_reduction <add>, %75, %cst_25 [1] : vector<8x8xf32> to vector<8xf32>
    %77 = vector.shape_cast %76 : vector<8xf32> to vector<8x1xf32>
    %78 = tpu.reciprocal %77 {approx = true} : vector<8x1xf32> -> vector<8x1xf32>
    %79 = vector.broadcast %78 : vector<8x1xf32> to vector<8x8xf32>
    %80 = arith.mulf %75, %79 : vector<8x8xf32>
    %cst_26 = arith.constant dense<0.000000e+00> : vector<8x8xf32>
    %81 = tpu.matmul %80, %68, %cst_26 {dimension_numbers = #tpu.dot_dimension_numbers<[1], [0], [0], [1], [0, 0, 1, 1], [], []>} : vector<8x8xf32>, vector<8x8xf32>, vector<8x8xf32> -> vector<8x8xf32>
    %82 = vector.extract_strided_slice %6 {offsets = [24, 0], sizes = [8, 32], strides = [1, 1]} : vector<32x32xf32> to vector<8x32xf32>
    %cst_27 = arith.constant dense<0.000000e+00> : vector<8x32xf32>
    %83 = tpu.matmul %81, %82, %cst_27 {dimension_numbers = #tpu.dot_dimension_numbers<[1], [0], [0], [1], [0, 0, 1, 1], [], []>} : vector<8x8xf32>, vector<8x32xf32>, vector<8x32xf32> -> vector<8x32xf32>
    %84 = arith.addf %65, %83 : vector<8x32xf32>
    %85 = vector.extract_strided_slice %5 {offsets = [8, 0], sizes = [8, 96], strides = [1, 1]} : vector<16x96xf32> to vector<8x96xf32>
    %cst_28 = arith.constant 0.000000e+00 : f32
    %86 = vector.broadcast %cst_28 : f32 to vector<8x32xf32>
    %87 = vector.extract_strided_slice %85 {offsets = [0, 0], sizes = [8, 8], strides = [1, 1]} : vector<8x96xf32> to vector<8x8xf32>
    %88 = vector.extract_strided_slice %85 {offsets = [0, 32], sizes = [8, 8], strides = [1, 1]} : vector<8x96xf32> to vector<8x8xf32>
    %89 = vector.extract_strided_slice %85 {offsets = [0, 64], sizes = [8, 8], strides = [1, 1]} : vector<8x96xf32> to vector<8x8xf32>
    %90 = tpu.transpose %88, [1, 0] : vector<8x8xf32> -> vector<8x8xf32>
    %cst_29 = arith.constant dense<0.000000e+00> : vector<8x8xf32>
    %91 = tpu.matmul %87, %90, %cst_29 {dimension_numbers = #tpu.dot_dimension_numbers<[1], [0], [0], [1], [0, 0, 1, 1], [], []>} : vector<8x8xf32>, vector<8x8xf32>, vector<8x8xf32> -> vector<8x8xf32>
    %cst_30 = arith.constant dense<0xFF800000> : vector<8xf32>
    %92 = vector.multi_reduction <maximumf>, %91, %cst_30 [1] : vector<8x8xf32> to vector<8xf32>
    %93 = vector.shape_cast %92 : vector<8xf32> to vector<8x1xf32>
    %94 = vector.broadcast %93 : vector<8x1xf32> to vector<8x8xf32>
    %95 = arith.subf %91, %94 : vector<8x8xf32>
    %96 = math.exp %95 : vector<8x8xf32>
    %cst_31 = arith.constant dense<0.000000e+00> : vector<8xf32>
    %97 = vector.multi_reduction <add>, %96, %cst_31 [1] : vector<8x8xf32> to vector<8xf32>
    %98 = vector.shape_cast %97 : vector<8xf32> to vector<8x1xf32>
    %99 = tpu.reciprocal %98 {approx = true} : vector<8x1xf32> -> vector<8x1xf32>
    %100 = vector.broadcast %99 : vector<8x1xf32> to vector<8x8xf32>
    %101 = arith.mulf %96, %100 : vector<8x8xf32>
    %cst_32 = arith.constant dense<0.000000e+00> : vector<8x8xf32>
    %102 = tpu.matmul %101, %89, %cst_32 {dimension_numbers = #tpu.dot_dimension_numbers<[1], [0], [0], [1], [0, 0, 1, 1], [], []>} : vector<8x8xf32>, vector<8x8xf32>, vector<8x8xf32> -> vector<8x8xf32>
    %103 = vector.extract_strided_slice %6 {offsets = [0, 0], sizes = [8, 32], strides = [1, 1]} : vector<32x32xf32> to vector<8x32xf32>
    %cst_33 = arith.constant dense<0.000000e+00> : vector<8x32xf32>
    %104 = tpu.matmul %102, %103, %cst_33 {dimension_numbers = #tpu.dot_dimension_numbers<[1], [0], [0], [1], [0, 0, 1, 1], [], []>} : vector<8x8xf32>, vector<8x32xf32>, vector<8x32xf32> -> vector<8x32xf32>
    %105 = arith.addf %86, %104 : vector<8x32xf32>
    %106 = vector.extract_strided_slice %85 {offsets = [0, 8], sizes = [8, 8], strides = [1, 1]} : vector<8x96xf32> to vector<8x8xf32>
    %107 = vector.extract_strided_slice %85 {offsets = [0, 40], sizes = [8, 8], strides = [1, 1]} : vector<8x96xf32> to vector<8x8xf32>
    %108 = vector.extract_strided_slice %85 {offsets = [0, 72], sizes = [8, 8], strides = [1, 1]} : vector<8x96xf32> to vector<8x8xf32>
    %109 = tpu.transpose %107, [1, 0] : vector<8x8xf32> -> vector<8x8xf32>
    %cst_34 = arith.constant dense<0.000000e+00> : vector<8x8xf32>
    %110 = tpu.matmul %106, %109, %cst_34 {dimension_numbers = #tpu.dot_dimension_numbers<[1], [0], [0], [1], [0, 0, 1, 1], [], []>} : vector<8x8xf32>, vector<8x8xf32>, vector<8x8xf32> -> vector<8x8xf32>
    %cst_35 = arith.constant dense<0xFF800000> : vector<8xf32>
    %111 = vector.multi_reduction <maximumf>, %110, %cst_35 [1] : vector<8x8xf32> to vector<8xf32>
    %112 = vector.shape_cast %111 : vector<8xf32> to vector<8x1xf32>
    %113 = vector.broadcast %112 : vector<8x1xf32> to vector<8x8xf32>
    %114 = arith.subf %110, %113 : vector<8x8xf32>
    %115 = math.exp %114 : vector<8x8xf32>
    %cst_36 = arith.constant dense<0.000000e+00> : vector<8xf32>
    %116 = vector.multi_reduction <add>, %115, %cst_36 [1] : vector<8x8xf32> to vector<8xf32>
    %117 = vector.shape_cast %116 : vector<8xf32> to vector<8x1xf32>
    %118 = tpu.reciprocal %117 {approx = true} : vector<8x1xf32> -> vector<8x1xf32>
    %119 = vector.broadcast %118 : vector<8x1xf32> to vector<8x8xf32>
    %120 = arith.mulf %115, %119 : vector<8x8xf32>
    %cst_37 = arith.constant dense<0.000000e+00> : vector<8x8xf32>
    %121 = tpu.matmul %120, %108, %cst_37 {dimension_numbers = #tpu.dot_dimension_numbers<[1], [0], [0], [1], [0, 0, 1, 1], [], []>} : vector<8x8xf32>, vector<8x8xf32>, vector<8x8xf32> -> vector<8x8xf32>
    %122 = vector.extract_strided_slice %6 {offsets = [8, 0], sizes = [8, 32], strides = [1, 1]} : vector<32x32xf32> to vector<8x32xf32>
    %cst_38 = arith.constant dense<0.000000e+00> : vector<8x32xf32>
    %123 = tpu.matmul %121, %122, %cst_38 {dimension_numbers = #tpu.dot_dimension_numbers<[1], [0], [0], [1], [0, 0, 1, 1], [], []>} : vector<8x8xf32>, vector<8x32xf32>, vector<8x32xf32> -> vector<8x32xf32>
    %124 = arith.addf %105, %123 : vector<8x32xf32>
    %125 = vector.extract_strided_slice %85 {offsets = [0, 16], sizes = [8, 8], strides = [1, 1]} : vector<8x96xf32> to vector<8x8xf32>
    %126 = vector.extract_strided_slice %85 {offsets = [0, 48], sizes = [8, 8], strides = [1, 1]} : vector<8x96xf32> to vector<8x8xf32>
    %127 = vector.extract_strided_slice %85 {offsets = [0, 80], sizes = [8, 8], strides = [1, 1]} : vector<8x96xf32> to vector<8x8xf32>
    %128 = tpu.transpose %126, [1, 0] : vector<8x8xf32> -> vector<8x8xf32>
    %cst_39 = arith.constant dense<0.000000e+00> : vector<8x8xf32>
    %129 = tpu.matmul %125, %128, %cst_39 {dimension_numbers = #tpu.dot_dimension_numbers<[1], [0], [0], [1], [0, 0, 1, 1], [], []>} : vector<8x8xf32>, vector<8x8xf32>, vector<8x8xf32> -> vector<8x8xf32>
    %cst_40 = arith.constant dense<0xFF800000> : vector<8xf32>
    %130 = vector.multi_reduction <maximumf>, %129, %cst_40 [1] : vector<8x8xf32> to vector<8xf32>
    %131 = vector.shape_cast %130 : vector<8xf32> to vector<8x1xf32>
    %132 = vector.broadcast %131 : vector<8x1xf32> to vector<8x8xf32>
    %133 = arith.subf %129, %132 : vector<8x8xf32>
    %134 = math.exp %133 : vector<8x8xf32>
    %cst_41 = arith.constant dense<0.000000e+00> : vector<8xf32>
    %135 = vector.multi_reduction <add>, %134, %cst_41 [1] : vector<8x8xf32> to vector<8xf32>
    %136 = vector.shape_cast %135 : vector<8xf32> to vector<8x1xf32>
    %137 = tpu.reciprocal %136 {approx = true} : vector<8x1xf32> -> vector<8x1xf32>
    %138 = vector.broadcast %137 : vector<8x1xf32> to vector<8x8xf32>
    %139 = arith.mulf %134, %138 : vector<8x8xf32>
    %cst_42 = arith.constant dense<0.000000e+00> : vector<8x8xf32>
    %140 = tpu.matmul %139, %127, %cst_42 {dimension_numbers = #tpu.dot_dimension_numbers<[1], [0], [0], [1], [0, 0, 1, 1], [], []>} : vector<8x8xf32>, vector<8x8xf32>, vector<8x8xf32> -> vector<8x8xf32>
    %141 = vector.extract_strided_slice %6 {offsets = [16, 0], sizes = [8, 32], strides = [1, 1]} : vector<32x32xf32> to vector<8x32xf32>
    %cst_43 = arith.constant dense<0.000000e+00> : vector<8x32xf32>
    %142 = tpu.matmul %140, %141, %cst_43 {dimension_numbers = #tpu.dot_dimension_numbers<[1], [0], [0], [1], [0, 0, 1, 1], [], []>} : vector<8x8xf32>, vector<8x32xf32>, vector<8x32xf32> -> vector<8x32xf32>
    %143 = arith.addf %124, %142 : vector<8x32xf32>
    %144 = vector.extract_strided_slice %85 {offsets = [0, 24], sizes = [8, 8], strides = [1, 1]} : vector<8x96xf32> to vector<8x8xf32>
    %145 = vector.extract_strided_slice %85 {offsets = [0, 56], sizes = [8, 8], strides = [1, 1]} : vector<8x96xf32> to vector<8x8xf32>
    %146 = vector.extract_strided_slice %85 {offsets = [0, 88], sizes = [8, 8], strides = [1, 1]} : vector<8x96xf32> to vector<8x8xf32>
    %147 = tpu.transpose %145, [1, 0] : vector<8x8xf32> -> vector<8x8xf32>
    %cst_44 = arith.constant dense<0.000000e+00> : vector<8x8xf32>
    %148 = tpu.matmul %144, %147, %cst_44 {dimension_numbers = #tpu.dot_dimension_numbers<[1], [0], [0], [1], [0, 0, 1, 1], [], []>} : vector<8x8xf32>, vector<8x8xf32>, vector<8x8xf32> -> vector<8x8xf32>
    %cst_45 = arith.constant dense<0xFF800000> : vector<8xf32>
    %149 = vector.multi_reduction <maximumf>, %148, %cst_45 [1] : vector<8x8xf32> to vector<8xf32>
    %150 = vector.shape_cast %149 : vector<8xf32> to vector<8x1xf32>
    %151 = vector.broadcast %150 : vector<8x1xf32> to vector<8x8xf32>
    %152 = arith.subf %148, %151 : vector<8x8xf32>
    %153 = math.exp %152 : vector<8x8xf32>
    %cst_46 = arith.constant dense<0.000000e+00> : vector<8xf32>
    %154 = vector.multi_reduction <add>, %153, %cst_46 [1] : vector<8x8xf32> to vector<8xf32>
    %155 = vector.shape_cast %154 : vector<8xf32> to vector<8x1xf32>
    %156 = tpu.reciprocal %155 {approx = true} : vector<8x1xf32> -> vector<8x1xf32>
    %157 = vector.broadcast %156 : vector<8x1xf32> to vector<8x8xf32>
    %158 = arith.mulf %153, %157 : vector<8x8xf32>
    %cst_47 = arith.constant dense<0.000000e+00> : vector<8x8xf32>
    %159 = tpu.matmul %158, %146, %cst_47 {dimension_numbers = #tpu.dot_dimension_numbers<[1], [0], [0], [1], [0, 0, 1, 1], [], []>} : vector<8x8xf32>, vector<8x8xf32>, vector<8x8xf32> -> vector<8x8xf32>
    %160 = vector.extract_strided_slice %6 {offsets = [24, 0], sizes = [8, 32], strides = [1, 1]} : vector<32x32xf32> to vector<8x32xf32>
    %cst_48 = arith.constant dense<0.000000e+00> : vector<8x32xf32>
    %161 = tpu.matmul %159, %160, %cst_48 {dimension_numbers = #tpu.dot_dimension_numbers<[1], [0], [0], [1], [0, 0, 1, 1], [], []>} : vector<8x8xf32>, vector<8x32xf32>, vector<8x32xf32> -> vector<8x32xf32>
    %162 = arith.addf %143, %161 : vector<8x32xf32>
    %163 = tpu.concatenate %84, %162 in 0 : vector<8x32xf32>, vector<8x32xf32> -> vector<16x32xf32>
    %c0_49 = arith.constant 0 : index
    %c0_50 = arith.constant 0 : index
    %164 = vector.load %arg4[%c0_49, %c0_50] : memref<1x32xf32, #tpu.memory_space<vmem>>, vector<1x32xf32>
    %165 = vector.broadcast %164 : vector<1x32xf32> to vector<16x32xf32>
    %166 = arith.addf %163, %165 : vector<16x32xf32>
    %167 = arith.addf %0, %166 : vector<16x32xf32>
    %c0_51 = arith.constant 0 : index
    %c0_52 = arith.constant 0 : index
    %168 = vector.load %arg5[%c0_51, %c0_52] : memref<1x32xf32, #tpu.memory_space<vmem>>, vector<1x32xf32>
    %c0_53 = arith.constant 0 : index
    %c0_54 = arith.constant 0 : index
    %169 = vector.load %arg6[%c0_53, %c0_54] : memref<1x32xf32, #tpu.memory_space<vmem>>, vector<1x32xf32>
    %cst_55 = arith.constant dense<0.000000e+00> : vector<16xf32>
    %170 = vector.multi_reduction <add>, %167, %cst_55 [1] : vector<16x32xf32> to vector<16xf32>
    %171 = vector.shape_cast %170 : vector<16xf32> to vector<16x1xf32>
    %cst_56 = arith.constant 3.200000e+01 : f32
    %172 = vector.broadcast %cst_56 : f32 to vector<16x1xf32>
    %173 = arith.divf %171, %172 : vector<16x1xf32>
    %174 = vector.broadcast %173 : vector<16x1xf32> to vector<16x32xf32>
    %175 = arith.subf %167, %174 : vector<16x32xf32>
    %176 = vector.broadcast %173 : vector<16x1xf32> to vector<16x32xf32>
    %177 = arith.subf %167, %176 : vector<16x32xf32>
    %178 = arith.mulf %175, %177 : vector<16x32xf32>
    %cst_57 = arith.constant dense<0.000000e+00> : vector<16xf32>
    %179 = vector.multi_reduction <add>, %178, %cst_57 [1] : vector<16x32xf32> to vector<16xf32>
    %180 = vector.shape_cast %179 : vector<16xf32> to vector<16x1xf32>
    %cst_58 = arith.constant 3.200000e+01 : f32
    %181 = vector.broadcast %cst_58 : f32 to vector<16x1xf32>
    %182 = arith.divf %180, %181 : vector<16x1xf32>
    %183 = vector.broadcast %173 : vector<16x1xf32> to vector<16x32xf32>
    %184 = arith.subf %167, %183 : vector<16x32xf32>
    %cst_59 = arith.constant 9.99999974E-6 : f32
    %185 = vector.broadcast %cst_59 : f32 to vector<16x1xf32>
    %186 = arith.addf %182, %185 : vector<16x1xf32>
    %187 = math.rsqrt %186 : vector<16x1xf32>
    %188 = vector.broadcast %187 : vector<16x1xf32> to vector<16x32xf32>
    %189 = arith.mulf %184, %188 : vector<16x32xf32>
    %190 = vector.broadcast %168 : vector<1x32xf32> to vector<16x32xf32>
    %191 = arith.mulf %189, %190 : vector<16x32xf32>
    %192 = vector.broadcast %169 : vector<1x32xf32> to vector<16x32xf32>
    %193 = arith.addf %191, %192 : vector<16x32xf32>
    %c0_60 = arith.constant 0 : index
    %c0_61 = arith.constant 0 : index
    %194 = vector.load %arg7[%c0_60, %c0_61] : memref<32x4xf32, #tpu.memory_space<vmem>>, vector<32x4xf32>
    %cst_62 = arith.constant dense<0.000000e+00> : vector<16x4xf32>
    %195 = tpu.matmul %193, %194, %cst_62 {dimension_numbers = #tpu.dot_dimension_numbers<[1], [0], [0], [1], [0, 0, 1, 1], [], []>} : vector<16x32xf32>, vector<32x4xf32>, vector<16x4xf32> -> vector<16x4xf32>
    %c0_63 = arith.constant 0 : index
    %c0_64 = arith.constant 0 : index
    %196 = vector.load %arg8[%c0_63, %c0_64] : memref<1x4xf32, #tpu.memory_space<vmem>>, vector<1x4xf32>
    %197 = vector.broadcast %196 : vector<1x4xf32> to vector<16x4xf32>
    %198 = arith.addf %195, %197 : vector<16x4xf32>
    %cst_65 = arith.constant dense<0xFF800000> : vector<16xf32>
    %199 = vector.multi_reduction <maximumf>, %198, %cst_65 [1] : vector<16x4xf32> to vector<16xf32>
    %200 = vector.shape_cast %199 : vector<16xf32> to vector<16x1xf32>
    %201 = vector.broadcast %200 : vector<16x1xf32> to vector<16x4xf32>
    %202 = arith.subf %198, %201 : vector<16x4xf32>
    %203 = math.exp %202 : vector<16x4xf32>
    %cst_66 = arith.constant dense<0.000000e+00> : vector<16xf32>
    %204 = vector.multi_reduction <add>, %203, %cst_66 [1] : vector<16x4xf32> to vector<16xf32>
    %205 = vector.shape_cast %204 : vector<16xf32> to vector<16x1xf32>
    %206 = tpu.reciprocal %205 {approx = true} : vector<16x1xf32> -> vector<16x1xf32>
    %207 = vector.broadcast %206 : vector<16x1xf32> to vector<16x4xf32>
    %208 = arith.mulf %203, %207 : vector<16x4xf32>
    %c0_67 = arith.constant 0 : index
    %c0_68 = arith.constant 0 : index
    %209 = vector.load %arg10[%c0_67, %c0_68] : memref<32x256xf32, #tpu.memory_space<vmem>>, vector<32x256xf32>
    %cst_69 = arith.constant dense<0.000000e+00> : vector<16x256xf32>
    %210 = tpu.matmul %193, %209, %cst_69 {dimension_numbers = #tpu.dot_dimension_numbers<[1], [0], [0], [1], [0, 0, 1, 1], [], []>} : vector<16x32xf32>, vector<32x256xf32>, vector<16x256xf32> -> vector<16x256xf32>
    %c0_70 = arith.constant 0 : index
    %c0_71 = arith.constant 0 : index
    %211 = vector.load %arg11[%c0_70, %c0_71] : memref<1x256xf32, #tpu.memory_space<vmem>>, vector<1x256xf32>
    %212 = vector.broadcast %211 : vector<1x256xf32> to vector<16x256xf32>
    %213 = arith.addf %210, %212 : vector<16x256xf32>
    %cst_72 = arith.constant 0.000000e+00 : f32
    %214 = vector.broadcast %cst_72 : f32 to vector<16x256xf32>
    %215 = arith.maximumf %213, %214 : vector<16x256xf32>
    %c0_73 = arith.constant 0 : index
    %c0_74 = arith.constant 0 : index
    %216 = vector.load %arg9[%c0_73, %c0_74] : memref<4x256xf32, #tpu.memory_space<vmem>>, vector<4x256xf32>
    %cst_75 = arith.constant dense<0.000000e+00> : vector<16x256xf32>
    %217 = tpu.matmul %208, %216, %cst_75 {dimension_numbers = #tpu.dot_dimension_numbers<[1], [0], [0], [1], [0, 0, 1, 1], [], []>} : vector<16x4xf32>, vector<4x256xf32>, vector<16x256xf32> -> vector<16x256xf32>
    %218 = arith.mulf %215, %217 : vector<16x256xf32>
    %c0_76 = arith.constant 0 : index
    %c0_77 = arith.constant 0 : index
    %219 = vector.load %arg12[%c0_76, %c0_77] : memref<256x32xf32, #tpu.memory_space<vmem>>, vector<256x32xf32>
    %cst_78 = arith.constant dense<0.000000e+00> : vector<16x32xf32>
    %220 = tpu.matmul %218, %219, %cst_78 {dimension_numbers = #tpu.dot_dimension_numbers<[1], [0], [0], [1], [0, 0, 1, 1], [], []>} : vector<16x256xf32>, vector<256x32xf32>, vector<16x32xf32> -> vector<16x32xf32>
    %c0_79 = arith.constant 0 : index
    %c0_80 = arith.constant 0 : index
    %221 = vector.load %arg13[%c0_79, %c0_80] : memref<4x32xf32, #tpu.memory_space<vmem>>, vector<4x32xf32>
    %cst_81 = arith.constant dense<0.000000e+00> : vector<16x32xf32>
    %222 = tpu.matmul %208, %221, %cst_81 {dimension_numbers = #tpu.dot_dimension_numbers<[1], [0], [0], [1], [0, 0, 1, 1], [], []>} : vector<16x4xf32>, vector<4x32xf32>, vector<16x32xf32> -> vector<16x32xf32>
    %223 = arith.addf %220, %222 : vector<16x32xf32>
    %224 = arith.addf %193, %223 : vector<16x32xf32>
    %c0_82 = arith.constant 0 : index
    %c0_83 = arith.constant 0 : index
    %225 = vector.load %arg14[%c0_82, %c0_83] : memref<1x32xf32, #tpu.memory_space<vmem>>, vector<1x32xf32>
    %c0_84 = arith.constant 0 : index
    %c0_85 = arith.constant 0 : index
    %226 = vector.load %arg15[%c0_84, %c0_85] : memref<1x32xf32, #tpu.memory_space<vmem>>, vector<1x32xf32>
    %cst_86 = arith.constant dense<0.000000e+00> : vector<16xf32>
    %227 = vector.multi_reduction <add>, %224, %cst_86 [1] : vector<16x32xf32> to vector<16xf32>
    %228 = vector.shape_cast %227 : vector<16xf32> to vector<16x1xf32>
    %cst_87 = arith.constant 3.200000e+01 : f32
    %229 = vector.broadcast %cst_87 : f32 to vector<16x1xf32>
    %230 = arith.divf %228, %229 : vector<16x1xf32>
    %231 = vector.broadcast %230 : vector<16x1xf32> to vector<16x32xf32>
    %232 = arith.subf %224, %231 : vector<16x32xf32>
    %233 = vector.broadcast %230 : vector<16x1xf32> to vector<16x32xf32>
    %234 = arith.subf %224, %233 : vector<16x32xf32>
    %235 = arith.mulf %232, %234 : vector<16x32xf32>
    %cst_88 = arith.constant dense<0.000000e+00> : vector<16xf32>
    %236 = vector.multi_reduction <add>, %235, %cst_88 [1] : vector<16x32xf32> to vector<16xf32>
    %237 = vector.shape_cast %236 : vector<16xf32> to vector<16x1xf32>
    %cst_89 = arith.constant 3.200000e+01 : f32
    %238 = vector.broadcast %cst_89 : f32 to vector<16x1xf32>
    %239 = arith.divf %237, %238 : vector<16x1xf32>
    %240 = vector.broadcast %230 : vector<16x1xf32> to vector<16x32xf32>
    %241 = arith.subf %224, %240 : vector<16x32xf32>
    %cst_90 = arith.constant 9.99999974E-6 : f32
    %242 = vector.broadcast %cst_90 : f32 to vector<16x1xf32>
    %243 = arith.addf %239, %242 : vector<16x1xf32>
    %244 = math.rsqrt %243 : vector<16x1xf32>
    %245 = vector.broadcast %244 : vector<16x1xf32> to vector<16x32xf32>
    %246 = arith.mulf %241, %245 : vector<16x32xf32>
    %247 = vector.broadcast %225 : vector<1x32xf32> to vector<16x32xf32>
    %248 = arith.mulf %246, %247 : vector<16x32xf32>
    %249 = vector.broadcast %226 : vector<1x32xf32> to vector<16x32xf32>
    %250 = arith.addf %248, %249 : vector<16x32xf32>
    %c0_91 = arith.constant 0 : index
    %c0_92 = arith.constant 0 : index
    %251 = vector.load %arg16[%c0_91, %c0_92] : memref<16x32xf32, #tpu.memory_space<vmem>>, vector<16x32xf32>
    tpu.vector_store %arg16[%c0_91, %c0_92], %250 {strides = array<i32>} : memref<16x32xf32, #tpu.memory_space<vmem>>, vector<16x32xf32>,
    return
  }
}

</mosaic_0001>

<llo_original>
// kernel: tpu_custom_call.1
$region0: #{tpu_custom_call.1}
  #allocation0 [shape = 'u32[]', space=smem, size = 0x4, offset = 0x4, fixed_abs, tag = 'smem constant byte address 0x4 - core index']
  #allocation1 [shape = 'u32[144,128]{1,0:T(1,128)}', space=vmem, size = 0x12000, scoped, tag = 'internal scratch']
  %s0 = inlined_call_operand.vmem [shape: f32[16,32], index: 0, kind: input, shape index: {}]
  %s1 = inlined_call_operand.vmem [shape: f32[32,96], index: 1, kind: input, shape index: {}]
  %s2 = inlined_call_operand.vmem [shape: f32[1,96], index: 2, kind: input, shape index: {}]
  %s3 = inlined_call_operand.vmem [shape: f32[32,32], index: 3, kind: input, shape index: {}]
  %s4 = inlined_call_operand.vmem [shape: f32[1,32], index: 4, kind: input, shape index: {}]
  %s5 = inlined_call_operand.vmem [shape: f32[1,32], index: 5, kind: input, shape index: {}]
  %s6 = inlined_call_operand.vmem [shape: f32[1,32], index: 6, kind: input, shape index: {}]
  %s7 = inlined_call_operand.vmem [shape: f32[32,4], index: 7, kind: input, shape index: {}]
  %s8 = inlined_call_operand.vmem [shape: f32[1,4], index: 8, kind: input, shape index: {}]
  %s9 = inlined_call_operand.vmem [shape: f32[4,256], index: 9, kind: input, shape index: {}]
  %s10 = inlined_call_operand.vmem [shape: f32[32,256], index: 10, kind: input, shape index: {}]
  %s11 = inlined_call_operand.vmem [shape: f32[1,256], index: 11, kind: input, shape index: {}]
  %s12 = inlined_call_operand.vmem [shape: f32[256,32], index: 12, kind: input, shape index: {}]
  %s13 = inlined_call_operand.vmem [shape: f32[4,32], index: 13, kind: input, shape index: {}]
  %s14 = inlined_call_operand.vmem [shape: f32[1,32], index: 14, kind: input, shape index: {}]
  %s15 = inlined_call_operand.vmem [shape: f32[1,32], index: 15, kind: input, shape index: {}]
  %s16 = inlined_call_operand.hbm [shape: f32[16,32], index: 16, kind: output, shape index: {}]
  %s17 = sld [smem:[#allocation0]]
  $region74: #{tpu_custom_call.1} parent=0
    _
  %s19 = ssub.s32 1, %s17
  %s20 = scalar_select 0, %s19, %s17
  $region1: #{tpu_custom_call.1} parent=0
    #allocation2 [shape = 'u8[8192]{0}', space=vmem, size = 0x2000, scoped, tag = 'output window, operand 0, single buffered']
    #allocation3 [shape = 's32[1]{0}', space=sflag, size = 0x4, scoped, tag = 'scoped memory for tpu_custom_call.1']
    %21 = vsyncpa [#allocation3], 0
    // Predicated region
    $region2: #{tpu_custom_call.1} parent=1 // pred_check
      _
    $region3: #{tpu_custom_call.1} parent=1 // pred_check_branch
      %23 = sbr.rel (0) target = $region5
    $region4: #{tpu_custom_call.1} parent=1 // pred_region
      _
    $region5: #{tpu_custom_call.1} parent=1 // pred_fallthru
      _
    // Predicated region
    $region6: #{tpu_custom_call.1} parent=1 // pred_check
      _
    $region7: #{tpu_custom_call.1} parent=1 // pred_check_branch
      %25 = sbr.rel (0) target = $region9
    $region8: #{tpu_custom_call.1} parent=1 // pred_region
      _
    $region9: #{tpu_custom_call.1} parent=1 // pred_fallthru
      _
    // Predicated region
    $region10: #{tpu_custom_call.1} parent=1 // pred_check
      _
    $region11: #{tpu_custom_call.1} parent=1 // pred_check_branch
      %27 = sbr.rel (0) target = $region13
    $region12: #{tpu_custom_call.1} parent=1 // pred_region
      _
    $region13: #{tpu_custom_call.1} parent=1 // pred_fallthru
      _
    // Predicated region
    $region14: #{tpu_custom_call.1} parent=1 // pred_check
      _
    $region15: #{tpu_custom_call.1} parent=1 // pred_check_branch
      %29 = sbr.rel (0) target = $region17
    $region16: #{tpu_custom_call.1} parent=1 // pred_region
      _
    $region17: #{tpu_custom_call.1} parent=1 // pred_fallthru
      _
    // Predicated region
    $region18: #{tpu_custom_call.1} parent=1 // pred_check
      _
    $region19: #{tpu_custom_call.1} parent=1 // pred_check_branch
      %31 = sbr.rel (0) target = $region21
    $region20: #{tpu_custom_call.1} parent=1 // pred_region
      _
    $region21: #{tpu_custom_call.1} parent=1 // pred_fallthru
      _
    // Predicated region
    $region22: #{tpu_custom_call.1} parent=1 // pred_check
      _
    $region23: #{tpu_custom_call.1} parent=1 // pred_check_branch
      %33 = sbr.rel (0) target = $region25
    $region24: #{tpu_custom_call.1} parent=1 // pred_region
      _
    $region25: #{tpu_custom_call.1} parent=1 // pred_fallthru
      _
    // Predicated region
    $region26: #{tpu_custom_call.1} parent=1 // pred_check
      _
    $region27: #{tpu_custom_call.1} parent=1 // pred_check_branch
      %35 = sbr.rel (0) target = $region29
    $region28: #{tpu_custom_call.1} parent=1 // pred_region
      _
    $region29: #{tpu_custom_call.1} parent=1 // pred_fallthru
      _
    // Predicated region
    $region30: #{tpu_custom_call.1} parent=1 // pred_check
      _
    $region31: #{tpu_custom_call.1} parent=1 // pred_check_branch
      %37 = sbr.rel (0) target = $region33
    $region32: #{tpu_custom_call.1} parent=1 // pred_region
      _
    $region33: #{tpu_custom_call.1} parent=1 // pred_fallthru
      _
    // Predicated region
    $region34: #{tpu_custom_call.1} parent=1 // pred_check
      _
    $region35: #{tpu_custom_call.1} parent=1 // pred_check_branch
      %39 = sbr.rel (0) target = $region37
    $region36: #{tpu_custom_call.1} parent=1 // pred_region
      _
    $region37: #{tpu_custom_call.1} parent=1 // pred_fallthru
      _
    // Predicated region
    $region38: #{tpu_custom_call.1} parent=1 // pred_check
      _
    $region39: #{tpu_custom_call.1} parent=1 // pred_check_branch
      %41 = sbr.rel (0) target = $region41
    $region40: #{tpu_custom_call.1} parent=1 // pred_region
      _
    $region41: #{tpu_custom_call.1} parent=1 // pred_fallthru
      _
    // Predicated region
    $region42: #{tpu_custom_call.1} parent=1 // pred_check
      _
    $region43: #{tpu_custom_call.1} parent=1 // pred_check_branch
      %43 = sbr.rel (0) target = $region45
    $region44: #{tpu_custom_call.1} parent=1 // pred_region
      _
    $region45: #{tpu_custom_call.1} parent=1 // pred_fallthru
      _
    // Predicated region
    $region46: #{tpu_custom_call.1} parent=1 // pred_check
      _
    $region47: #{tpu_custom_call.1} parent=1 // pred_check_branch
      %45 = sbr.rel (0) target = $region49
    $region48: #{tpu_custom_call.1} parent=1 // pred_region
      _
    $region49: #{tpu_custom_call.1} parent=1 // pred_fallthru
      _
    // Predicated region
    $region50: #{tpu_custom_call.1} parent=1 // pred_check
      _
    $region51: #{tpu_custom_call.1} parent=1 // pred_check_branch
      %47 = sbr.rel (0) target = $region53
    $region52: #{tpu_custom_call.1} parent=1 // pred_region
      _
    $region53: #{tpu_custom_call.1} parent=1 // pred_fallthru
      _
    // Predicated region
    $region54: #{tpu_custom_call.1} parent=1 // pred_check
      _
    $region55: #{tpu_custom_call.1} parent=1 // pred_check_branch
      %49 = sbr.rel (0) target = $region57
    $region56: #{tpu_custom_call.1} parent=1 // pred_region
      _
    $region57: #{tpu_custom_call.1} parent=1 // pred_fallthru
      _
    // Predicated region
    $region58: #{tpu_custom_call.1} parent=1 // pred_check
      _
    $region59: #{tpu_custom_call.1} parent=1 // pred_check_branch
      %51 = sbr.rel (0) target = $region61
    $region60: #{tpu_custom_call.1} parent=1 // pred_region
      _
    $region61: #{tpu_custom_call.1} parent=1 // pred_fallthru
      _
    // Predicated region
    $region62: #{tpu_custom_call.1} parent=1 // pred_check
      _
    $region63: #{tpu_custom_call.1} parent=1 // pred_check_branch
      %53 = sbr.rel (0) target = $region65
    $region64: #{tpu_custom_call.1} parent=1 // pred_region
      _
    $region65: #{tpu_custom_call.1} parent=1 // pred_fallthru
      _
    %v54 = vld [vmem:[%s0] sm:$0xff]
    %v55 = vld [vmem:[%s0 + $0x8] sm:$0xff]
    %v56 = vld [vmem:[%s1] sm:$0xff]
    %v57 = vld [vmem:[%s1 + $0x8] sm:$0xff]
    %v58 = vld [vmem:[%s1 + $0x10] sm:$0xff]
    %v59 = vld [vmem:[%s1 + $0x18] sm:$0xff]
    %v60 = vld [vmem:[%s2] sm:$0x1]
    %v62 = vlaneseq
    %v63 = vshrl.u32 %v62, 7
    %v64 = vsub.s32 0, %v63
    %v65 = vrot.slane %v60, %v64
    %vm67 = vcmask 261120
    %v69 = vsel %vm67, %v54, 0
    %v72 = vsel %vm67, %v55, 0
    %74 = vmatprep.subr.mxu0 0.0
    %75 = vmatpush1.msra.mxu0 0.0
    %76 = vmatprep.subr.mxu0 0.0
    %77 = vmatpush1.msra.mxu0 0.0
    %78 = vmatprep.subr.mxu0 0.0
    %79 = vmatpush1.msra.mxu0 0.0
    %80 = vmatprep.subr.mxu0 0.0
    %81 = vmatpush1.msra.mxu0 0.0
    %82 = vmatprep.subr.mxu0 0.0
    %83 = vmatpush1.msra.mxu0 0.0
    %84 = vmatprep.subr.mxu0 0.0
    %85 = vmatpush1.msra.mxu0 0.0
    %86 = vmatprep.subr.mxu0 0.0
    %87 = vmatpush1.msra.mxu0 0.0
    %88 = vmatprep.subr.mxu0 0.0
    %89 = vmatpush1.msra.mxu0 0.0
    %90 = vmatprep.subr.mxu0 0.0
    %91 = vmatpush1.msra.mxu0 0.0
    %92 = vmatprep.subr.mxu0 0.0
    %93 = vmatpush1.msra.mxu0 0.0
    %94 = vmatprep.subr.mxu0 0.0
    %95 = vmatpush1.msra.mxu0 0.0
    %96 = vmatprep.subr.mxu0 0.0
    %97 = vmatpush1.msra.mxu0 0.0
    %98 = vmatprep.subr.mxu0 0.0
    %99 = vmatpush1.msra.mxu0 %v59
    %100 = vmatprep.subr.mxu0 0.0
    %101 = vmatpush1.msra.mxu0 %v58
    %102 = vmatprep.subr.mxu0 0.0
    %103 = vmatpush1.msra.mxu0 %v57
    %104 = vmatprep.subr.mxu0 0.0
    %105 = vmatpush1.msra.mxu0 %v56
    %106 = vmatprep.subr.mxu0 0.0
    %107 = vmatpush2.msra.mxu0 0.0
    %108 = vmatprep.subr.mxu0 0.0
    %109 = vmatpush2.msra.mxu0 0.0
    %110 = vmatprep.subr.mxu0 0.0
    %111 = vmatpush2.msra.mxu0 0.0
    %112 = vmatprep.subr.mxu0 0.0
    %113 = vmatpush2.msra.mxu0 0.0
    %114 = vmatprep.subr.mxu0 0.0
    %115 = vmatpush2.msra.mxu0 0.0
    %116 = vmatprep.subr.mxu0 0.0
    %117 = vmatpush2.msra.mxu0 0.0
    %118 = vmatprep.subr.mxu0 0.0
    %119 = vmatpush2.msra.mxu0 0.0
    %120 = vmatprep.subr.mxu0 0.0
    %121 = vmatpush2.msra.mxu0 0.0
    %122 = vmatprep.subr.mxu0 0.0
    %123 = vmatpush2.msra.mxu0 0.0
    %124 = vmatprep.subr.mxu0 0.0
    %125 = vmatpush2.msra.mxu0 0.0
    %126 = vmatprep.subr.mxu0 0.0
    %127 = vmatpush2.msra.mxu0 0.0
    %128 = vmatprep.subr.mxu0 0.0
    %129 = vmatpush2.msra.mxu0 0.0
    %130 = vmatprep.subr.mxu0 0.0
    %131 = vmatpush2.msra.mxu0 0.0
    %132 = vmatprep.subr.mxu0 0.0
    %133 = vmatpush2.msra.mxu0 0.0
    %134 = vmatprep.subr.mxu0 0.0
    %135 = vmatpush2.msra.mxu0 0.0
    %136 = vmatprep.subr.mxu0 0.0
    %137 = vmatpush2.msra.mxu0 0.0
    %138 = vmatprep.mubr.f32.mxu0 0.0
    %139 = vmatmul.mubr.f32.gmra.mxu0 %v69
    %v140 = vpop.f32.mrf.mxu0
    %v141 = vadd.f32 %v65, %v140
    %v142 = vpop.f32.mrf.mxu0
    %143 = vmatprep.mubr.f32.mxu0 0.0
    %144 = vmatmul.mubr.f32.gmra.mxu0 %v72
    %v145 = vpop.f32.mrf.mxu0
    %v146 = vadd.f32 %v65, %v145
    %v147 = vpop.f32.mrf.mxu0
    %148 = vdwg.mxu0
    %v149 = vld [vmem:[%s3] sm:$0xff]
    %v150 = vld [vmem:[%s3 + $0x8] sm:$0xff]
    %v151 = vld [vmem:[%s3 + $0x10] sm:$0xff]
    %v152 = vld [vmem:[%s3 + $0x18] sm:$0xff]
    %154 = vrot.lane.b32.xlu0 %v141, 96
    %v155 = vpop.permute.xlu0 %154
    %vm156 = vcmask 64512
    %v157 = vsel %vm156, %v141, 0
    %v159 = vsel %vm156, %v155, 0
    %161 = vmatprep.subr.mxu0 0.0
    %162 = vmatpush1.xpose.msra.mxu0 0.0
    %163 = vmatprep.subr.mxu0 0.0
    %164 = vmatpush1.xpose.msra.mxu0 0.0
    %165 = vmatprep.subr.mxu0 0.0
    %166 = vmatpush1.xpose.msra.mxu0 0.0
    %167 = vmatprep.subr.mxu0 0.0
    %168 = vmatpush1.xpose.msra.mxu0 0.0
    %169 = vmatprep.subr.mxu0 0.0
    %170 = vmatpush1.xpose.msra.mxu0 0.0
    %171 = vmatprep.subr.mxu0 0.0
    %172 = vmatpush1.xpose.msra.mxu0 0.0
    %173 = vmatprep.subr.mxu0 0.0
    %174 = vmatpush1.xpose.msra.mxu0 0.0
    %175 = vmatprep.subr.mxu0 0.0
    %176 = vmatpush1.xpose.msra.mxu0 0.0
    %177 = vmatprep.subr.mxu0 0.0
    %178 = vmatpush1.xpose.msra.mxu0 0.0
    %179 = vmatprep.subr.mxu0 0.0
    %180 = vmatpush1.xpose.msra.mxu0 0.0
    %181 = vmatprep.subr.mxu0 0.0
    %182 = vmatpush1.xpose.msra.mxu0 0.0
    %183 = vmatprep.subr.mxu0 0.0
    %184 = vmatpush1.xpose.msra.mxu0 0.0
    %185 = vmatprep.subr.mxu0 0.0
    %186 = vmatpush1.xpose.msra.mxu0 0.0
    %187 = vmatprep.subr.mxu0 0.0
    %188 = vmatpush1.xpose.msra.mxu0 0.0
    %189 = vmatprep.subr.mxu0 0.0
    %190 = vmatpush1.xpose.msra.mxu0 0.0
    %191 = vmatprep.subr.mxu0 0.0
    %192 = vmatpush1.xpose.msra.mxu0 %v159
    %193 = vmatprep.subr.mxu0 0.0
    %194 = vmatpush2.xpose.msra.mxu0 0.0
    %195 = vmatprep.subr.mxu0 0.0
    %196 = vmatpush2.xpose.msra.mxu0 0.0
    %197 = vmatprep.subr.mxu0 0.0
    %198 = vmatpush2.xpose.msra.mxu0 0.0
    %199 = vmatprep.subr.mxu0 0.0
    %200 = vmatpush2.xpose.msra.mxu0 0.0
    %201 = vmatprep.subr.mxu0 0.0
    %202 = vmatpush2.xpose.msra.mxu0 0.0
    %203 = vmatprep.subr.mxu0 0.0
    %204 = vmatpush2.xpose.msra.mxu0 0.0
    %205 = vmatprep.subr.mxu0 0.0
    %206 = vmatpush2.xpose.msra.mxu0 0.0
    %207 = vmatprep.subr.mxu0 0.0
    %208 = vmatpush2.xpose.msra.mxu0 0.0
    %209 = vmatprep.subr.mxu0 0.0
    %210 = vmatpush2.xpose.msra.mxu0 0.0
    %211 = vmatprep.subr.mxu0 0.0
    %212 = vmatpush2.xpose.msra.mxu0 0.0
    %213 = vmatprep.subr.mxu0 0.0
    %214 = vmatpush2.xpose.msra.mxu0 0.0
    %215 = vmatprep.subr.mxu0 0.0
    %216 = vmatpush2.xpose.msra.mxu0 0.0
    %217 = vmatprep.subr.mxu0 0.0
    %218 = vmatpush2.xpose.msra.mxu0 0.0
    %219 = vmatprep.subr.mxu0 0.0
    %220 = vmatpush2.xpose.msra.mxu0 0.0
    %221 = vmatprep.subr.mxu0 0.0
    %222 = vmatpush2.xpose.msra.mxu0 0.0
    %223 = vmatprep.subr.mxu0 0.0
    %224 = vmatpush2.xpose.msra.mxu0 0.0
    %225 = vmatprep.mubr.f32.mxu0 0.0
    %226 = vmatmul.mubr.f32.gmra.mxu0 %v157
    %v227 = vpop.f32.mrf.mxu0
    %v228 = vadd.f32 0.0, %v227
    %v229 = vpop.f32.mrf.mxu0
    %230 = vdwg.mxu0
    %v231 = vsel %vm156, %v228, -inf
    %232 = vmax.xlane.f32.xlu0 %v231
    %v233 = vpop.xlane.xlu0 %232
    %v234 = vsub.f32 %v228, %v233
    %v235 = vmul.f32 %v234, 1.442695
    %v236 = vpow.pop %v235
    %v237 = vsel %vm156, %v236, 0.0
    %238 = vadd.xlane.f32.xlu0 %v237
    %v239 = vpop.xlane.xlu0 %238
    %v240 = vrcp.pop %v239
    %v241 = vmul.f32 %v236, %v240
    %242 = vrot.lane.b32.xlu0 %v141, 64
    %v243 = vpop.permute.xlu0 %242
    %v246 = vsel %vm156, %v241, 0
    %248 = vmatprep.subr.mxu0 0.0
    %249 = vmatpush1.msra.mxu0 0.0
    %250 = vmatprep.subr.mxu0 0.0
    %251 = vmatpush1.msra.mxu0 0.0
    %252 = vmatprep.subr.mxu0 0.0
    %253 = vmatpush1.msra.mxu0 0.0
    %254 = vmatprep.subr.mxu0 0.0
    %255 = vmatpush1.msra.mxu0 0.0
    %256 = vmatprep.subr.mxu0 0.0
    %257 = vmatpush1.msra.mxu0 0.0
    %258 = vmatprep.subr.mxu0 0.0
    %259 = vmatpush1.msra.mxu0 0.0
    %260 = vmatprep.subr.mxu0 0.0
    %261 = vmatpush1.msra.mxu0 0.0
    %262 = vmatprep.subr.mxu0 0.0
    %263 = vmatpush1.msra.mxu0 0.0
    %264 = vmatprep.subr.mxu0 0.0
    %265 = vmatpush1.msra.mxu0 0.0
    %266 = vmatprep.subr.mxu0 0.0
    %267 = vmatpush1.msra.mxu0 0.0
    %268 = vmatprep.subr.mxu0 0.0
    %269 = vmatpush1.msra.mxu0 0.0
    %270 = vmatprep.subr.mxu0 0.0
    %271 = vmatpush1.msra.mxu0 0.0
    %272 = vmatprep.subr.mxu0 0.0
    %273 = vmatpush1.msra.mxu0 0.0
    %274 = vmatprep.subr.mxu0 0.0
    %275 = vmatpush1.msra.mxu0 0.0
    %276 = vmatprep.subr.mxu0 0.0
    %277 = vmatpush1.msra.mxu0 0.0
    %278 = vmatprep.subr.mxu0 0.0
    %279 = vmatpush1.msra.mxu0 %v243
    %280 = vmatprep.subr.mxu0 0.0
    %281 = vmatpush2.msra.mxu0 0.0
    %282 = vmatprep.subr.mxu0 0.0
    %283 = vmatpush2.msra.mxu0 0.0
    %284 = vmatprep.subr.mxu0 0.0
    %285 = vmatpush2.msra.mxu0 0.0
    %286 = vmatprep.subr.mxu0 0.0
    %287 = vmatpush2.msra.mxu0 0.0
    %288 = vmatprep.subr.mxu0 0.0
    %289 = vmatpush2.msra.mxu0 0.0
    %290 = vmatprep.subr.mxu0 0.0
    %291 = vmatpush2.msra.mxu0 0.0
    %292 = vmatprep.subr.mxu0 0.0
    %293 = vmatpush2.msra.mxu0 0.0
    %294 = vmatprep.subr.mxu0 0.0
    %295 = vmatpush2.msra.mxu0 0.0
    %296 = vmatprep.subr.mxu0 0.0
    %297 = vmatpush2.msra.mxu0 0.0
    %298 = vmatprep.subr.mxu0 0.0
    %299 = vmatpush2.msra.mxu0 0.0
    %300 = vmatprep.subr.mxu0 0.0
    %301 = vmatpush2.msra.mxu0 0.0
    %302 = vmatprep.subr.mxu0 0.0
    %303 = vmatpush2.msra.mxu0 0.0
    %304 = vmatprep.subr.mxu0 0.0
    %305 = vmatpush2.msra.mxu0 0.0
    %306 = vmatprep.subr.mxu0 0.0
    %307 = vmatpush2.msra.mxu0 0.0
    %308 = vmatprep.subr.mxu0 0.0
    %309 = vmatpush2.msra.mxu0 0.0
    %310 = vmatprep.subr.mxu0 0.0
    %311 = vmatpush2.msra.mxu0 0.0
    %312 = vmatprep.mubr.f32.mxu0 0.0
    %313 = vmatmul.mubr.f32.gmra.mxu0 %v246
    %v314 = vpop.f32.mrf.mxu0
    %v315 = vadd.f32 0.0, %v314
    %v316 = vpop.f32.mrf.mxu0
    %317 = vdwg.mxu0
    %318 = vrot.lane.b32.xlu0 %v141, 120
    %v319 = vpop.permute.xlu0 %318
    %320 = vrot.lane.b32.xlu0 %v141, 88
    %v321 = vpop.permute.xlu0 %320
    %v322 = vsel %vm156, %v319, 0
    %v324 = vsel %vm156, %v321, 0
    %326 = vmatprep.subr.mxu0 0.0
    %327 = vmatpush1.xpose.msra.mxu0 0.0
    %328 = vmatprep.subr.mxu0 0.0
    %329 = vmatpush1.xpose.msra.mxu0 0.0
    %330 = vmatprep.subr.mxu0 0.0
    %331 = vmatpush1.xpose.msra.mxu0 0.0
    %332 = vmatprep.subr.mxu0 0.0
    %333 = vmatpush1.xpose.msra.mxu0 0.0
    %334 = vmatprep.subr.mxu0 0.0
    %335 = vmatpush1.xpose.msra.mxu0 0.0
    %336 = vmatprep.subr.mxu0 0.0
    %337 = vmatpush1.xpose.msra.mxu0 0.0
    %338 = vmatprep.subr.mxu0 0.0
    %339 = vmatpush1.xpose.msra.mxu0 0.0
    %340 = vmatprep.subr.mxu0 0.0
    %341 = vmatpush1.xpose.msra.mxu0 0.0
    %342 = vmatprep.subr.mxu0 0.0
    %343 = vmatpush1.xpose.msra.mxu0 0.0
    %344 = vmatprep.subr.mxu0 0.0
    %345 = vmatpush1.xpose.msra.mxu0 0.0
    %346 = vmatprep.subr.mxu0 0.0
    %347 = vmatpush1.xpose.msra.mxu0 0.0
    %348 = vmatprep.subr.mxu0 0.0
    %349 = vmatpush1.xpose.msra.mxu0 0.0
    %350 = vmatprep.subr.mxu0 0.0
    %351 = vmatpush1.xpose.msra.mxu0 0.0
    %352 = vmatprep.subr.mxu0 0.0
    %353 = vmatpush1.xpose.msra.mxu0 0.0
    %354 = vmatprep.subr.mxu0 0.0
    %355 = vmatpush1.xpose.msra.mxu0 0.0
    %356 = vmatprep.subr.mxu0 0.0
    %357 = vmatpush1.xpose.msra.mxu0 %v324
    %358 = vmatprep.subr.mxu0 0.0
    %359 = vmatpush2.xpose.msra.mxu0 0.0
    %360 = vmatprep.subr.mxu0 0.0
    %361 = vmatpush2.xpose.msra.mxu0 0.0
    %362 = vmatprep.subr.mxu0 0.0
    %363 = vmatpush2.xpose.msra.mxu0 0.0
    %364 = vmatprep.subr.mxu0 0.0
    %365 = vmatpush2.xpose.msra.mxu0 0.0
    %366 = vmatprep.subr.mxu0 0.0
    %367 = vmatpush2.xpose.msra.mxu0 0.0
    %368 = vmatprep.subr.mxu0 0.0
    %369 = vmatpush2.xpose.msra.mxu0 0.0
    %370 = vmatprep.subr.mxu0 0.0
    %371 = vmatpush2.xpose.msra.mxu0 0.0
    %372 = vmatprep.subr.mxu0 0.0
    %373 = vmatpush2.xpose.msra.mxu0 0.0
    %374 = vmatprep.subr.mxu0 0.0
    %375 = vmatpush2.xpose.msra.mxu0 0.0
    %376 = vmatprep.subr.mxu0 0.0
    %377 = vmatpush2.xpose.msra.mxu0 0.0
    %378 = vmatprep.subr.mxu0 0.0
    %379 = vmatpush2.xpose.msra.mxu0 0.0
    %380 = vmatprep.subr.mxu0 0.0
    %381 = vmatpush2.xpose.msra.mxu0 0.0
    %382 = vmatprep.subr.mxu0 0.0
    %383 = vmatpush2.xpose.msra.mxu0 0.0
    %384 = vmatprep.subr.mxu0 0.0
    %385 = vmatpush2.xpose.msra.mxu0 0.0
    %386 = vmatprep.subr.mxu0 0.0
    %387 = vmatpush2.xpose.msra.mxu0 0.0
    %388 = vmatprep.subr.mxu0 0.0
    %389 = vmatpush2.xpose.msra.mxu0 0.0
    %390 = vmatprep.mubr.f32.mxu0 0.0
    %391 = vmatmul.mubr.f32.gmra.mxu0 %v322
    %v392 = vpop.f32.mrf.mxu0
    %v393 = vadd.f32 0.0, %v392
    %v394 = vpop.f32.mrf.mxu0
    %395 = vdwg.mxu0
    %v396 = vsel %vm156, %v393, -inf
    %397 = vmax.xlane.f32.xlu0 %v396
    %v398 = vpop.xlane.xlu0 %397
    %v399 = vsub.f32 %v393, %v398
    %v400 = vmul.f32 %v399, 1.442695
    %v401 = vpow.pop %v400
    %v402 = vsel %vm156, %v401, 0.0
    %403 = vadd.xlane.f32.xlu0 %v402
    %v404 = vpop.xlane.xlu0 %403
    %v405 = vrcp.pop %v404
    %v406 = vmul.f32 %v401, %v405
    %407 = vrot.lane.b32.xlu0 %v141, 56
    %v408 = vpop.permute.xlu0 %407
    %v411 = vsel %vm156, %v406, 0
    %413 = vmatprep.subr.mxu0 0.0
    %414 = vmatpush1.msra.mxu0 0.0
    %415 = vmatprep.subr.mxu0 0.0
    %416 = vmatpush1.msra.mxu0 0.0
    %417 = vmatprep.subr.mxu0 0.0
    %418 = vmatpush1.msra.mxu0 0.0
    %419 = vmatprep.subr.mxu0 0.0
    %420 = vmatpush1.msra.mxu0 0.0
    %421 = vmatprep.subr.mxu0 0.0
    %422 = vmatpush1.msra.mxu0 0.0
    %423 = vmatprep.subr.mxu0 0.0
    %424 = vmatpush1.msra.mxu0 0.0
    %425 = vmatprep.subr.mxu0 0.0
    %426 = vmatpush1.msra.mxu0 0.0
    %427 = vmatprep.subr.mxu0 0.0
    %428 = vmatpush1.msra.mxu0 0.0
    %429 = vmatprep.subr.mxu0 0.0
    %430 = vmatpush1.msra.mxu0 0.0
    %431 = vmatprep.subr.mxu0 0.0
    %432 = vmatpush1.msra.mxu0 0.0
    %433 = vmatprep.subr.mxu0 0.0
    %434 = vmatpush1.msra.mxu0 0.0
    %435 = vmatprep.subr.mxu0 0.0
    %436 = vmatpush1.msra.mxu0 0.0
    %437 = vmatprep.subr.mxu0 0.0
    %438 = vmatpush1.msra.mxu0 0.0
    %439 = vmatprep.subr.mxu0 0.0
    %440 = vmatpush1.msra.mxu0 0.0
    %441 = vmatprep.subr.mxu0 0.0
    %442 = vmatpush1.msra.mxu0 0.0
    %443 = vmatprep.subr.mxu0 0.0
    %444 = vmatpush1.msra.mxu0 %v408
    %445 = vmatprep.subr.mxu0 0.0
    %446 = vmatpush2.msra.mxu0 0.0
    %447 = vmatprep.subr.mxu0 0.0
    %448 = vmatpush2.msra.mxu0 0.0
    %449 = vmatprep.subr.mxu0 0.0
    %450 = vmatpush2.msra.mxu0 0.0
    %451 = vmatprep.subr.mxu0 0.0
    %452 = vmatpush2.msra.mxu0 0.0
    %453 = vmatprep.subr.mxu0 0.0
    %454 = vmatpush2.msra.mxu0 0.0
    %455 = vmatprep.subr.mxu0 0.0
    %456 = vmatpush2.msra.mxu0 0.0
    %457 = vmatprep.subr.mxu0 0.0
    %458 = vmatpush2.msra.mxu0 0.0
    %459 = vmatprep.subr.mxu0 0.0
    %460 = vmatpush2.msra.mxu0 0.0
    %461 = vmatprep.subr.mxu0 0.0
    %462 = vmatpush2.msra.mxu0 0.0
    %463 = vmatprep.subr.mxu0 0.0
    %464 = vmatpush2.msra.mxu0 0.0
    %465 = vmatprep.subr.mxu0 0.0
    %466 = vmatpush2.msra.mxu0 0.0
    %467 = vmatprep.subr.mxu0 0.0
    %468 = vmatpush2.msra.mxu0 0.0
    %469 = vmatprep.subr.mxu0 0.0
    %470 = vmatpush2.msra.mxu0 0.0
    %471 = vmatprep.subr.mxu0 0.0
    %472 = vmatpush2.msra.mxu0 0.0
    %473 = vmatprep.subr.mxu0 0.0
    %474 = vmatpush2.msra.mxu0 0.0
    %475 = vmatprep.subr.mxu0 0.0
    %476 = vmatpush2.msra.mxu0 0.0
    %477 = vmatprep.mubr.f32.mxu0 0.0
    %478 = vmatmul.mubr.f32.gmra.mxu0 %v411
    %v479 = vpop.f32.mrf.mxu0
    %v480 = vadd.f32 0.0, %v479
    %v481 = vpop.f32.mrf.mxu0
    %482 = vdwg.mxu0
    %v484 = vsel %vm156, %v480, 0
    %486 = vmatprep.subr.mxu0 0.0
    %487 = vmatpush1.msra.mxu0 0.0
    %488 = vmatprep.subr.mxu0 0.0
    %489 = vmatpush1.msra.mxu0 0.0
    %490 = vmatprep.subr.mxu0 0.0
    %491 = vmatpush1.msra.mxu0 0.0
    %492 = vmatprep.subr.mxu0 0.0
    %493 = vmatpush1.msra.mxu0 0.0
    %494 = vmatprep.subr.mxu0 0.0
    %495 = vmatpush1.msra.mxu0 0.0
    %496 = vmatprep.subr.mxu0 0.0
    %497 = vmatpush1.msra.mxu0 0.0
    %498 = vmatprep.subr.mxu0 0.0
    %499 = vmatpush1.msra.mxu0 0.0
    %500 = vmatprep.subr.mxu0 0.0
    %501 = vmatpush1.msra.mxu0 0.0
    %502 = vmatprep.subr.mxu0 0.0
    %503 = vmatpush1.msra.mxu0 0.0
    %504 = vmatprep.subr.mxu0 0.0
    %505 = vmatpush1.msra.mxu0 0.0
    %506 = vmatprep.subr.mxu0 0.0
    %507 = vmatpush1.msra.mxu0 0.0
    %508 = vmatprep.subr.mxu0 0.0
    %509 = vmatpush1.msra.mxu0 0.0
    %510 = vmatprep.subr.mxu0 0.0
    %511 = vmatpush1.msra.mxu0 0.0
    %512 = vmatprep.subr.mxu0 0.0
    %513 = vmatpush1.msra.mxu0 0.0
    %514 = vmatprep.subr.mxu0 0.0
    %515 = vmatpush1.msra.mxu0 0.0
    %516 = vmatprep.subr.mxu0 0.0
    %517 = vmatpush1.msra.mxu0 %v150
    %518 = vmatprep.subr.mxu0 0.0
    %519 = vmatpush2.msra.mxu0 0.0
    %520 = vmatprep.subr.mxu0 0.0
    %521 = vmatpush2.msra.mxu0 0.0
    %522 = vmatprep.subr.mxu0 0.0
    %523 = vmatpush2.msra.mxu0 0.0
    %524 = vmatprep.subr.mxu0 0.0
    %525 = vmatpush2.msra.mxu0 0.0
    %526 = vmatprep.subr.mxu0 0.0
    %527 = vmatpush2.msra.mxu0 0.0
    %528 = vmatprep.subr.mxu0 0.0
    %529 = vmatpush2.msra.mxu0 0.0
    %530 = vmatprep.subr.mxu0 0.0
    %531 = vmatpush2.msra.mxu0 0.0
    %532 = vmatprep.subr.mxu0 0.0
    %533 = vmatpush2.msra.mxu0 0.0
    %534 = vmatprep.subr.mxu0 0.0
    %535 = vmatpush2.msra.mxu0 0.0
    %536 = vmatprep.subr.mxu0 0.0
    %537 = vmatpush2.msra.mxu0 0.0
    %538 = vmatprep.subr.mxu0 0.0
    %539 = vmatpush2.msra.mxu0 0.0
    %540 = vmatprep.subr.mxu0 0.0
    %541 = vmatpush2.msra.mxu0 0.0
    %542 = vmatprep.subr.mxu0 0.0
    %543 = vmatpush2.msra.mxu0 0.0
    %544 = vmatprep.subr.mxu0 0.0
    %545 = vmatpush2.msra.mxu0 0.0
    %546 = vmatprep.subr.mxu0 0.0
    %547 = vmatpush2.msra.mxu0 0.0
    %548 = vmatprep.subr.mxu0 0.0
    %549 = vmatpush2.msra.mxu0 0.0
    %550 = vmatprep.mubr.f32.mxu0 0.0
    %551 = vmatmul.mubr.f32.gmra.mxu0 %v484
    %v552 = vpop.f32.mrf.mxu0
    %v553 = vadd.f32 0.0, %v552
    %v554 = vpop.f32.mrf.mxu0
    %555 = vdwg.mxu0
    %v557 = vsel %vm156, %v315, 0
    %559 = vmatprep.subr.mxu0 0.0
    %560 = vmatpush1.msra.mxu0 0.0
    %561 = vmatprep.subr.mxu0 0.0
    %562 = vmatpush1.msra.mxu0 0.0
    %563 = vmatprep.subr.mxu0 0.0
    %564 = vmatpush1.msra.mxu0 0.0
    %565 = vmatprep.subr.mxu0 0.0
    %566 = vmatpush1.msra.mxu0 0.0
    %567 = vmatprep.subr.mxu0 0.0
    %568 = vmatpush1.msra.mxu0 0.0
    %569 = vmatprep.subr.mxu0 0.0
    %570 = vmatpush1.msra.mxu0 0.0
    %571 = vmatprep.subr.mxu0 0.0
    %572 = vmatpush1.msra.mxu0 0.0
    %573 = vmatprep.subr.mxu0 0.0
    %574 = vmatpush1.msra.mxu0 0.0
    %575 = vmatprep.subr.mxu0 0.0
    %576 = vmatpush1.msra.mxu0 0.0
    %577 = vmatprep.subr.mxu0 0.0
    %578 = vmatpush1.msra.mxu0 0.0
    %579 = vmatprep.subr.mxu0 0.0
    %580 = vmatpush1.msra.mxu0 0.0
    %581 = vmatprep.subr.mxu0 0.0
    %582 = vmatpush1.msra.mxu0 0.0
    %583 = vmatprep.subr.mxu0 0.0
    %584 = vmatpush1.msra.mxu0 0.0
    %585 = vmatprep.subr.mxu0 0.0
    %586 = vmatpush1.msra.mxu0 0.0
    %587 = vmatprep.subr.mxu0 0.0
    %588 = vmatpush1.msra.mxu0 0.0
    %589 = vmatprep.subr.mxu0 0.0
    %590 = vmatpush1.msra.mxu0 %v149
    %591 = vmatprep.subr.mxu0 0.0
    %592 = vmatpush2.msra.mxu0 0.0
    %593 = vmatprep.subr.mxu0 0.0
    %594 = vmatpush2.msra.mxu0 0.0
    %595 = vmatprep.subr.mxu0 0.0
    %596 = vmatpush2.msra.mxu0 0.0
    %597 = vmatprep.subr.mxu0 0.0
    %598 = vmatpush2.msra.mxu0 0.0
    %599 = vmatprep.subr.mxu0 0.0
    %600 = vmatpush2.msra.mxu0 0.0
    %601 = vmatprep.subr.mxu0 0.0
    %602 = vmatpush2.msra.mxu0 0.0
    %603 = vmatprep.subr.mxu0 0.0
    %604 = vmatpush2.msra.mxu0 0.0
    %605 = vmatprep.subr.mxu0 0.0
    %606 = vmatpush2.msra.mxu0 0.0
    %607 = vmatprep.subr.mxu0 0.0
    %608 = vmatpush2.msra.mxu0 0.0
    %609 = vmatprep.subr.mxu0 0.0
    %610 = vmatpush2.msra.mxu0 0.0
    %611 = vmatprep.subr.mxu0 0.0
    %612 = vmatpush2.msra.mxu0 0.0
    %613 = vmatprep.subr.mxu0 0.0
    %614 = vmatpush2.msra.mxu0 0.0
    %615 = vmatprep.subr.mxu0 0.0
    %616 = vmatpush2.msra.mxu0 0.0
    %617 = vmatprep.subr.mxu0 0.0
    %618 = vmatpush2.msra.mxu0 0.0
    %619 = vmatprep.subr.mxu0 0.0
    %620 = vmatpush2.msra.mxu0 0.0
    %621 = vmatprep.subr.mxu0 0.0
    %622 = vmatpush2.msra.mxu0 0.0
    %623 = vmatprep.mubr.f32.mxu0 0.0
    %624 = vmatmul.mubr.f32.gmra.mxu0 %v557
    %v625 = vpop.f32.mrf.mxu0
    %v626 = vadd.f32 %v553, %v625
    %v627 = vpop.f32.mrf.mxu0
    %628 = vdwg.mxu0
    %629 = vrot.lane.b32.xlu0 %v141, 112
    %v630 = vpop.permute.xlu0 %629
    %631 = vrot.lane.b32.xlu0 %v141, 80
    %v632 = vpop.permute.xlu0 %631
    %v633 = vsel %vm156, %v630, 0
    %v635 = vsel %vm156, %v632, 0
    %637 = vmatprep.subr.mxu0 0.0
    %638 = vmatpush1.xpose.msra.mxu0 0.0
    %639 = vmatprep.subr.mxu0 0.0
    %640 = vmatpush1.xpose.msra.mxu0 0.0
    %641 = vmatprep.subr.mxu0 0.0
    %642 = vmatpush1.xpose.msra.mxu0 0.0
    %643 = vmatprep.subr.mxu0 0.0
    %644 = vmatpush1.xpose.msra.mxu0 0.0
    %645 = vmatprep.subr.mxu0 0.0
    %646 = vmatpush1.xpose.msra.mxu0 0.0
    %647 = vmatprep.subr.mxu0 0.0
    %648 = vmatpush1.xpose.msra.mxu0 0.0
    %649 = vmatprep.subr.mxu0 0.0
    %650 = vmatpush1.xpose.msra.mxu0 0.0
    %651 = vmatprep.subr.mxu0 0.0
    %652 = vmatpush1.xpose.msra.mxu0 0.0
    %653 = vmatprep.subr.mxu0 0.0
    %654 = vmatpush1.xpose.msra.mxu0 0.0
    %655 = vmatprep.subr.mxu0 0.0
    %656 = vmatpush1.xpose.msra.mxu0 0.0
    %657 = vmatprep.subr.mxu0 0.0
    %658 = vmatpush1.xpose.msra.mxu0 0.0
    %659 = vmatprep.subr.mxu0 0.0
    %660 = vmatpush1.xpose.msra.mxu0 0.0
    %661 = vmatprep.subr.mxu0 0.0
    %662 = vmatpush1.xpose.msra.mxu0 0.0
    %663 = vmatprep.subr.mxu0 0.0
    %664 = vmatpush1.xpose.msra.mxu0 0.0
    %665 = vmatprep.subr.mxu0 0.0
    %666 = vmatpush1.xpose.msra.mxu0 0.0
    %667 = vmatprep.subr.mxu0 0.0
    %668 = vmatpush1.xpose.msra.mxu0 %v635
    %669 = vmatprep.subr.mxu0 0.0
    %670 = vmatpush2.xpose.msra.mxu0 0.0
    %671 = vmatprep.subr.mxu0 0.0
    %672 = vmatpush2.xpose.msra.mxu0 0.0
    %673 = vmatprep.subr.mxu0 0.0
    %674 = vmatpush2.xpose.msra.mxu0 0.0
    %675 = vmatprep.subr.mxu0 0.0
    %676 = vmatpush2.xpose.msra.mxu0 0.0
    %677 = vmatprep.subr.mxu0 0.0
    %678 = vmatpush2.xpose.msra.mxu0 0.0
    %679 = vmatprep.subr.mxu0 0.0
    %680 = vmatpush2.xpose.msra.mxu0 0.0
    %681 = vmatprep.subr.mxu0 0.0
    %682 = vmatpush2.xpose.msra.mxu0 0.0
    %683 = vmatprep.subr.mxu0 0.0
    %684 = vmatpush2.xpose.msra.mxu0 0.0
    %685 = vmatprep.subr.mxu0 0.0
    %686 = vmatpush2.xpose.msra.mxu0 0.0
    %687 = vmatprep.subr.mxu0 0.0
    %688 = vmatpush2.xpose.msra.mxu0 0.0
    %689 = vmatprep.subr.mxu0 0.0
    %690 = vmatpush2.xpose.msra.mxu0 0.0
    %691 = vmatprep.subr.mxu0 0.0
    %692 = vmatpush2.xpose.msra.mxu0 0.0
    %693 = vmatprep.subr.mxu0 0.0
    %694 = vmatpush2.xpose.msra.mxu0 0.0
    %695 = vmatprep.subr.mxu0 0.0
    %696 = vmatpush2.xpose.msra.mxu0 0.0
    %697 = vmatprep.subr.mxu0 0.0
    %698 = vmatpush2.xpose.msra.mxu0 0.0
    %699 = vmatprep.subr.mxu0 0.0
    %700 = vmatpush2.xpose.msra.mxu0 0.0
    %701 = vmatprep.mubr.f32.mxu0 0.0
    %702 = vmatmul.mubr.f32.gmra.mxu0 %v633
    %v703 = vpop.f32.mrf.mxu0
    %v704 = vadd.f32 0.0, %v703
    %v705 = vpop.f32.mrf.mxu0
    %706 = vdwg.mxu0
    %v707 = vsel %vm156, %v704, -inf
    %708 = vmax.xlane.f32.xlu0 %v707
    %v709 = vpop.xlane.xlu0 %708
    %v710 = vsub.f32 %v704, %v709
    %v711 = vmul.f32 %v710, 1.442695
    %v712 = vpow.pop %v711
    %v713 = vsel %vm156, %v712, 0.0
    %714 = vadd.xlane.f32.xlu0 %v713
    %v715 = vpop.xlane.xlu0 %714
    %v716 = vrcp.pop %v715
    %v717 = vmul.f32 %v712, %v716
    %718 = vrot.lane.b32.xlu0 %v141, 48
    %v719 = vpop.permute.xlu0 %718
    %v722 = vsel %vm156, %v717, 0
    %724 = vmatprep.subr.mxu0 0.0
    %725 = vmatpush1.msra.mxu0 0.0
    %726 = vmatprep.subr.mxu0 0.0
    %727 = vmatpush1.msra.mxu0 0.0
    %728 = vmatprep.subr.mxu0 0.0
    %729 = vmatpush1.msra.mxu0 0.0
    %730 = vmatprep.subr.mxu0 0.0
    %731 = vmatpush1.msra.mxu0 0.0
    %732 = vmatprep.subr.mxu0 0.0
    %733 = vmatpush1.msra.mxu0 0.0
    %734 = vmatprep.subr.mxu0 0.0
    %735 = vmatpush1.msra.mxu0 0.0
    %736 = vmatprep.subr.mxu0 0.0
    %737 = vmatpush1.msra.mxu0 0.0
    %738 = vmatprep.subr.mxu0 0.0
    %739 = vmatpush1.msra.mxu0 0.0
    %740 = vmatprep.subr.mxu0 0.0
    %741 = vmatpush1.msra.mxu0 0.0
    %742 = vmatprep.subr.mxu0 0.0
    %743 = vmatpush1.msra.mxu0 0.0
    %744 = vmatprep.subr.mxu0 0.0
    %745 = vmatpush1.msra.mxu0 0.0
    %746 = vmatprep.subr.mxu0 0.0
    %747 = vmatpush1.msra.mxu0 0.0
    %748 = vmatprep.subr.mxu0 0.0
    %749 = vmatpush1.msra.mxu0 0.0
    %750 = vmatprep.subr.mxu0 0.0
    %751 = vmatpush1.msra.mxu0 0.0
    %752 = vmatprep.subr.mxu0 0.0
    %753 = vmatpush1.msra.mxu0 0.0
    %754 = vmatprep.subr.mxu0 0.0
    %755 = vmatpush1.msra.mxu0 %v719
    %756 = vmatprep.subr.mxu0 0.0
    %757 = vmatpush2.msra.mxu0 0.0
    %758 = vmatprep.subr.mxu0 0.0
    %759 = vmatpush2.msra.mxu0 0.0
    %760 = vmatprep.subr.mxu0 0.0
    %761 = vmatpush2.msra.mxu0 0.0
    %762 = vmatprep.subr.mxu0 0.0
    %763 = vmatpush2.msra.mxu0 0.0
    %764 = vmatprep.subr.mxu0 0.0
    %765 = vmatpush2.msra.mxu0 0.0
    %766 = vmatprep.subr.mxu0 0.0
    %767 = vmatpush2.msra.mxu0 0.0
    %768 = vmatprep.subr.mxu0 0.0
    %769 = vmatpush2.msra.mxu0 0.0
    %770 = vmatprep.subr.mxu0 0.0
    %771 = vmatpush2.msra.mxu0 0.0
    %772 = vmatprep.subr.mxu0 0.0
    %773 = vmatpush2.msra.mxu0 0.0
    %774 = vmatprep.subr.mxu0 0.0
    %775 = vmatpush2.msra.mxu0 0.0
    %776 = vmatprep.subr.mxu0 0.0
    %777 = vmatpush2.msra.mxu0 0.0
    %778 = vmatprep.subr.mxu0 0.0
    %779 = vmatpush2.msra.mxu0 0.0
    %780 = vmatprep.subr.mxu0 0.0
    %781 = vmatpush2.msra.mxu0 0.0
    %782 = vmatprep.subr.mxu0 0.0
    %783 = vmatpush2.msra.mxu0 0.0
    %784 = vmatprep.subr.mxu0 0.0
    %785 = vmatpush2.msra.mxu0 0.0
    %786 = vmatprep.subr.mxu0 0.0
    %787 = vmatpush2.msra.mxu0 0.0
    %788 = vmatprep.mubr.f32.mxu0 0.0
    %789 = vmatmul.mubr.f32.gmra.mxu0 %v722
    %v790 = vpop.f32.mrf.mxu0
    %v791 = vadd.f32 0.0, %v790
    %v792 = vpop.f32.mrf.mxu0
    %793 = vdwg.mxu0
    %v795 = vsel %vm156, %v791, 0
    %797 = vmatprep.subr.mxu0 0.0
    %798 = vmatpush1.msra.mxu0 0.0
    %799 = vmatprep.subr.mxu0 0.0
    %800 = vmatpush1.msra.mxu0 0.0
    %801 = vmatprep.subr.mxu0 0.0
    %802 = vmatpush1.msra.mxu0 0.0
    %803 = vmatprep.subr.mxu0 0.0
    %804 = vmatpush1.msra.mxu0 0.0
    %805 = vmatprep.subr.mxu0 0.0
    %806 = vmatpush1.msra.mxu0 0.0
    %807 = vmatprep.subr.mxu0 0.0
    %808 = vmatpush1.msra.mxu0 0.0
    %809 = vmatprep.subr.mxu0 0.0
    %810 = vmatpush1.msra.mxu0 0.0
    %811 = vmatprep.subr.mxu0 0.0
    %812 = vmatpush1.msra.mxu0 0.0
    %813 = vmatprep.subr.mxu0 0.0
    %814 = vmatpush1.msra.mxu0 0.0
    %815 = vmatprep.subr.mxu0 0.0
    %816 = vmatpush1.msra.mxu0 0.0
    %817 = vmatprep.subr.mxu0 0.0
    %818 = vmatpush1.msra.mxu0 0.0
    %819 = vmatprep.subr.mxu0 0.0
    %820 = vmatpush1.msra.mxu0 0.0
    %821 = vmatprep.subr.mxu0 0.0
    %822 = vmatpush1.msra.mxu0 0.0
    %823 = vmatprep.subr.mxu0 0.0
    %824 = vmatpush1.msra.mxu0 0.0
    %825 = vmatprep.subr.mxu0 0.0
    %826 = vmatpush1.msra.mxu0 0.0
    %827 = vmatprep.subr.mxu0 0.0
    %828 = vmatpush1.msra.mxu0 %v151
    %829 = vmatprep.subr.mxu0 0.0
    %830 = vmatpush2.msra.mxu0 0.0
    %831 = vmatprep.subr.mxu0 0.0
    %832 = vmatpush2.msra.mxu0 0.0
    %833 = vmatprep.subr.mxu0 0.0
    %834 = vmatpush2.msra.mxu0 0.0
    %835 = vmatprep.subr.mxu0 0.0
    %836 = vmatpush2.msra.mxu0 0.0
    %837 = vmatprep.subr.mxu0 0.0
    %838 = vmatpush2.msra.mxu0 0.0
    %839 = vmatprep.subr.mxu0 0.0
    %840 = vmatpush2.msra.mxu0 0.0
    %841 = vmatprep.subr.mxu0 0.0
    %842 = vmatpush2.msra.mxu0 0.0
    %843 = vmatprep.subr.mxu0 0.0
    %844 = vmatpush2.msra.mxu0 0.0
    %845 = vmatprep.subr.mxu0 0.0
    %846 = vmatpush2.msra.mxu0 0.0
    %847 = vmatprep.subr.mxu0 0.0
    %848 = vmatpush2.msra.mxu0 0.0
    %849 = vmatprep.subr.mxu0 0.0
    %850 = vmatpush2.msra.mxu0 0.0
    %851 = vmatprep.subr.mxu0 0.0
    %852 = vmatpush2.msra.mxu0 0.0
    %853 = vmatprep.subr.mxu0 0.0
    %854 = vmatpush2.msra.mxu0 0.0
    %855 = vmatprep.subr.mxu0 0.0
    %856 = vmatpush2.msra.mxu0 0.0
    %857 = vmatprep.subr.mxu0 0.0
    %858 = vmatpush2.msra.mxu0 0.0
    %859 = vmatprep.subr.mxu0 0.0
    %860 = vmatpush2.msra.mxu0 0.0
    %861 = vmatprep.mubr.f32.mxu0 0.0
    %862 = vmatmul.mubr.f32.gmra.mxu0 %v795
    %v863 = vpop.f32.mrf.mxu0
    %v864 = vadd.f32 0.0, %v863
    %v865 = vpop.f32.mrf.mxu0
    %866 = vdwg.mxu0
    %v867 = vadd.f32 %v626, %v864
    %868 = vrot.lane.b32.xlu0 %v141, 104
    %v869 = vpop.permute.xlu0 %868
    %870 = vrot.lane.b32.xlu0 %v141, 72
    %v871 = vpop.permute.xlu0 %870
    %v872 = vsel %vm156, %v869, 0
    %v874 = vsel %vm156, %v871, 0
    %876 = vmatprep.subr.mxu0 0.0
    %877 = vmatpush1.xpose.msra.mxu0 0.0
    %878 = vmatprep.subr.mxu0 0.0
    %879 = vmatpush1.xpose.msra.mxu0 0.0
    %880 = vmatprep.subr.mxu0 0.0
    %881 = vmatpush1.xpose.msra.mxu0 0.0
    %882 = vmatprep.subr.mxu0 0.0
    %883 = vmatpush1.xpose.msra.mxu0 0.0
    %884 = vmatprep.subr.mxu0 0.0
    %885 = vmatpush1.xpose.msra.mxu0 0.0
    %886 = vmatprep.subr.mxu0 0.0
    %887 = vmatpush1.xpose.msra.mxu0 0.0
    %888 = vmatprep.subr.mxu0 0.0
    %889 = vmatpush1.xpose.msra.mxu0 0.0
    %890 = vmatprep.subr.mxu0 0.0
    %891 = vmatpush1.xpose.msra.mxu0 0.0
    %892 = vmatprep.subr.mxu0 0.0
    %893 = vmatpush1.xpose.msra.mxu0 0.0
    %894 = vmatprep.subr.mxu0 0.0
    %895 = vmatpush1.xpose.msra.mxu0 0.0
    %896 = vmatprep.subr.mxu0 0.0
    %897 = vmatpush1.xpose.msra.mxu0 0.0
    %898 = vmatprep.subr.mxu0 0.0
    %899 = vmatpush1.xpose.msra.mxu0 0.0
    %900 = vmatprep.subr.mxu0 0.0
    %901 = vmatpush1.xpose.msra.mxu0 0.0
    %902 = vmatprep.subr.mxu0 0.0
    %903 = vmatpush1.xpose.msra.mxu0 0.0
    %904 = vmatprep.subr.mxu0 0.0
    %905 = vmatpush1.xpose.msra.mxu0 0.0
    %906 = vmatprep.subr.mxu0 0.0
    %907 = vmatpush1.xpose.msra.mxu0 %v874
    %908 = vmatprep.subr.mxu0 0.0
    %909 = vmatpush2.xpose.msra.mxu0 0.0
    %910 = vmatprep.subr.mxu0 0.0
    %911 = vmatpush2.xpose.msra.mxu0 0.0
    %912 = vmatprep.subr.mxu0 0.0
    %913 = vmatpush2.xpose.msra.mxu0 0.0
    %914 = vmatprep.subr.mxu0 0.0
    %915 = vmatpush2.xpose.msra.mxu0 0.0
    %916 = vmatprep.subr.mxu0 0.0
    %917 = vmatpush2.xpose.msra.mxu0 0.0
    %918 = vmatprep.subr.mxu0 0.0
    %919 = vmatpush2.xpose.msra.mxu0 0.0
    %920 = vmatprep.subr.mxu0 0.0
    %921 = vmatpush2.xpose.msra.mxu0 0.0
    %922 = vmatprep.subr.mxu0 0.0
    %923 = vmatpush2.xpose.msra.mxu0 0.0
    %924 = vmatprep.subr.mxu0 0.0
    %925 = vmatpush2.xpose.msra.mxu0 0.0
    %926 = vmatprep.subr.mxu0 0.0
    %927 = vmatpush2.xpose.msra.mxu0 0.0
    %928 = vmatprep.subr.mxu0 0.0
    %929 = vmatpush2.xpose.msra.mxu0 0.0
    %930 = vmatprep.subr.mxu0 0.0
    %931 = vmatpush2.xpose.msra.mxu0 0.0
    %932 = vmatprep.subr.mxu0 0.0
    %933 = vmatpush2.xpose.msra.mxu0 0.0
    %934 = vmatprep.subr.mxu0 0.0
    %935 = vmatpush2.xpose.msra.mxu0 0.0
    %936 = vmatprep.subr.mxu0 0.0
    %937 = vmatpush2.xpose.msra.mxu0 0.0
    %938 = vmatprep.subr.mxu0 0.0
    %939 = vmatpush2.xpose.msra.mxu0 0.0
    %940 = vmatprep.mubr.f32.mxu0 0.0
    %941 = vmatmul.mubr.f32.gmra.mxu0 %v872
    %v942 = vpop.f32.mrf.mxu0
    %v943 = vadd.f32 0.0, %v942
    %v944 = vpop.f32.mrf.mxu0
    %945 = vdwg.mxu0
    %v946 = vsel %vm156, %v943, -inf
    %947 = vmax.xlane.f32.xlu0 %v946
    %v948 = vpop.xlane.xlu0 %947
    %v949 = vsub.f32 %v943, %v948
    %v950 = vmul.f32 %v949, 1.442695
    %v951 = vpow.pop %v950
    %v952 = vsel %vm156, %v951, 0.0
    %953 = vadd.xlane.f32.xlu0 %v952
    %v954 = vpop.xlane.xlu0 %953
    %v955 = vrcp.pop %v954
    %v956 = vmul.f32 %v951, %v955
    %957 = vrot.lane.b32.xlu0 %v141, 40
    %v958 = vpop.permute.xlu0 %957
    %v961 = vsel %vm156, %v956, 0
    %963 = vmatprep.subr.mxu0 0.0
    %964 = vmatpush1.msra.mxu0 0.0
    %965 = vmatprep.subr.mxu0 0.0
    %966 = vmatpush1.msra.mxu0 0.0
    %967 = vmatprep.subr.mxu0 0.0
    %968 = vmatpush1.msra.mxu0 0.0
    %969 = vmatprep.subr.mxu0 0.0
    %970 = vmatpush1.msra.mxu0 0.0
    %971 = vmatprep.subr.mxu0 0.0
    %972 = vmatpush1.msra.mxu0 0.0
    %973 = vmatprep.subr.mxu0 0.0
    %974 = vmatpush1.msra.mxu0 0.0
    %975 = vmatprep.subr.mxu0 0.0
    %976 = vmatpush1.msra.mxu0 0.0
    %977 = vmatprep.subr.mxu0 0.0
    %978 = vmatpush1.msra.mxu0 0.0
    %979 = vmatprep.subr.mxu0 0.0
    %980 = vmatpush1.msra.mxu0 0.0
    %981 = vmatprep.subr.mxu0 0.0
    %982 = vmatpush1.msra.mxu0 0.0
    %983 = vmatprep.subr.mxu0 0.0
    %984 = vmatpush1.msra.mxu0 0.0
    %985 = vmatprep.subr.mxu0 0.0
    %986 = vmatpush1.msra.mxu0 0.0
    %987 = vmatprep.subr.mxu0 0.0
    %988 = vmatpush1.msra.mxu0 0.0
    %989 = vmatprep.subr.mxu0 0.0
    %990 = vmatpush1.msra.mxu0 0.0
    %991 = vmatprep.subr.mxu0 0.0
    %992 = vmatpush1.msra.mxu0 0.0
    %993 = vmatprep.subr.mxu0 0.0
    %994 = vmatpush1.msra.mxu0 %v958
    %995 = vmatprep.subr.mxu0 0.0
    %996 = vmatpush2.msra.mxu0 0.0
    %997 = vmatprep.subr.mxu0 0.0
    %998 = vmatpush2.msra.mxu0 0.0
    %999 = vmatprep.subr.mxu0 0.0
    %1000 = vmatpush2.msra.mxu0 0.0
    %1001 = vmatprep.subr.mxu0 0.0
    %1002 = vmatpush2.msra.mxu0 0.0
    %1003 = vmatprep.subr.mxu0 0.0
    %1004 = vmatpush2.msra.mxu0 0.0
    %1005 = vmatprep.subr.mxu0 0.0
    %1006 = vmatpush2.msra.mxu0 0.0
    %1007 = vmatprep.subr.mxu0 0.0
    %1008 = vmatpush2.msra.mxu0 0.0
    %1009 = vmatprep.subr.mxu0 0.0
    %1010 = vmatpush2.msra.mxu0 0.0
    %1011 = vmatprep.subr.mxu0 0.0
    %1012 = vmatpush2.msra.mxu0 0.0
    %1013 = vmatprep.subr.mxu0 0.0
    %1014 = vmatpush2.msra.mxu0 0.0
    %1015 = vmatprep.subr.mxu0 0.0
    %1016 = vmatpush2.msra.mxu0 0.0
    %1017 = vmatprep.subr.mxu0 0.0
    %1018 = vmatpush2.msra.mxu0 0.0
    %1019 = vmatprep.subr.mxu0 0.0
    %1020 = vmatpush2.msra.mxu0 0.0
    %1021 = vmatprep.subr.mxu0 0.0
    %1022 = vmatpush2.msra.mxu0 0.0
    %1023 = vmatprep.subr.mxu0 0.0
    %1024 = vmatpush2.msra.mxu0 0.0
    %1025 = vmatprep.subr.mxu0 0.0
    %1026 = vmatpush2.msra.mxu0 0.0
    %1027 = vmatprep.mubr.f32.mxu0 0.0
    %1028 = vmatmul.mubr.f32.gmra.mxu0 %v961
    %v1029 = vpop.f32.mrf.mxu0
    %v1030 = vadd.f32 0.0, %v1029
    %v1031 = vpop.f32.mrf.mxu0
    %1032 = vdwg.mxu0
    %v1034 = vsel %vm156, %v1030, 0
    %1036 = vmatprep.subr.mxu0 0.0
    %1037 = vmatpush1.msra.mxu0 0.0
    %1038 = vmatprep.subr.mxu0 0.0
    %1039 = vmatpush1.msra.mxu0 0.0
    %1040 = vmatprep.subr.mxu0 0.0
    %1041 = vmatpush1.msra.mxu0 0.0
    %1042 = vmatprep.subr.mxu0 0.0
    %1043 = vmatpush1.msra.mxu0 0.0
    %1044 = vmatprep.subr.mxu0 0.0
    %1045 = vmatpush1.msra.mxu0 0.0
    %1046 = vmatprep.subr.mxu0 0.0
    %1047 = vmatpush1.msra.mxu0 0.0
    %1048 = vmatprep.subr.mxu0 0.0
    %1049 = vmatpush1.msra.mxu0 0.0
    %1050 = vmatprep.subr.mxu0 0.0
    %1051 = vmatpush1.msra.mxu0 0.0
    %1052 = vmatprep.subr.mxu0 0.0
    %1053 = vmatpush1.msra.mxu0 0.0
    %1054 = vmatprep.subr.mxu0 0.0
    %1055 = vmatpush1.msra.mxu0 0.0
    %1056 = vmatprep.subr.mxu0 0.0
    %1057 = vmatpush1.msra.mxu0 0.0
    %1058 = vmatprep.subr.mxu0 0.0
    %1059 = vmatpush1.msra.mxu0 0.0
    %1060 = vmatprep.subr.mxu0 0.0
    %1061 = vmatpush1.msra.mxu0 0.0
    %1062 = vmatprep.subr.mxu0 0.0
    %1063 = vmatpush1.msra.mxu0 0.0
    %1064 = vmatprep.subr.mxu0 0.0
    %1065 = vmatpush1.msra.mxu0 0.0
    %1066 = vmatprep.subr.mxu0 0.0
    %1067 = vmatpush1.msra.mxu0 %v152
    %1068 = vmatprep.subr.mxu0 0.0
    %1069 = vmatpush2.msra.mxu0 0.0
    %1070 = vmatprep.subr.mxu0 0.0
    %1071 = vmatpush2.msra.mxu0 0.0
    %1072 = vmatprep.subr.mxu0 0.0
    %1073 = vmatpush2.msra.mxu0 0.0
    %1074 = vmatprep.subr.mxu0 0.0
    %1075 = vmatpush2.msra.mxu0 0.0
    %1076 = vmatprep.subr.mxu0 0.0
    %1077 = vmatpush2.msra.mxu0 0.0
    %1078 = vmatprep.subr.mxu0 0.0
    %1079 = vmatpush2.msra.mxu0 0.0
    %1080 = vmatprep.subr.mxu0 0.0
    %1081 = vmatpush2.msra.mxu0 0.0
    %1082 = vmatprep.subr.mxu0 0.0
    %1083 = vmatpush2.msra.mxu0 0.0
    %1084 = vmatprep.subr.mxu0 0.0
    %1085 = vmatpush2.msra.mxu0 0.0
    %1086 = vmatprep.subr.mxu0 0.0
    %1087 = vmatpush2.msra.mxu0 0.0
    %1088 = vmatprep.subr.mxu0 0.0
    %1089 = vmatpush2.msra.mxu0 0.0
    %1090 = vmatprep.subr.mxu0 0.0
    %1091 = vmatpush2.msra.mxu0 0.0
    %1092 = vmatprep.subr.mxu0 0.0
    %1093 = vmatpush2.msra.mxu0 0.0
    %1094 = vmatprep.subr.mxu0 0.0
    %1095 = vmatpush2.msra.mxu0 0.0
    %1096 = vmatprep.subr.mxu0 0.0
    %1097 = vmatpush2.msra.mxu0 0.0
    %1098 = vmatprep.subr.mxu0 0.0
    %1099 = vmatpush2.msra.mxu0 0.0
    %1100 = vmatprep.mubr.f32.mxu0 0.0
    %1101 = vmatmul.mubr.f32.gmra.mxu0 %v1034
    %v1102 = vpop.f32.mrf.mxu0
    %v1103 = vadd.f32 0.0, %v1102
    %v1104 = vpop.f32.mrf.mxu0
    %1105 = vdwg.mxu0
    %v1106 = vadd.f32 %v867, %v1103
    %1108 = vrot.lane.b32.xlu0 %v146, 96
    %v1109 = vpop.permute.xlu0 %1108
    %v1110 = vsel %vm156, %v146, 0
    %v1112 = vsel %vm156, %v1109, 0
    %1114 = vmatprep.subr.mxu0 0.0
    %1115 = vmatpush1.xpose.msra.mxu0 0.0
    %1116 = vmatprep.subr.mxu0 0.0
    %1117 = vmatpush1.xpose.msra.mxu0 0.0
    %1118 = vmatprep.subr.mxu0 0.0
    %1119 = vmatpush1.xpose.msra.mxu0 0.0
    %1120 = vmatprep.subr.mxu0 0.0
    %1121 = vmatpush1.xpose.msra.mxu0 0.0
    %1122 = vmatprep.subr.mxu0 0.0
    %1123 = vmatpush1.xpose.msra.mxu0 0.0
    %1124 = vmatprep.subr.mxu0 0.0
    %1125 = vmatpush1.xpose.msra.mxu0 0.0
    %1126 = vmatprep.subr.mxu0 0.0
    %1127 = vmatpush1.xpose.msra.mxu0 0.0
    %1128 = vmatprep.subr.mxu0 0.0
    %1129 = vmatpush1.xpose.msra.mxu0 0.0
    %1130 = vmatprep.subr.mxu0 0.0
    %1131 = vmatpush1.xpose.msra.mxu0 0.0
    %1132 = vmatprep.subr.mxu0 0.0
    %1133 = vmatpush1.xpose.msra.mxu0 0.0
    %1134 = vmatprep.subr.mxu0 0.0
    %1135 = vmatpush1.xpose.msra.mxu0 0.0
    %1136 = vmatprep.subr.mxu0 0.0
    %1137 = vmatpush1.xpose.msra.mxu0 0.0
    %1138 = vmatprep.subr.mxu0 0.0
    %1139 = vmatpush1.xpose.msra.mxu0 0.0
    %1140 = vmatprep.subr.mxu0 0.0
    %1141 = vmatpush1.xpose.msra.mxu0 0.0
    %1142 = vmatprep.subr.mxu0 0.0
    %1143 = vmatpush1.xpose.msra.mxu0 0.0
    %1144 = vmatprep.subr.mxu0 0.0
    %1145 = vmatpush1.xpose.msra.mxu0 %v1112
    %1146 = vmatprep.subr.mxu0 0.0
    %1147 = vmatpush2.xpose.msra.mxu0 0.0
    %1148 = vmatprep.subr.mxu0 0.0
    %1149 = vmatpush2.xpose.msra.mxu0 0.0
    %1150 = vmatprep.subr.mxu0 0.0
    %1151 = vmatpush2.xpose.msra.mxu0 0.0
    %1152 = vmatprep.subr.mxu0 0.0
    %1153 = vmatpush2.xpose.msra.mxu0 0.0
    %1154 = vmatprep.subr.mxu0 0.0
    %1155 = vmatpush2.xpose.msra.mxu0 0.0
    %1156 = vmatprep.subr.mxu0 0.0
    %1157 = vmatpush2.xpose.msra.mxu0 0.0
    %1158 = vmatprep.subr.mxu0 0.0
    %1159 = vmatpush2.xpose.msra.mxu0 0.0
    %1160 = vmatprep.subr.mxu0 0.0
    %1161 = vmatpush2.xpose.msra.mxu0 0.0
    %1162 = vmatprep.subr.mxu0 0.0
    %1163 = vmatpush2.xpose.msra.mxu0 0.0
    %1164 = vmatprep.subr.mxu0 0.0
    %1165 = vmatpush2.xpose.msra.mxu0 0.0
    %1166 = vmatprep.subr.mxu0 0.0
    %1167 = vmatpush2.xpose.msra.mxu0 0.0
    %1168 = vmatprep.subr.mxu0 0.0
    %1169 = vmatpush2.xpose.msra.mxu0 0.0
    %1170 = vmatprep.subr.mxu0 0.0
    %1171 = vmatpush2.xpose.msra.mxu0 0.0
    %1172 = vmatprep.subr.mxu0 0.0
    %1173 = vmatpush2.xpose.msra.mxu0 0.0
    %1174 = vmatprep.subr.mxu0 0.0
    %1175 = vmatpush2.xpose.msra.mxu0 0.0
    %1176 = vmatprep.subr.mxu0 0.0
    %1177 = vmatpush2.xpose.msra.mxu0 0.0
    %1178 = vmatprep.mubr.f32.mxu0 0.0
    %1179 = vmatmul.mubr.f32.gmra.mxu0 %v1110
    %v1180 = vpop.f32.mrf.mxu0
    %v1181 = vadd.f32 0.0, %v1180
    %v1182 = vpop.f32.mrf.mxu0
    %1183 = vdwg.mxu0
    %v1184 = vsel %vm156, %v1181, -inf
    %1185 = vmax.xlane.f32.xlu0 %v1184
    %v1186 = vpop.xlane.xlu0 %1185
    %v1187 = vsub.f32 %v1181, %v1186
    %v1188 = vmul.f32 %v1187, 1.442695
    %v1189 = vpow.pop %v1188
    %v1190 = vsel %vm156, %v1189, 0.0
    %1191 = vadd.xlane.f32.xlu0 %v1190
    %v1192 = vpop.xlane.xlu0 %1191
    %v1193 = vrcp.pop %v1192
    %v1194 = vmul.f32 %v1189, %v1193
    %1195 = vrot.lane.b32.xlu0 %v146, 64
    %v1196 = vpop.permute.xlu0 %1195
    %v1199 = vsel %vm156, %v1194, 0
    %1201 = vmatprep.subr.mxu0 0.0
    %1202 = vmatpush1.msra.mxu0 0.0
    %1203 = vmatprep.subr.mxu0 0.0
    %1204 = vmatpush1.msra.mxu0 0.0
    %1205 = vmatprep.subr.mxu0 0.0
    %1206 = vmatpush1.msra.mxu0 0.0
    %1207 = vmatprep.subr.mxu0 0.0
    %1208 = vmatpush1.msra.mxu0 0.0
    %1209 = vmatprep.subr.mxu0 0.0
    %1210 = vmatpush1.msra.mxu0 0.0
    %1211 = vmatprep.subr.mxu0 0.0
    %1212 = vmatpush1.msra.mxu0 0.0
    %1213 = vmatprep.subr.mxu0 0.0
    %1214 = vmatpush1.msra.mxu0 0.0
    %1215 = vmatprep.subr.mxu0 0.0
    %1216 = vmatpush1.msra.mxu0 0.0
    %1217 = vmatprep.subr.mxu0 0.0
    %1218 = vmatpush1.msra.mxu0 0.0
    %1219 = vmatprep.subr.mxu0 0.0
    %1220 = vmatpush1.msra.mxu0 0.0
    %1221 = vmatprep.subr.mxu0 0.0
    %1222 = vmatpush1.msra.mxu0 0.0
    %1223 = vmatprep.subr.mxu0 0.0
    %1224 = vmatpush1.msra.mxu0 0.0
    %1225 = vmatprep.subr.mxu0 0.0
    %1226 = vmatpush1.msra.mxu0 0.0
    %1227 = vmatprep.subr.mxu0 0.0
    %1228 = vmatpush1.msra.mxu0 0.0
    %1229 = vmatprep.subr.mxu0 0.0
    %1230 = vmatpush1.msra.mxu0 0.0
    %1231 = vmatprep.subr.mxu0 0.0
    %1232 = vmatpush1.msra.mxu0 %v1196
    %1233 = vmatprep.subr.mxu0 0.0
    %1234 = vmatpush2.msra.mxu0 0.0
    %1235 = vmatprep.subr.mxu0 0.0
    %1236 = vmatpush2.msra.mxu0 0.0
    %1237 = vmatprep.subr.mxu0 0.0
    %1238 = vmatpush2.msra.mxu0 0.0
    %1239 = vmatprep.subr.mxu0 0.0
    %1240 = vmatpush2.msra.mxu0 0.0
    %1241 = vmatprep.subr.mxu0 0.0
    %1242 = vmatpush2.msra.mxu0 0.0
    %1243 = vmatprep.subr.mxu0 0.0
    %1244 = vmatpush2.msra.mxu0 0.0
    %1245 = vmatprep.subr.mxu0 0.0
    %1246 = vmatpush2.msra.mxu0 0.0
    %1247 = vmatprep.subr.mxu0 0.0
    %1248 = vmatpush2.msra.mxu0 0.0
    %1249 = vmatprep.subr.mxu0 0.0
    %1250 = vmatpush2.msra.mxu0 0.0
    %1251 = vmatprep.subr.mxu0 0.0
    %1252 = vmatpush2.msra.mxu0 0.0
    %1253 = vmatprep.subr.mxu0 0.0
    %1254 = vmatpush2.msra.mxu0 0.0
    %1255 = vmatprep.subr.mxu0 0.0
    %1256 = vmatpush2.msra.mxu0 0.0
    %1257 = vmatprep.subr.mxu0 0.0
    %1258 = vmatpush2.msra.mxu0 0.0
    %1259 = vmatprep.subr.mxu0 0.0
    %1260 = vmatpush2.msra.mxu0 0.0
    %1261 = vmatprep.subr.mxu0 0.0
    %1262 = vmatpush2.msra.mxu0 0.0
    %1263 = vmatprep.subr.mxu0 0.0
    %1264 = vmatpush2.msra.mxu0 0.0
    %1265 = vmatprep.mubr.f32.mxu0 0.0
    %1266 = vmatmul.mubr.f32.gmra.mxu0 %v1199
    %v1267 = vpop.f32.mrf.mxu0
    %v1268 = vadd.f32 0.0, %v1267
    %v1269 = vpop.f32.mrf.mxu0
    %1270 = vdwg.mxu0
    %1271 = vrot.lane.b32.xlu0 %v146, 120
    %v1272 = vpop.permute.xlu0 %1271
    %1273 = vrot.lane.b32.xlu0 %v146, 88
    %v1274 = vpop.permute.xlu0 %1273
    %v1275 = vsel %vm156, %v1272, 0
    %v1277 = vsel %vm156, %v1274, 0
    %1279 = vmatprep.subr.mxu0 0.0
    %1280 = vmatpush1.xpose.msra.mxu0 0.0
    %1281 = vmatprep.subr.mxu0 0.0
    %1282 = vmatpush1.xpose.msra.mxu0 0.0
    %1283 = vmatprep.subr.mxu0 0.0
    %1284 = vmatpush1.xpose.msra.mxu0 0.0
    %1285 = vmatprep.subr.mxu0 0.0
    %1286 = vmatpush1.xpose.msra.mxu0 0.0
    %1287 = vmatprep.subr.mxu0 0.0
    %1288 = vmatpush1.xpose.msra.mxu0 0.0
    %1289 = vmatprep.subr.mxu0 0.0
    %1290 = vmatpush1.xpose.msra.mxu0 0.0
    %1291 = vmatprep.subr.mxu0 0.0
    %1292 = vmatpush1.xpose.msra.mxu0 0.0
    %1293 = vmatprep.subr.mxu0 0.0
    %1294 = vmatpush1.xpose.msra.mxu0 0.0
    %1295 = vmatprep.subr.mxu0 0.0
    %1296 = vmatpush1.xpose.msra.mxu0 0.0
    %1297 = vmatprep.subr.mxu0 0.0
    %1298 = vmatpush1.xpose.msra.mxu0 0.0
    %1299 = vmatprep.subr.mxu0 0.0
    %1300 = vmatpush1.xpose.msra.mxu0 0.0
    %1301 = vmatprep.subr.mxu0 0.0
    %1302 = vmatpush1.xpose.msra.mxu0 0.0
    %1303 = vmatprep.subr.mxu0 0.0
    %1304 = vmatpush1.xpose.msra.mxu0 0.0
    %1305 = vmatprep.subr.mxu0 0.0
    %1306 = vmatpush1.xpose.msra.mxu0 0.0
    %1307 = vmatprep.subr.mxu0 0.0
    %1308 = vmatpush1.xpose.msra.mxu0 0.0
    %1309 = vmatprep.subr.mxu0 0.0
    %1310 = vmatpush1.xpose.msra.mxu0 %v1277
    %1311 = vmatprep.subr.mxu0 0.0
    %1312 = vmatpush2.xpose.msra.mxu0 0.0
    %1313 = vmatprep.subr.mxu0 0.0
    %1314 = vmatpush2.xpose.msra.mxu0 0.0
    %1315 = vmatprep.subr.mxu0 0.0
    %1316 = vmatpush2.xpose.msra.mxu0 0.0
    %1317 = vmatprep.subr.mxu0 0.0
    %1318 = vmatpush2.xpose.msra.mxu0 0.0
    %1319 = vmatprep.subr.mxu0 0.0
    %1320 = vmatpush2.xpose.msra.mxu0 0.0
    %1321 = vmatprep.subr.mxu0 0.0
    %1322 = vmatpush2.xpose.msra.mxu0 0.0
    %1323 = vmatprep.subr.mxu0 0.0
    %1324 = vmatpush2.xpose.msra.mxu0 0.0
    %1325 = vmatprep.subr.mxu0 0.0
    %1326 = vmatpush2.xpose.msra.mxu0 0.0
    %1327 = vmatprep.subr.mxu0 0.0
    %1328 = vmatpush2.xpose.msra.mxu0 0.0
    %1329 = vmatprep.subr.mxu0 0.0
    %1330 = vmatpush2.xpose.msra.mxu0 0.0
    %1331 = vmatprep.subr.mxu0 0.0
    %1332 = vmatpush2.xpose.msra.mxu0 0.0
    %1333 = vmatprep.subr.mxu0 0.0
    %1334 = vmatpush2.xpose.msra.mxu0 0.0
    %1335 = vmatprep.subr.mxu0 0.0
    %1336 = vmatpush2.xpose.msra.mxu0 0.0
    %1337 = vmatprep.subr.mxu0 0.0
    %1338 = vmatpush2.xpose.msra.mxu0 0.0
    %1339 = vmatprep.subr.mxu0 0.0
    %1340 = vmatpush2.xpose.msra.mxu0 0.0
    %1341 = vmatprep.subr.mxu0 0.0
    %1342 = vmatpush2.xpose.msra.mxu0 0.0
    %1343 = vmatprep.mubr.f32.mxu0 0.0
    %1344 = vmatmul.mubr.f32.gmra.mxu0 %v1275
    %v1345 = vpop.f32.mrf.mxu0
    %v1346 = vadd.f32 0.0, %v1345
    %v1347 = vpop.f32.mrf.mxu0
    %1348 = vdwg.mxu0
    %v1349 = vsel %vm156, %v1346, -inf
    %1350 = vmax.xlane.f32.xlu0 %v1349
    %v1351 = vpop.xlane.xlu0 %1350
    %v1352 = vsub.f32 %v1346, %v1351
    %v1353 = vmul.f32 %v1352, 1.442695
    %v1354 = vpow.pop %v1353
    %v1355 = vsel %vm156, %v1354, 0.0
    %1356 = vadd.xlane.f32.xlu0 %v1355
    %v1357 = vpop.xlane.xlu0 %1356
    %v1358 = vrcp.pop %v1357
    %v1359 = vmul.f32 %v1354, %v1358
    %1360 = vrot.lane.b32.xlu0 %v146, 56
    %v1361 = vpop.permute.xlu0 %1360
    %v1364 = vsel %vm156, %v1359, 0
    %1366 = vmatprep.subr.mxu0 0.0
    %1367 = vmatpush1.msra.mxu0 0.0
    %1368 = vmatprep.subr.mxu0 0.0
    %1369 = vmatpush1.msra.mxu0 0.0
    %1370 = vmatprep.subr.mxu0 0.0
    %1371 = vmatpush1.msra.mxu0 0.0
    %1372 = vmatprep.subr.mxu0 0.0
    %1373 = vmatpush1.msra.mxu0 0.0
    %1374 = vmatprep.subr.mxu0 0.0
    %1375 = vmatpush1.msra.mxu0 0.0
    %1376 = vmatprep.subr.mxu0 0.0
    %1377 = vmatpush1.msra.mxu0 0.0
    %1378 = vmatprep.subr.mxu0 0.0
    %1379 = vmatpush1.msra.mxu0 0.0
    %1380 = vmatprep.subr.mxu0 0.0
    %1381 = vmatpush1.msra.mxu0 0.0
    %1382 = vmatprep.subr.mxu0 0.0
    %1383 = vmatpush1.msra.mxu0 0.0
    %1384 = vmatprep.subr.mxu0 0.0
    %1385 = vmatpush1.msra.mxu0 0.0
    %1386 = vmatprep.subr.mxu0 0.0
    %1387 = vmatpush1.msra.mxu0 0.0
    %1388 = vmatprep.subr.mxu0 0.0
    %1389 = vmatpush1.msra.mxu0 0.0
    %1390 = vmatprep.subr.mxu0 0.0
    %1391 = vmatpush1.msra.mxu0 0.0
    %1392 = vmatprep.subr.mxu0 0.0
    %1393 = vmatpush1.msra.mxu0 0.0
    %1394 = vmatprep.subr.mxu0 0.0
    %1395 = vmatpush1.msra.mxu0 0.0
    %1396 = vmatprep.subr.mxu0 0.0
    %1397 = vmatpush1.msra.mxu0 %v1361
    %1398 = vmatprep.subr.mxu0 0.0
    %1399 = vmatpush2.msra.mxu0 0.0
    %1400 = vmatprep.subr.mxu0 0.0
    %1401 = vmatpush2.msra.mxu0 0.0
    %1402 = vmatprep.subr.mxu0 0.0
    %1403 = vmatpush2.msra.mxu0 0.0
    %1404 = vmatprep.subr.mxu0 0.0
    %1405 = vmatpush2.msra.mxu0 0.0
    %1406 = vmatprep.subr.mxu0 0.0
    %1407 = vmatpush2.msra.mxu0 0.0
    %1408 = vmatprep.subr.mxu0 0.0
    %1409 = vmatpush2.msra.mxu0 0.0
    %1410 = vmatprep.subr.mxu0 0.0
    %1411 = vmatpush2.msra.mxu0 0.0
    %1412 = vmatprep.subr.mxu0 0.0
    %1413 = vmatpush2.msra.mxu0 0.0
    %1414 = vmatprep.subr.mxu0 0.0
    %1415 = vmatpush2.msra.mxu0 0.0
    %1416 = vmatprep.subr.mxu0 0.0
    %1417 = vmatpush2.msra.mxu0 0.0
    %1418 = vmatprep.subr.mxu0 0.0
    %1419 = vmatpush2.msra.mxu0 0.0
    %1420 = vmatprep.subr.mxu0 0.0
    %1421 = vmatpush2.msra.mxu0 0.0
    %1422 = vmatprep.subr.mxu0 0.0
    %1423 = vmatpush2.msra.mxu0 0.0
    %1424 = vmatprep.subr.mxu0 0.0
    %1425 = vmatpush2.msra.mxu0 0.0
    %1426 = vmatprep.subr.mxu0 0.0
    %1427 = vmatpush2.msra.mxu0 0.0
    %1428 = vmatprep.subr.mxu0 0.0
    %1429 = vmatpush2.msra.mxu0 0.0
    %1430 = vmatprep.mubr.f32.mxu0 0.0
    %1431 = vmatmul.mubr.f32.gmra.mxu0 %v1364
    %v1432 = vpop.f32.mrf.mxu0
    %v1433 = vadd.f32 0.0, %v1432
    %v1434 = vpop.f32.mrf.mxu0
    %1435 = vdwg.mxu0
    %v1437 = vsel %vm156, %v1433, 0
    %1439 = vmatprep.subr.mxu0 0.0
    %1440 = vmatpush1.msra.mxu0 0.0
    %1441 = vmatprep.subr.mxu0 0.0
    %1442 = vmatpush1.msra.mxu0 0.0
    %1443 = vmatprep.subr.mxu0 0.0
    %1444 = vmatpush1.msra.mxu0 0.0
    %1445 = vmatprep.subr.mxu0 0.0
    %1446 = vmatpush1.msra.mxu0 0.0
    %1447 = vmatprep.subr.mxu0 0.0
    %1448 = vmatpush1.msra.mxu0 0.0
    %1449 = vmatprep.subr.mxu0 0.0
    %1450 = vmatpush1.msra.mxu0 0.0
    %1451 = vmatprep.subr.mxu0 0.0
    %1452 = vmatpush1.msra.mxu0 0.0
    %1453 = vmatprep.subr.mxu0 0.0
    %1454 = vmatpush1.msra.mxu0 0.0
    %1455 = vmatprep.subr.mxu0 0.0
    %1456 = vmatpush1.msra.mxu0 0.0
    %1457 = vmatprep.subr.mxu0 0.0
    %1458 = vmatpush1.msra.mxu0 0.0
    %1459 = vmatprep.subr.mxu0 0.0
    %1460 = vmatpush1.msra.mxu0 0.0
    %1461 = vmatprep.subr.mxu0 0.0
    %1462 = vmatpush1.msra.mxu0 0.0
    %1463 = vmatprep.subr.mxu0 0.0
    %1464 = vmatpush1.msra.mxu0 0.0
    %1465 = vmatprep.subr.mxu0 0.0
    %1466 = vmatpush1.msra.mxu0 0.0
    %1467 = vmatprep.subr.mxu0 0.0
    %1468 = vmatpush1.msra.mxu0 0.0
    %1469 = vmatprep.subr.mxu0 0.0
    %1470 = vmatpush1.msra.mxu0 %v150
    %1471 = vmatprep.subr.mxu0 0.0
    %1472 = vmatpush2.msra.mxu0 0.0
    %1473 = vmatprep.subr.mxu0 0.0
    %1474 = vmatpush2.msra.mxu0 0.0
    %1475 = vmatprep.subr.mxu0 0.0
    %1476 = vmatpush2.msra.mxu0 0.0
    %1477 = vmatprep.subr.mxu0 0.0
    %1478 = vmatpush2.msra.mxu0 0.0
    %1479 = vmatprep.subr.mxu0 0.0
    %1480 = vmatpush2.msra.mxu0 0.0
    %1481 = vmatprep.subr.mxu0 0.0
    %1482 = vmatpush2.msra.mxu0 0.0
    %1483 = vmatprep.subr.mxu0 0.0
    %1484 = vmatpush2.msra.mxu0 0.0
    %1485 = vmatprep.subr.mxu0 0.0
    %1486 = vmatpush2.msra.mxu0 0.0
    %1487 = vmatprep.subr.mxu0 0.0
    %1488 = vmatpush2.msra.mxu0 0.0
    %1489 = vmatprep.subr.mxu0 0.0
    %1490 = vmatpush2.msra.mxu0 0.0
    %1491 = vmatprep.subr.mxu0 0.0
    %1492 = vmatpush2.msra.mxu0 0.0
    %1493 = vmatprep.subr.mxu0 0.0
    %1494 = vmatpush2.msra.mxu0 0.0
    %1495 = vmatprep.subr.mxu0 0.0
    %1496 = vmatpush2.msra.mxu0 0.0
    %1497 = vmatprep.subr.mxu0 0.0
    %1498 = vmatpush2.msra.mxu0 0.0
    %1499 = vmatprep.subr.mxu0 0.0
    %1500 = vmatpush2.msra.mxu0 0.0
    %1501 = vmatprep.subr.mxu0 0.0
    %1502 = vmatpush2.msra.mxu0 0.0
    %1503 = vmatprep.mubr.f32.mxu0 0.0
    %1504 = vmatmul.mubr.f32.gmra.mxu0 %v1437
    %v1505 = vpop.f32.mrf.mxu0
    %v1506 = vadd.f32 0.0, %v1505
    %v1507 = vpop.f32.mrf.mxu0
    %1508 = vdwg.mxu0
    %v1510 = vsel %vm156, %v1268, 0
    %1512 = vmatprep.subr.mxu0 0.0
    %1513 = vmatpush1.msra.mxu0 0.0
    %1514 = vmatprep.subr.mxu0 0.0
    %1515 = vmatpush1.msra.mxu0 0.0
    %1516 = vmatprep.subr.mxu0 0.0
    %1517 = vmatpush1.msra.mxu0 0.0
    %1518 = vmatprep.subr.mxu0 0.0
    %1519 = vmatpush1.msra.mxu0 0.0
    %1520 = vmatprep.subr.mxu0 0.0
    %1521 = vmatpush1.msra.mxu0 0.0
    %1522 = vmatprep.subr.mxu0 0.0
    %1523 = vmatpush1.msra.mxu0 0.0
    %1524 = vmatprep.subr.mxu0 0.0
    %1525 = vmatpush1.msra.mxu0 0.0
    %1526 = vmatprep.subr.mxu0 0.0
    %1527 = vmatpush1.msra.mxu0 0.0
    %1528 = vmatprep.subr.mxu0 0.0
    %1529 = vmatpush1.msra.mxu0 0.0
    %1530 = vmatprep.subr.mxu0 0.0
    %1531 = vmatpush1.msra.mxu0 0.0
    %1532 = vmatprep.subr.mxu0 0.0
    %1533 = vmatpush1.msra.mxu0 0.0
    %1534 = vmatprep.subr.mxu0 0.0
    %1535 = vmatpush1.msra.mxu0 0.0
    %1536 = vmatprep.subr.mxu0 0.0
    %1537 = vmatpush1.msra.mxu0 0.0
    %1538 = vmatprep.subr.mxu0 0.0
    %1539 = vmatpush1.msra.mxu0 0.0
    %1540 = vmatprep.subr.mxu0 0.0
    %1541 = vmatpush1.msra.mxu0 0.0
    %1542 = vmatprep.subr.mxu0 0.0
    %1543 = vmatpush1.msra.mxu0 %v149
    %1544 = vmatprep.subr.mxu0 0.0
    %1545 = vmatpush2.msra.mxu0 0.0
    %1546 = vmatprep.subr.mxu0 0.0
    %1547 = vmatpush2.msra.mxu0 0.0
    %1548 = vmatprep.subr.mxu0 0.0
    %1549 = vmatpush2.msra.mxu0 0.0
    %1550 = vmatprep.subr.mxu0 0.0
    %1551 = vmatpush2.msra.mxu0 0.0
    %1552 = vmatprep.subr.mxu0 0.0
    %1553 = vmatpush2.msra.mxu0 0.0
    %1554 = vmatprep.subr.mxu0 0.0
    %1555 = vmatpush2.msra.mxu0 0.0
    %1556 = vmatprep.subr.mxu0 0.0
    %1557 = vmatpush2.msra.mxu0 0.0
    %1558 = vmatprep.subr.mxu0 0.0
    %1559 = vmatpush2.msra.mxu0 0.0
    %1560 = vmatprep.subr.mxu0 0.0
    %1561 = vmatpush2.msra.mxu0 0.0
    %1562 = vmatprep.subr.mxu0 0.0
    %1563 = vmatpush2.msra.mxu0 0.0
    %1564 = vmatprep.subr.mxu0 0.0
    %1565 = vmatpush2.msra.mxu0 0.0
    %1566 = vmatprep.subr.mxu0 0.0
    %1567 = vmatpush2.msra.mxu0 0.0
    %1568 = vmatprep.subr.mxu0 0.0
    %1569 = vmatpush2.msra.mxu0 0.0
    %1570 = vmatprep.subr.mxu0 0.0
    %1571 = vmatpush2.msra.mxu0 0.0
    %1572 = vmatprep.subr.mxu0 0.0
    %1573 = vmatpush2.msra.mxu0 0.0
    %1574 = vmatprep.subr.mxu0 0.0
    %1575 = vmatpush2.msra.mxu0 0.0
    %1576 = vmatprep.mubr.f32.mxu0 0.0
    %1577 = vmatmul.mubr.f32.gmra.mxu0 %v1510
    %v1578 = vpop.f32.mrf.mxu0
    %v1579 = vadd.f32 %v1506, %v1578
    %v1580 = vpop.f32.mrf.mxu0
    %1581 = vdwg.mxu0
    %1582 = vrot.lane.b32.xlu0 %v146, 112
    %v1583 = vpop.permute.xlu0 %1582
    %1584 = vrot.lane.b32.xlu0 %v146, 80
    %v1585 = vpop.permute.xlu0 %1584
    %v1586 = vsel %vm156, %v1583, 0
    %v1588 = vsel %vm156, %v1585, 0
    %1590 = vmatprep.subr.mxu0 0.0
    %1591 = vmatpush1.xpose.msra.mxu0 0.0
    %1592 = vmatprep.subr.mxu0 0.0
    %1593 = vmatpush1.xpose.msra.mxu0 0.0
    %1594 = vmatprep.subr.mxu0 0.0
    %1595 = vmatpush1.xpose.msra.mxu0 0.0
    %1596 = vmatprep.subr.mxu0 0.0
    %1597 = vmatpush1.xpose.msra.mxu0 0.0
    %1598 = vmatprep.subr.mxu0 0.0
    %1599 = vmatpush1.xpose.msra.mxu0 0.0
    %1600 = vmatprep.subr.mxu0 0.0
    %1601 = vmatpush1.xpose.msra.mxu0 0.0
    %1602 = vmatprep.subr.mxu0 0.0
    %1603 = vmatpush1.xpose.msra.mxu0 0.0
    %1604 = vmatprep.subr.mxu0 0.0
    %1605 = vmatpush1.xpose.msra.mxu0 0.0
    %1606 = vmatprep.subr.mxu0 0.0
    %1607 = vmatpush1.xpose.msra.mxu0 0.0
    %1608 = vmatprep.subr.mxu0 0.0
    %1609 = vmatpush1.xpose.msra.mxu0 0.0
    %1610 = vmatprep.subr.mxu0 0.0
    %1611 = vmatpush1.xpose.msra.mxu0 0.0
    %1612 = vmatprep.subr.mxu0 0.0
    %1613 = vmatpush1.xpose.msra.mxu0 0.0
    %1614 = vmatprep.subr.mxu0 0.0
    %1615 = vmatpush1.xpose.msra.mxu0 0.0
    %1616 = vmatprep.subr.mxu0 0.0
    %1617 = vmatpush1.xpose.msra.mxu0 0.0
    %1618 = vmatprep.subr.mxu0 0.0
    %1619 = vmatpush1.xpose.msra.mxu0 0.0
    %1620 = vmatprep.subr.mxu0 0.0
    %1621 = vmatpush1.xpose.msra.mxu0 %v1588
    %1622 = vmatprep.subr.mxu0 0.0
    %1623 = vmatpush2.xpose.msra.mxu0 0.0
    %1624 = vmatprep.subr.mxu0 0.0
    %1625 = vmatpush2.xpose.msra.mxu0 0.0
    %1626 = vmatprep.subr.mxu0 0.0
    %1627 = vmatpush2.xpose.msra.mxu0 0.0
    %1628 = vmatprep.subr.mxu0 0.0
    %1629 = vmatpush2.xpose.msra.mxu0 0.0
    %1630 = vmatprep.subr.mxu0 0.0
    %1631 = vmatpush2.xpose.msra.mxu0 0.0
    %1632 = vmatprep.subr.mxu0 0.0
    %1633 = vmatpush2.xpose.msra.mxu0 0.0
    %1634 = vmatprep.subr.mxu0 0.0
    %1635 = vmatpush2.xpose.msra.mxu0 0.0
    %1636 = vmatprep.subr.mxu0 0.0
    %1637 = vmatpush2.xpose.msra.mxu0 0.0
    %1638 = vmatprep.subr.mxu0 0.0
    %1639 = vmatpush2.xpose.msra.mxu0 0.0
    %1640 = vmatprep.subr.mxu0 0.0
    %1641 = vmatpush2.xpose.msra.mxu0 0.0
    %1642 = vmatprep.subr.mxu0 0.0
    %1643 = vmatpush2.xpose.msra.mxu0 0.0
    %1644 = vmatprep.subr.mxu0 0.0
    %1645 = vmatpush2.xpose.msra.mxu0 0.0
    %1646 = vmatprep.subr.mxu0 0.0
    %1647 = vmatpush2.xpose.msra.mxu0 0.0
    %1648 = vmatprep.subr.mxu0 0.0
    %1649 = vmatpush2.xpose.msra.mxu0 0.0
    %1650 = vmatprep.subr.mxu0 0.0
    %1651 = vmatpush2.xpose.msra.mxu0 0.0
    %1652 = vmatprep.subr.mxu0 0.0
    %1653 = vmatpush2.xpose.msra.mxu0 0.0
    %1654 = vmatprep.mubr.f32.mxu0 0.0
    %1655 = vmatmul.mubr.f32.gmra.mxu0 %v1586
    %v1656 = vpop.f32.mrf.mxu0
    %v1657 = vadd.f32 0.0, %v1656
    %v1658 = vpop.f32.mrf.mxu0
    %1659 = vdwg.mxu0
    %v1660 = vsel %vm156, %v1657, -inf
    %1661 = vmax.xlane.f32.xlu0 %v1660
    %v1662 = vpop.xlane.xlu0 %1661
    %v1663 = vsub.f32 %v1657, %v1662
    %v1664 = vmul.f32 %v1663, 1.442695
    %v1665 = vpow.pop %v1664
    %v1666 = vsel %vm156, %v1665, 0.0
    %1667 = vadd.xlane.f32.xlu0 %v1666
    %v1668 = vpop.xlane.xlu0 %1667
    %v1669 = vrcp.pop %v1668
    %v1670 = vmul.f32 %v1665, %v1669
    %1671 = vrot.lane.b32.xlu0 %v146, 48
    %v1672 = vpop.permute.xlu0 %1671
    %v1675 = vsel %vm156, %v1670, 0
    %1677 = vmatprep.subr.mxu0 0.0
    %1678 = vmatpush1.msra.mxu0 0.0
    %1679 = vmatprep.subr.mxu0 0.0
    %1680 = vmatpush1.msra.mxu0 0.0
    %1681 = vmatprep.subr.mxu0 0.0
    %1682 = vmatpush1.msra.mxu0 0.0
    %1683 = vmatprep.subr.mxu0 0.0
    %1684 = vmatpush1.msra.mxu0 0.0
    %1685 = vmatprep.subr.mxu0 0.0
    %1686 = vmatpush1.msra.mxu0 0.0
    %1687 = vmatprep.subr.mxu0 0.0
    %1688 = vmatpush1.msra.mxu0 0.0
    %1689 = vmatprep.subr.mxu0 0.0
    %1690 = vmatpush1.msra.mxu0 0.0
    %1691 = vmatprep.subr.mxu0 0.0
    %1692 = vmatpush1.msra.mxu0 0.0
    %1693 = vmatprep.subr.mxu0 0.0
    %1694 = vmatpush1.msra.mxu0 0.0
    %1695 = vmatprep.subr.mxu0 0.0
    %1696 = vmatpush1.msra.mxu0 0.0
    %1697 = vmatprep.subr.mxu0 0.0
    %1698 = vmatpush1.msra.mxu0 0.0
    %1699 = vmatprep.subr.mxu0 0.0
    %1700 = vmatpush1.msra.mxu0 0.0
    %1701 = vmatprep.subr.mxu0 0.0
    %1702 = vmatpush1.msra.mxu0 0.0
    %1703 = vmatprep.subr.mxu0 0.0
    %1704 = vmatpush1.msra.mxu0 0.0
    %1705 = vmatprep.subr.mxu0 0.0
    %1706 = vmatpush1.msra.mxu0 0.0
    %1707 = vmatprep.subr.mxu0 0.0
    %1708 = vmatpush1.msra.mxu0 %v1672
    %1709 = vmatprep.subr.mxu0 0.0
    %1710 = vmatpush2.msra.mxu0 0.0
    %1711 = vmatprep.subr.mxu0 0.0
    %1712 = vmatpush2.msra.mxu0 0.0
    %1713 = vmatprep.subr.mxu0 0.0
    %1714 = vmatpush2.msra.mxu0 0.0
    %1715 = vmatprep.subr.mxu0 0.0
    %1716 = vmatpush2.msra.mxu0 0.0
    %1717 = vmatprep.subr.mxu0 0.0
    %1718 = vmatpush2.msra.mxu0 0.0
    %1719 = vmatprep.subr.mxu0 0.0
    %1720 = vmatpush2.msra.mxu0 0.0
    %1721 = vmatprep.subr.mxu0 0.0
    %1722 = vmatpush2.msra.mxu0 0.0
    %1723 = vmatprep.subr.mxu0 0.0
    %1724 = vmatpush2.msra.mxu0 0.0
    %1725 = vmatprep.subr.mxu0 0.0
    %1726 = vmatpush2.msra.mxu0 0.0
    %1727 = vmatprep.subr.mxu0 0.0
    %1728 = vmatpush2.msra.mxu0 0.0
    %1729 = vmatprep.subr.mxu0 0.0
    %1730 = vmatpush2.msra.mxu0 0.0
    %1731 = vmatprep.subr.mxu0 0.0
    %1732 = vmatpush2.msra.mxu0 0.0
    %1733 = vmatprep.subr.mxu0 0.0
    %1734 = vmatpush2.msra.mxu0 0.0
    %1735 = vmatprep.subr.mxu0 0.0
    %1736 = vmatpush2.msra.mxu0 0.0
    %1737 = vmatprep.subr.mxu0 0.0
    %1738 = vmatpush2.msra.mxu0 0.0
    %1739 = vmatprep.subr.mxu0 0.0
    %1740 = vmatpush2.msra.mxu0 0.0
    %1741 = vmatprep.mubr.f32.mxu0 0.0
    %1742 = vmatmul.mubr.f32.gmra.mxu0 %v1675
    %v1743 = vpop.f32.mrf.mxu0
    %v1744 = vadd.f32 0.0, %v1743
    %v1745 = vpop.f32.mrf.mxu0
    %1746 = vdwg.mxu0
    %v1748 = vsel %vm156, %v1744, 0
    %1750 = vmatprep.subr.mxu0 0.0
    %1751 = vmatpush1.msra.mxu0 0.0
    %1752 = vmatprep.subr.mxu0 0.0
    %1753 = vmatpush1.msra.mxu0 0.0
    %1754 = vmatprep.subr.mxu0 0.0
    %1755 = vmatpush1.msra.mxu0 0.0
    %1756 = vmatprep.subr.mxu0 0.0
    %1757 = vmatpush1.msra.mxu0 0.0
    %1758 = vmatprep.subr.mxu0 0.0
    %1759 = vmatpush1.msra.mxu0 0.0
    %1760 = vmatprep.subr.mxu0 0.0
    %1761 = vmatpush1.msra.mxu0 0.0
    %1762 = vmatprep.subr.mxu0 0.0
    %1763 = vmatpush1.msra.mxu0 0.0
    %1764 = vmatprep.subr.mxu0 0.0
    %1765 = vmatpush1.msra.mxu0 0.0
    %1766 = vmatprep.subr.mxu0 0.0
    %1767 = vmatpush1.msra.mxu0 0.0
    %1768 = vmatprep.subr.mxu0 0.0
    %1769 = vmatpush1.msra.mxu0 0.0
    %1770 = vmatprep.subr.mxu0 0.0
    %1771 = vmatpush1.msra.mxu0 0.0
    %1772 = vmatprep.subr.mxu0 0.0
    %1773 = vmatpush1.msra.mxu0 0.0
    %1774 = vmatprep.subr.mxu0 0.0
    %1775 = vmatpush1.msra.mxu0 0.0
    %1776 = vmatprep.subr.mxu0 0.0
    %1777 = vmatpush1.msra.mxu0 0.0
    %1778 = vmatprep.subr.mxu0 0.0
    %1779 = vmatpush1.msra.mxu0 0.0
    %1780 = vmatprep.subr.mxu0 0.0
    %1781 = vmatpush1.msra.mxu0 %v151
    %1782 = vmatprep.subr.mxu0 0.0
    %1783 = vmatpush2.msra.mxu0 0.0
    %1784 = vmatprep.subr.mxu0 0.0
    %1785 = vmatpush2.msra.mxu0 0.0
    %1786 = vmatprep.subr.mxu0 0.0
    %1787 = vmatpush2.msra.mxu0 0.0
    %1788 = vmatprep.subr.mxu0 0.0
    %1789 = vmatpush2.msra.mxu0 0.0
    %1790 = vmatprep.subr.mxu0 0.0
    %1791 = vmatpush2.msra.mxu0 0.0
    %1792 = vmatprep.subr.mxu0 0.0
    %1793 = vmatpush2.msra.mxu0 0.0
    %1794 = vmatprep.subr.mxu0 0.0
    %1795 = vmatpush2.msra.mxu0 0.0
    %1796 = vmatprep.subr.mxu0 0.0
    %1797 = vmatpush2.msra.mxu0 0.0
    %1798 = vmatprep.subr.mxu0 0.0
    %1799 = vmatpush2.msra.mxu0 0.0
    %1800 = vmatprep.subr.mxu0 0.0
    %1801 = vmatpush2.msra.mxu0 0.0
    %1802 = vmatprep.subr.mxu0 0.0
    %1803 = vmatpush2.msra.mxu0 0.0
    %1804 = vmatprep.subr.mxu0 0.0
    %1805 = vmatpush2.msra.mxu0 0.0
    %1806 = vmatprep.subr.mxu0 0.0
    %1807 = vmatpush2.msra.mxu0 0.0
    %1808 = vmatprep.subr.mxu0 0.0
    %1809 = vmatpush2.msra.mxu0 0.0
    %1810 = vmatprep.subr.mxu0 0.0
    %1811 = vmatpush2.msra.mxu0 0.0
    %1812 = vmatprep.subr.mxu0 0.0
    %1813 = vmatpush2.msra.mxu0 0.0
    %1814 = vmatprep.mubr.f32.mxu0 0.0
    %1815 = vmatmul.mubr.f32.gmra.mxu0 %v1748
    %v1816 = vpop.f32.mrf.mxu0
    %v1817 = vadd.f32 0.0, %v1816
    %v1818 = vpop.f32.mrf.mxu0
    %1819 = vdwg.mxu0
    %v1820 = vadd.f32 %v1579, %v1817
    %1821 = vrot.lane.b32.xlu0 %v146, 104
    %v1822 = vpop.permute.xlu0 %1821
    %1823 = vrot.lane.b32.xlu0 %v146, 72
    %v1824 = vpop.permute.xlu0 %1823
    %v1825 = vsel %vm156, %v1822, 0
    %v1827 = vsel %vm156, %v1824, 0
    %1829 = vmatprep.subr.mxu0 0.0
    %1830 = vmatpush1.xpose.msra.mxu0 0.0
    %1831 = vmatprep.subr.mxu0 0.0
    %1832 = vmatpush1.xpose.msra.mxu0 0.0
    %1833 = vmatprep.subr.mxu0 0.0
    %1834 = vmatpush1.xpose.msra.mxu0 0.0
    %1835 = vmatprep.subr.mxu0 0.0
    %1836 = vmatpush1.xpose.msra.mxu0 0.0
    %1837 = vmatprep.subr.mxu0 0.0
    %1838 = vmatpush1.xpose.msra.mxu0 0.0
    %1839 = vmatprep.subr.mxu0 0.0
    %1840 = vmatpush1.xpose.msra.mxu0 0.0
    %1841 = vmatprep.subr.mxu0 0.0
    %1842 = vmatpush1.xpose.msra.mxu0 0.0
    %1843 = vmatprep.subr.mxu0 0.0
    %1844 = vmatpush1.xpose.msra.mxu0 0.0
    %1845 = vmatprep.subr.mxu0 0.0
    %1846 = vmatpush1.xpose.msra.mxu0 0.0
    %1847 = vmatprep.subr.mxu0 0.0
    %1848 = vmatpush1.xpose.msra.mxu0 0.0
    %1849 = vmatprep.subr.mxu0 0.0
    %1850 = vmatpush1.xpose.msra.mxu0 0.0
    %1851 = vmatprep.subr.mxu0 0.0
    %1852 = vmatpush1.xpose.msra.mxu0 0.0
    %1853 = vmatprep.subr.mxu0 0.0
    %1854 = vmatpush1.xpose.msra.mxu0 0.0
    %1855 = vmatprep.subr.mxu0 0.0
    %1856 = vmatpush1.xpose.msra.mxu0 0.0
    %1857 = vmatprep.subr.mxu0 0.0
    %1858 = vmatpush1.xpose.msra.mxu0 0.0
    %1859 = vmatprep.subr.mxu0 0.0
    %1860 = vmatpush1.xpose.msra.mxu0 %v1827
    %1861 = vmatprep.subr.mxu0 0.0
    %1862 = vmatpush2.xpose.msra.mxu0 0.0
    %1863 = vmatprep.subr.mxu0 0.0
    %1864 = vmatpush2.xpose.msra.mxu0 0.0
    %1865 = vmatprep.subr.mxu0 0.0
    %1866 = vmatpush2.xpose.msra.mxu0 0.0
    %1867 = vmatprep.subr.mxu0 0.0
    %1868 = vmatpush2.xpose.msra.mxu0 0.0
    %1869 = vmatprep.subr.mxu0 0.0
    %1870 = vmatpush2.xpose.msra.mxu0 0.0
    %1871 = vmatprep.subr.mxu0 0.0
    %1872 = vmatpush2.xpose.msra.mxu0 0.0
    %1873 = vmatprep.subr.mxu0 0.0
    %1874 = vmatpush2.xpose.msra.mxu0 0.0
    %1875 = vmatprep.subr.mxu0 0.0
    %1876 = vmatpush2.xpose.msra.mxu0 0.0
    %1877 = vmatprep.subr.mxu0 0.0
    %1878 = vmatpush2.xpose.msra.mxu0 0.0
    %1879 = vmatprep.subr.mxu0 0.0
    %1880 = vmatpush2.xpose.msra.mxu0 0.0
    %1881 = vmatprep.subr.mxu0 0.0
    %1882 = vmatpush2.xpose.msra.mxu0 0.0
    %1883 = vmatprep.subr.mxu0 0.0
    %1884 = vmatpush2.xpose.msra.mxu0 0.0
    %1885 = vmatprep.subr.mxu0 0.0
    %1886 = vmatpush2.xpose.msra.mxu0 0.0
    %1887 = vmatprep.subr.mxu0 0.0
    %1888 = vmatpush2.xpose.msra.mxu0 0.0
    %1889 = vmatprep.subr.mxu0 0.0
    %1890 = vmatpush2.xpose.msra.mxu0 0.0
    %1891 = vmatprep.subr.mxu0 0.0
    %1892 = vmatpush2.xpose.msra.mxu0 0.0
    %1893 = vmatprep.mubr.f32.mxu0 0.0
    %1894 = vmatmul.mubr.f32.gmra.mxu0 %v1825
    %v1895 = vpop.f32.mrf.mxu0
    %v1896 = vadd.f32 0.0, %v1895
    %v1897 = vpop.f32.mrf.mxu0
    %1898 = vdwg.mxu0
    %v1899 = vsel %vm156, %v1896, -inf
    %1900 = vmax.xlane.f32.xlu0 %v1899
    %v1901 = vpop.xlane.xlu0 %1900
    %v1902 = vsub.f32 %v1896, %v1901
    %v1903 = vmul.f32 %v1902, 1.442695
    %v1904 = vpow.pop %v1903
    %v1905 = vsel %vm156, %v1904, 0.0
    %1906 = vadd.xlane.f32.xlu0 %v1905
    %v1907 = vpop.xlane.xlu0 %1906
    %v1908 = vrcp.pop %v1907
    %v1909 = vmul.f32 %v1904, %v1908
    %1910 = vrot.lane.b32.xlu0 %v146, 40
    %v1911 = vpop.permute.xlu0 %1910
    %v1914 = vsel %vm156, %v1909, 0
    %1916 = vmatprep.subr.mxu0 0.0
    %1917 = vmatpush1.msra.mxu0 0.0
    %1918 = vmatprep.subr.mxu0 0.0
    %1919 = vmatpush1.msra.mxu0 0.0
    %1920 = vmatprep.subr.mxu0 0.0
    %1921 = vmatpush1.msra.mxu0 0.0
    %1922 = vmatprep.subr.mxu0 0.0
    %1923 = vmatpush1.msra.mxu0 0.0
    %1924 = vmatprep.subr.mxu0 0.0
    %1925 = vmatpush1.msra.mxu0 0.0
    %1926 = vmatprep.subr.mxu0 0.0
    %1927 = vmatpush1.msra.mxu0 0.0
    %1928 = vmatprep.subr.mxu0 0.0
    %1929 = vmatpush1.msra.mxu0 0.0
    %1930 = vmatprep.subr.mxu0 0.0
    %1931 = vmatpush1.msra.mxu0 0.0
    %1932 = vmatprep.subr.mxu0 0.0
    %1933 = vmatpush1.msra.mxu0 0.0
    %1934 = vmatprep.subr.mxu0 0.0
    %1935 = vmatpush1.msra.mxu0 0.0
    %1936 = vmatprep.subr.mxu0 0.0
    %1937 = vmatpush1.msra.mxu0 0.0
    %1938 = vmatprep.subr.mxu0 0.0
    %1939 = vmatpush1.msra.mxu0 0.0
    %1940 = vmatprep.subr.mxu0 0.0
    %1941 = vmatpush1.msra.mxu0 0.0
    %1942 = vmatprep.subr.mxu0 0.0
    %1943 = vmatpush1.msra.mxu0 0.0
    %1944 = vmatprep.subr.mxu0 0.0
    %1945 = vmatpush1.msra.mxu0 0.0
    %1946 = vmatprep.subr.mxu0 0.0
    %1947 = vmatpush1.msra.mxu0 %v1911
    %1948 = vmatprep.subr.mxu0 0.0
    %1949 = vmatpush2.msra.mxu0 0.0
    %1950 = vmatprep.subr.mxu0 0.0
    %1951 = vmatpush2.msra.mxu0 0.0
    %1952 = vmatprep.subr.mxu0 0.0
    %1953 = vmatpush2.msra.mxu0 0.0
    %1954 = vmatprep.subr.mxu0 0.0
    %1955 = vmatpush2.msra.mxu0 0.0
    %1956 = vmatprep.subr.mxu0 0.0
    %1957 = vmatpush2.msra.mxu0 0.0
    %1958 = vmatprep.subr.mxu0 0.0
    %1959 = vmatpush2.msra.mxu0 0.0
    %1960 = vmatprep.subr.mxu0 0.0
    %1961 = vmatpush2.msra.mxu0 0.0
    %1962 = vmatprep.subr.mxu0 0.0
    %1963 = vmatpush2.msra.mxu0 0.0
    %1964 = vmatprep.subr.mxu0 0.0
    %1965 = vmatpush2.msra.mxu0 0.0
    %1966 = vmatprep.subr.mxu0 0.0
    %1967 = vmatpush2.msra.mxu0 0.0
    %1968 = vmatprep.subr.mxu0 0.0
    %1969 = vmatpush2.msra.mxu0 0.0
    %1970 = vmatprep.subr.mxu0 0.0
    %1971 = vmatpush2.msra.mxu0 0.0
    %1972 = vmatprep.subr.mxu0 0.0
    %1973 = vmatpush2.msra.mxu0 0.0
    %1974 = vmatprep.subr.mxu0 0.0
    %1975 = vmatpush2.msra.mxu0 0.0
    %1976 = vmatprep.subr.mxu0 0.0
    %1977 = vmatpush2.msra.mxu0 0.0
    %1978 = vmatprep.subr.mxu0 0.0
    %1979 = vmatpush2.msra.mxu0 0.0
    %1980 = vmatprep.mubr.f32.mxu0 0.0
    %1981 = vmatmul.mubr.f32.gmra.mxu0 %v1914
    %v1982 = vpop.f32.mrf.mxu0
    %v1983 = vadd.f32 0.0, %v1982
    %v1984 = vpop.f32.mrf.mxu0
    %1985 = vdwg.mxu0
    %v1987 = vsel %vm156, %v1983, 0
    %1989 = vmatprep.subr.mxu0 0.0
    %1990 = vmatpush1.msra.mxu0 0.0
    %1991 = vmatprep.subr.mxu0 0.0
    %1992 = vmatpush1.msra.mxu0 0.0
    %1993 = vmatprep.subr.mxu0 0.0
    %1994 = vmatpush1.msra.mxu0 0.0
    %1995 = vmatprep.subr.mxu0 0.0
    %1996 = vmatpush1.msra.mxu0 0.0
    %1997 = vmatprep.subr.mxu0 0.0
    %1998 = vmatpush1.msra.mxu0 0.0
    %1999 = vmatprep.subr.mxu0 0.0
    %2000 = vmatpush1.msra.mxu0 0.0
    %2001 = vmatprep.subr.mxu0 0.0
    %2002 = vmatpush1.msra.mxu0 0.0
    %2003 = vmatprep.subr.mxu0 0.0
    %2004 = vmatpush1.msra.mxu0 0.0
    %2005 = vmatprep.subr.mxu0 0.0
    %2006 = vmatpush1.msra.mxu0 0.0
    %2007 = vmatprep.subr.mxu0 0.0
    %2008 = vmatpush1.msra.mxu0 0.0
    %2009 = vmatprep.subr.mxu0 0.0
    %2010 = vmatpush1.msra.mxu0 0.0
    %2011 = vmatprep.subr.mxu0 0.0
    %2012 = vmatpush1.msra.mxu0 0.0
    %2013 = vmatprep.subr.mxu0 0.0
    %2014 = vmatpush1.msra.mxu0 0.0
    %2015 = vmatprep.subr.mxu0 0.0
    %2016 = vmatpush1.msra.mxu0 0.0
    %2017 = vmatprep.subr.mxu0 0.0
    %2018 = vmatpush1.msra.mxu0 0.0
    %2019 = vmatprep.subr.mxu0 0.0
    %2020 = vmatpush1.msra.mxu0 %v152
    %2021 = vmatprep.subr.mxu0 0.0
    %2022 = vmatpush2.msra.mxu0 0.0
    %2023 = vmatprep.subr.mxu0 0.0
    %2024 = vmatpush2.msra.mxu0 0.0
    %2025 = vmatprep.subr.mxu0 0.0
    %2026 = vmatpush2.msra.mxu0 0.0
    %2027 = vmatprep.subr.mxu0 0.0
    %2028 = vmatpush2.msra.mxu0 0.0
    %2029 = vmatprep.subr.mxu0 0.0
    %2030 = vmatpush2.msra.mxu0 0.0
    %2031 = vmatprep.subr.mxu0 0.0
    %2032 = vmatpush2.msra.mxu0 0.0
    %2033 = vmatprep.subr.mxu0 0.0
    %2034 = vmatpush2.msra.mxu0 0.0
    %2035 = vmatprep.subr.mxu0 0.0
    %2036 = vmatpush2.msra.mxu0 0.0
    %2037 = vmatprep.subr.mxu0 0.0
    %2038 = vmatpush2.msra.mxu0 0.0
    %2039 = vmatprep.subr.mxu0 0.0
    %2040 = vmatpush2.msra.mxu0 0.0
    %2041 = vmatprep.subr.mxu0 0.0
    %2042 = vmatpush2.msra.mxu0 0.0
    %2043 = vmatprep.subr.mxu0 0.0
    %2044 = vmatpush2.msra.mxu0 0.0
    %2045 = vmatprep.subr.mxu0 0.0
    %2046 = vmatpush2.msra.mxu0 0.0
    %2047 = vmatprep.subr.mxu0 0.0
    %2048 = vmatpush2.msra.mxu0 0.0
    %2049 = vmatprep.subr.mxu0 0.0
    %2050 = vmatpush2.msra.mxu0 0.0
    %2051 = vmatprep.subr.mxu0 0.0
    %2052 = vmatpush2.msra.mxu0 0.0
    %2053 = vmatprep.mubr.f32.mxu0 0.0
    %2054 = vmatmul.mubr.f32.gmra.mxu0 %v1987
    %v2055 = vpop.f32.mrf.mxu0
    %v2056 = vadd.f32 0.0, %v2055
    %v2057 = vpop.f32.mrf.mxu0
    %2058 = vdwg.mxu0
    %v2059 = vadd.f32 %v1820, %v2056
    %v2060 = vld [vmem:[%s4] sm:$0x1]
    %v2062 = vlaneseq
    %v2063 = vshrl.u32 %v2062, 7
    %v2064 = vsub.s32 0, %v2063
    %v2065 = vrot.slane %v2060, %v2064
    %v2067 = vadd.f32 %v1106, %v2065
    %v2068 = vadd.f32 %v2059, %v2065
    %v2069 = vadd.f32 %v54, %v2067
    %v2070 = vadd.f32 %v55, %v2068
    %v2071 = vld [vmem:[%s5] sm:$0x1]
    %v2072 = vld [vmem:[%s6] sm:$0x1]
    %v2073 = vsel %vm67, %v2069, 0.0
    %2074 = vadd.xlane.f32.xlu0 %v2073
    %v2075 = vpop.xlane.xlu0 %2074
    %v2076 = vsel %vm67, %v2070, 0.0
    %2077 = vadd.xlane.f32.xlu0 %v2076
    %v2078 = vpop.xlane.xlu0 %2077
    %v2079 = vrcp.pop 32.0
    %v2080 = vmul.f32 %v2075, %v2079
    %v2081 = vmul.f32 %v2078, %v2079
    %v2082 = vsub.f32 %v2069, %v2080
    %v2083 = vsub.f32 %v2070, %v2081
    %v2084 = vmul.f32 %v2082, %v2082
    %v2085 = vmul.f32 %v2083, %v2083
    %v2086 = vsel %vm67, %v2084, 0.0
    %2087 = vadd.xlane.f32.xlu0 %v2086
    %v2088 = vpop.xlane.xlu0 %2087
    %v2089 = vsel %vm67, %v2085, 0.0
    %2090 = vadd.xlane.f32.xlu0 %v2089
    %v2091 = vpop.xlane.xlu0 %2090
    %v2092 = vmul.f32 %v2088, %v2079
    %v2093 = vmul.f32 %v2091, %v2079
    %v2094 = vadd.f32 %v2092, 1e-05
    %v2095 = vadd.f32 %v2093, 1e-05
    %v2096 = vrsqrt.pop %v2094
    %v2097 = vrsqrt.pop %v2095
    %v2098 = vmul.f32 %v2082, %v2096
    %v2099 = vmul.f32 %v2083, %v2097
    %v2101 = vlaneseq
    %v2102 = vshrl.u32 %v2101, 7
    %v2103 = vsub.s32 0, %v2102
    %v2104 = vrot.slane %v2071, %v2103
    %v2106 = vmul.f32 %v2098, %v2104
    %v2107 = vmul.f32 %v2099, %v2104
    %v2109 = vlaneseq
    %v2110 = vshrl.u32 %v2109, 7
    %v2111 = vsub.s32 0, %v2110
    %v2112 = vrot.slane %v2072, %v2111
    %v2114 = vadd.f32 %v2106, %v2112
    %v2115 = vadd.f32 %v2107, %v2112
    %v2116 = vld [vmem:[%s7] sm:$0xff]
    %v2117 = vld [vmem:[%s7 + $0x8] sm:$0xff]
    %v2118 = vld [vmem:[%s7 + $0x10] sm:$0xff]
    %v2119 = vld [vmem:[%s7 + $0x18] sm:$0xff]
    %v2120 = vld [vmem:[%s8] sm:$0x1]
    %v2122 = vlaneseq
    %v2123 = vshrl.u32 %v2122, 7
    %v2124 = vsub.s32 0, %v2123
    %v2125 = vrot.slane %v2120, %v2124
    %v2128 = vsel %vm67, %v2114, 0
    %v2131 = vsel %vm67, %v2115, 0
    %2133 = vmatprep.subr.mxu0 0.0
    %2134 = vmatpush1.msra.mxu0 0.0
    %2135 = vmatprep.subr.mxu0 0.0
    %2136 = vmatpush1.msra.mxu0 0.0
    %2137 = vmatprep.subr.mxu0 0.0
    %2138 = vmatpush1.msra.mxu0 0.0
    %2139 = vmatprep.subr.mxu0 0.0
    %2140 = vmatpush1.msra.mxu0 0.0
    %2141 = vmatprep.subr.mxu0 0.0
    %2142 = vmatpush1.msra.mxu0 0.0
    %2143 = vmatprep.subr.mxu0 0.0
    %2144 = vmatpush1.msra.mxu0 0.0
    %2145 = vmatprep.subr.mxu0 0.0
    %2146 = vmatpush1.msra.mxu0 0.0
    %2147 = vmatprep.subr.mxu0 0.0
    %2148 = vmatpush1.msra.mxu0 0.0
    %2149 = vmatprep.subr.mxu0 0.0
    %2150 = vmatpush1.msra.mxu0 0.0
    %2151 = vmatprep.subr.mxu0 0.0
    %2152 = vmatpush1.msra.mxu0 0.0
    %2153 = vmatprep.subr.mxu0 0.0
    %2154 = vmatpush1.msra.mxu0 0.0
    %2155 = vmatprep.subr.mxu0 0.0
    %2156 = vmatpush1.msra.mxu0 0.0
    %2157 = vmatprep.subr.mxu0 0.0
    %2158 = vmatpush1.msra.mxu0 %v2119
    %2159 = vmatprep.subr.mxu0 0.0
    %2160 = vmatpush1.msra.mxu0 %v2118
    %2161 = vmatprep.subr.mxu0 0.0
    %2162 = vmatpush1.msra.mxu0 %v2117
    %2163 = vmatprep.subr.mxu0 0.0
    %2164 = vmatpush1.msra.mxu0 %v2116
    %2165 = vmatprep.subr.mxu0 0.0
    %2166 = vmatpush2.msra.mxu0 0.0
    %2167 = vmatprep.subr.mxu0 0.0
    %2168 = vmatpush2.msra.mxu0 0.0
    %2169 = vmatprep.subr.mxu0 0.0
    %2170 = vmatpush2.msra.mxu0 0.0
    %2171 = vmatprep.subr.mxu0 0.0
    %2172 = vmatpush2.msra.mxu0 0.0
    %2173 = vmatprep.subr.mxu0 0.0
    %2174 = vmatpush2.msra.mxu0 0.0
    %2175 = vmatprep.subr.mxu0 0.0
    %2176 = vmatpush2.msra.mxu0 0.0
    %2177 = vmatprep.subr.mxu0 0.0
    %2178 = vmatpush2.msra.mxu0 0.0
    %2179 = vmatprep.subr.mxu0 0.0
    %2180 = vmatpush2.msra.mxu0 0.0
    %2181 = vmatprep.subr.mxu0 0.0
    %2182 = vmatpush2.msra.mxu0 0.0
    %2183 = vmatprep.subr.mxu0 0.0
    %2184 = vmatpush2.msra.mxu0 0.0
    %2185 = vmatprep.subr.mxu0 0.0
    %2186 = vmatpush2.msra.mxu0 0.0
    %2187 = vmatprep.subr.mxu0 0.0
    %2188 = vmatpush2.msra.mxu0 0.0
    %2189 = vmatprep.subr.mxu0 0.0
    %2190 = vmatpush2.msra.mxu0 0.0
    %2191 = vmatprep.subr.mxu0 0.0
    %2192 = vmatpush2.msra.mxu0 0.0
    %2193 = vmatprep.subr.mxu0 0.0
    %2194 = vmatpush2.msra.mxu0 0.0
    %2195 = vmatprep.subr.mxu0 0.0
    %2196 = vmatpush2.msra.mxu0 0.0
    %2197 = vmatprep.mubr.f32.mxu0 0.0
    %2198 = vmatmul.mubr.f32.gmra.mxu0 %v2128
    %v2199 = vpop.f32.mrf.mxu0
    %v2200 = vadd.f32 %v2125, %v2199
    %v2201 = vpop.f32.mrf.mxu0
    %2202 = vmatprep.mubr.f32.mxu0 0.0
    %2203 = vmatmul.mubr.f32.gmra.mxu0 %v2131
    %v2204 = vpop.f32.mrf.mxu0
    %v2205 = vadd.f32 %v2125, %v2204
    %v2206 = vpop.f32.mrf.mxu0
    %2207 = vdwg.mxu0
    %vm2208 = vcmask 31744
    %v2209 = vsel %vm2208, %v2200, -inf
    %2210 = vmax.xlane.f32.xlu0 %v2209
    %v2211 = vpop.xlane.xlu0 %2210
    %v2212 = vsel %vm2208, %v2205, -inf
    %2213 = vmax.xlane.f32.xlu0 %v2212
    %v2214 = vpop.xlane.xlu0 %2213
    %v2215 = vsub.f32 %v2200, %v2211
    %v2216 = vsub.f32 %v2205, %v2214
    %v2217 = vmul.f32 %v2215, 1.442695
    %v2218 = vpow.pop %v2217
    %v2219 = vmul.f32 %v2216, 1.442695
    %v2220 = vpow.pop %v2219
    %v2221 = vsel %vm2208, %v2218, 0.0
    %2222 = vadd.xlane.f32.xlu0 %v2221
    %v2223 = vpop.xlane.xlu0 %2222
    %v2224 = vsel %vm2208, %v2220, 0.0
    %2225 = vadd.xlane.f32.xlu0 %v2224
    %v2226 = vpop.xlane.xlu0 %2225
    %v2227 = vrcp.pop %v2223
    %v2228 = vrcp.pop %v2226
    %v2229 = vmul.f32 %v2218, %v2227
    %v2230 = vmul.f32 %v2220, %v2228
    %v2231 = vld [vmem:[%s10] sm:$0xff]
    %v2232 = vld [vmem:[%s10 + $0x8] sm:$0xff]
    %v2233 = vld [vmem:[%s10 + $0x10] sm:$0xff]
    %v2234 = vld [vmem:[%s10 + $0x18] sm:$0xff]
    %v2235 = vld [vmem:[%s10 + $0x20] sm:$0xff]
    %v2236 = vld [vmem:[%s10 + $0x28] sm:$0xff]
    %v2237 = vld [vmem:[%s10 + $0x30] sm:$0xff]
    %v2238 = vld [vmem:[%s10 + $0x38] sm:$0xff]
    %v2239 = vld [vmem:[%s11] sm:$0x3]
    %v2241 = vlaneseq
    %v2242 = vshrl.u32 %v2241, 7
    %v2243 = vsub.s32 0, %v2242
    %v2244 = vrot.slane %v2239, %v2243
    %v2245 = vlaneseq
    %v2246 = vshrl.u32 %v2245, 7
    %v2247 = vsub.s32 1, %v2246
    %v2248 = vrot.slane %v2239, %v2247
    %2251 = vmatprep.subr.mxu0 0.0
    %2252 = vmatpush1.msra.mxu0 0.0
    %2253 = vmatprep.subr.mxu0 0.0
    %2254 = vmatpush1.msra.mxu0 0.0
    %2255 = vmatprep.subr.mxu0 0.0
    %2256 = vmatpush1.msra.mxu0 0.0
    %2257 = vmatprep.subr.mxu0 0.0
    %2258 = vmatpush1.msra.mxu0 0.0
    %2259 = vmatprep.subr.mxu0 0.0
    %2260 = vmatpush1.msra.mxu0 0.0
    %2261 = vmatprep.subr.mxu0 0.0
    %2262 = vmatpush1.msra.mxu0 0.0
    %2263 = vmatprep.subr.mxu0 0.0
    %2264 = vmatpush1.msra.mxu0 0.0
    %2265 = vmatprep.subr.mxu0 0.0
    %2266 = vmatpush1.msra.mxu0 0.0
    %2267 = vmatprep.subr.mxu0 0.0
    %2268 = vmatpush1.msra.mxu0 0.0
    %2269 = vmatprep.subr.mxu0 0.0
    %2270 = vmatpush1.msra.mxu0 0.0
    %2271 = vmatprep.subr.mxu0 0.0
    %2272 = vmatpush1.msra.mxu0 0.0
    %2273 = vmatprep.subr.mxu0 0.0
    %2274 = vmatpush1.msra.mxu0 0.0
    %2275 = vmatprep.subr.mxu0 %v2238
    %2276 = vmatpush1.msra.mxu0 %v2237
    %2277 = vmatprep.subr.mxu0 %v2236
    %2278 = vmatpush1.msra.mxu0 %v2235
    %2279 = vmatprep.subr.mxu0 %v2234
    %2280 = vmatpush1.msra.mxu0 %v2233
    %2281 = vmatprep.subr.mxu0 %v2232
    %2282 = vmatpush1.msra.mxu0 %v2231
    %2283 = vmatprep.subr.mxu0 0.0
    %2284 = vmatpush2.msra.mxu0 0.0
    %2285 = vmatprep.subr.mxu0 0.0
    %2286 = vmatpush2.msra.mxu0 0.0
    %2287 = vmatprep.subr.mxu0 0.0
    %2288 = vmatpush2.msra.mxu0 0.0
    %2289 = vmatprep.subr.mxu0 0.0
    %2290 = vmatpush2.msra.mxu0 0.0
    %2291 = vmatprep.subr.mxu0 0.0
    %2292 = vmatpush2.msra.mxu0 0.0
    %2293 = vmatprep.subr.mxu0 0.0
    %2294 = vmatpush2.msra.mxu0 0.0
    %2295 = vmatprep.subr.mxu0 0.0
    %2296 = vmatpush2.msra.mxu0 0.0
    %2297 = vmatprep.subr.mxu0 0.0
    %2298 = vmatpush2.msra.mxu0 0.0
    %2299 = vmatprep.subr.mxu0 0.0
    %2300 = vmatpush2.msra.mxu0 0.0
    %2301 = vmatprep.subr.mxu0 0.0
    %2302 = vmatpush2.msra.mxu0 0.0
    %2303 = vmatprep.subr.mxu0 0.0
    %2304 = vmatpush2.msra.mxu0 0.0
    %2305 = vmatprep.subr.mxu0 0.0
    %2306 = vmatpush2.msra.mxu0 0.0
    %2307 = vmatprep.subr.mxu0 0.0
    %2308 = vmatpush2.msra.mxu0 0.0
    %2309 = vmatprep.subr.mxu0 0.0
    %2310 = vmatpush2.msra.mxu0 0.0
    %2311 = vmatprep.subr.mxu0 0.0
    %2312 = vmatpush2.msra.mxu0 0.0
    %2313 = vmatprep.subr.mxu0 0.0
    %2314 = vmatpush2.msra.mxu0 0.0
    %2315 = vmatprep.mubr.f32.mxu0 0.0
    %2316 = vmatmul.mubr.f32.gmra.mxu0 %v2128
    %v2317 = vpop.f32.mrf.mxu0
    %v2318 = vadd.f32 %v2244, %v2317
    %v2319 = vpop.f32.mrf.mxu0
    %v2320 = vadd.f32 %v2248, %v2319
    %2321 = vmatprep.mubr.f32.mxu0 0.0
    %2322 = vmatmul.mubr.f32.gmra.mxu0 %v2131
    %v2323 = vpop.f32.mrf.mxu0
    %v2324 = vadd.f32 %v2244, %v2323
    %v2325 = vpop.f32.mrf.mxu0
    %v2326 = vadd.f32 %v2248, %v2325
    %2327 = vdwg.mxu0
    %v2328 = vmax.f32 %v2318, 0.0
    %v2329 = vmax.f32 %v2320, 0.0
    %v2330 = vmax.f32 %v2324, 0.0
    %v2331 = vmax.f32 %v2326, 0.0
    %v2332 = vld [vmem:[%s9] sm:$0xff]
    %v2334 = vcombine.high %v2332, %v2332
    %v2336 = vsel %vm2208, %v2229, 0
    %v2339 = vsel %vm2208, %v2230, 0
    %vm2341 = vcmask 1043456
    %v2342 = vsel %vm2341, %v2332, 0
    %v2344 = vsel %vm2341, %v2334, 0
    %2346 = vmatprep.subr.mxu0 0.0
    %2347 = vmatpush1.msra.mxu0 0.0
    %2348 = vmatprep.subr.mxu0 0.0
    %2349 = vmatpush1.msra.mxu0 0.0
    %2350 = vmatprep.subr.mxu0 0.0
    %2351 = vmatpush1.msra.mxu0 0.0
    %2352 = vmatprep.subr.mxu0 0.0
    %2353 = vmatpush1.msra.mxu0 0.0
    %2354 = vmatprep.subr.mxu0 0.0
    %2355 = vmatpush1.msra.mxu0 0.0
    %2356 = vmatprep.subr.mxu0 0.0
    %2357 = vmatpush1.msra.mxu0 0.0
    %2358 = vmatprep.subr.mxu0 0.0
    %2359 = vmatpush1.msra.mxu0 0.0
    %2360 = vmatprep.subr.mxu0 0.0
    %2361 = vmatpush1.msra.mxu0 0.0
    %2362 = vmatprep.subr.mxu0 0.0
    %2363 = vmatpush1.msra.mxu0 0.0
    %2364 = vmatprep.subr.mxu0 0.0
    %2365 = vmatpush1.msra.mxu0 0.0
    %2366 = vmatprep.subr.mxu0 0.0
    %2367 = vmatpush1.msra.mxu0 0.0
    %2368 = vmatprep.subr.mxu0 0.0
    %2369 = vmatpush1.msra.mxu0 0.0
    %2370 = vmatprep.subr.mxu0 0.0
    %2371 = vmatpush1.msra.mxu0 0.0
    %2372 = vmatprep.subr.mxu0 0.0
    %2373 = vmatpush1.msra.mxu0 0.0
    %2374 = vmatprep.subr.mxu0 0.0
    %2375 = vmatpush1.msra.mxu0 0.0
    %2376 = vmatprep.subr.mxu0 %v2344
    %2377 = vmatpush1.msra.mxu0 %v2342
    %2378 = vmatprep.subr.mxu0 0.0
    %2379 = vmatpush2.msra.mxu0 0.0
    %2380 = vmatprep.subr.mxu0 0.0
    %2381 = vmatpush2.msra.mxu0 0.0
    %2382 = vmatprep.subr.mxu0 0.0
    %2383 = vmatpush2.msra.mxu0 0.0
    %2384 = vmatprep.subr.mxu0 0.0
    %2385 = vmatpush2.msra.mxu0 0.0
    %2386 = vmatprep.subr.mxu0 0.0
    %2387 = vmatpush2.msra.mxu0 0.0
    %2388 = vmatprep.subr.mxu0 0.0
    %2389 = vmatpush2.msra.mxu0 0.0
    %2390 = vmatprep.subr.mxu0 0.0
    %2391 = vmatpush2.msra.mxu0 0.0
    %2392 = vmatprep.subr.mxu0 0.0
    %2393 = vmatpush2.msra.mxu0 0.0
    %2394 = vmatprep.subr.mxu0 0.0
    %2395 = vmatpush2.msra.mxu0 0.0
    %2396 = vmatprep.subr.mxu0 0.0
    %2397 = vmatpush2.msra.mxu0 0.0
    %2398 = vmatprep.subr.mxu0 0.0
    %2399 = vmatpush2.msra.mxu0 0.0
    %2400 = vmatprep.subr.mxu0 0.0
    %2401 = vmatpush2.msra.mxu0 0.0
    %2402 = vmatprep.subr.mxu0 0.0
    %2403 = vmatpush2.msra.mxu0 0.0
    %2404 = vmatprep.subr.mxu0 0.0
    %2405 = vmatpush2.msra.mxu0 0.0
    %2406 = vmatprep.subr.mxu0 0.0
    %2407 = vmatpush2.msra.mxu0 0.0
    %2408 = vmatprep.subr.mxu0 0.0
    %2409 = vmatpush2.msra.mxu0 0.0
    %2410 = vmatprep.mubr.f32.mxu0 0.0
    %2411 = vmatmul.mubr.f32.gmra.mxu0 %v2336
    %v2412 = vpop.f32.mrf.mxu0
    %v2413 = vadd.f32 0.0, %v2412
    %v2414 = vpop.f32.mrf.mxu0
    %v2415 = vadd.f32 0.0, %v2414
    %2416 = vmatprep.mubr.f32.mxu0 0.0
    %2417 = vmatmul.mubr.f32.gmra.mxu0 %v2339
    %v2418 = vpop.f32.mrf.mxu0
    %v2419 = vadd.f32 0.0, %v2418
    %v2420 = vpop.f32.mrf.mxu0
    %v2421 = vadd.f32 0.0, %v2420
    %2422 = vdwg.mxu0
    %v2423 = vmul.f32 %v2328, %v2413
    %v2424 = vmul.f32 %v2329, %v2415
    %v2425 = vmul.f32 %v2330, %v2419
    %v2426 = vmul.f32 %v2331, %v2421
    %v2427 = vld [vmem:[%s12] sm:$0xff]
    %v2428 = vld [vmem:[%s12 + $0x8] sm:$0xff]
    %v2429 = vld [vmem:[%s12 + $0x10] sm:$0xff]
    %v2430 = vld [vmem:[%s12 + $0x18] sm:$0xff]
    %v2431 = vld [vmem:[%s12 + $0x20] sm:$0xff]
    %v2432 = vld [vmem:[%s12 + $0x28] sm:$0xff]
    %v2433 = vld [vmem:[%s12 + $0x30] sm:$0xff]
    %v2434 = vld [vmem:[%s12 + $0x38] sm:$0xff]
    %v2435 = vld [vmem:[%s12 + $0x40] sm:$0xff]
    %v2436 = vld [vmem:[%s12 + $0x48] sm:$0xff]
    %v2437 = vld [vmem:[%s12 + $0x50] sm:$0xff]
    %v2438 = vld [vmem:[%s12 + $0x58] sm:$0xff]
    %v2439 = vld [vmem:[%s12 + $0x60] sm:$0xff]
    %v2440 = vld [vmem:[%s12 + $0x68] sm:$0xff]
    %v2441 = vld [vmem:[%s12 + $0x70] sm:$0xff]
    %v2442 = vld [vmem:[%s12 + $0x78] sm:$0xff]
    %v2443 = vld [vmem:[%s12 + $0x80] sm:$0xff]
    %v2444 = vld [vmem:[%s12 + $0x88] sm:$0xff]
    %v2445 = vld [vmem:[%s12 + $0x90] sm:$0xff]
    %v2446 = vld [vmem:[%s12 + $0x98] sm:$0xff]
    %v2447 = vld [vmem:[%s12 + $0xa0] sm:$0xff]
    %v2448 = vld [vmem:[%s12 + $0xa8] sm:$0xff]
    %v2449 = vld [vmem:[%s12 + $0xb0] sm:$0xff]
    %v2450 = vld [vmem:[%s12 + $0xb8] sm:$0xff]
    %v2451 = vld [vmem:[%s12 + $0xc0] sm:$0xff]
    %v2452 = vld [vmem:[%s12 + $0xc8] sm:$0xff]
    %v2453 = vld [vmem:[%s12 + $0xd0] sm:$0xff]
    %v2454 = vld [vmem:[%s12 + $0xd8] sm:$0xff]
    %v2455 = vld [vmem:[%s12 + $0xe0] sm:$0xff]
    %v2456 = vld [vmem:[%s12 + $0xe8] sm:$0xff]
    %v2457 = vld [vmem:[%s12 + $0xf0] sm:$0xff]
    %v2458 = vld [vmem:[%s12 + $0xf8] sm:$0xff]
    %v2459 = vld [vmem:[%s13] sm:$0xf]
    %v2461 = vsel %vm2341, %v2459, 0
    %2463 = vmatprep.subr.mxu0 0.0
    %2464 = vmatpush1.msra.mxu0 0.0
    %2465 = vmatprep.subr.mxu0 0.0
    %2466 = vmatpush1.msra.mxu0 0.0
    %2467 = vmatprep.subr.mxu0 0.0
    %2468 = vmatpush1.msra.mxu0 0.0
    %2469 = vmatprep.subr.mxu0 0.0
    %2470 = vmatpush1.msra.mxu0 0.0
    %2471 = vmatprep.subr.mxu0 0.0
    %2472 = vmatpush1.msra.mxu0 0.0
    %2473 = vmatprep.subr.mxu0 0.0
    %2474 = vmatpush1.msra.mxu0 0.0
    %2475 = vmatprep.subr.mxu0 0.0
    %2476 = vmatpush1.msra.mxu0 0.0
    %2477 = vmatprep.subr.mxu0 0.0
    %2478 = vmatpush1.msra.mxu0 0.0
    %2479 = vmatprep.subr.mxu0 0.0
    %2480 = vmatpush1.msra.mxu0 0.0
    %2481 = vmatprep.subr.mxu0 0.0
    %2482 = vmatpush1.msra.mxu0 0.0
    %2483 = vmatprep.subr.mxu0 0.0
    %2484 = vmatpush1.msra.mxu0 0.0
    %2485 = vmatprep.subr.mxu0 0.0
    %2486 = vmatpush1.msra.mxu0 0.0
    %2487 = vmatprep.subr.mxu0 0.0
    %2488 = vmatpush1.msra.mxu0 0.0
    %2489 = vmatprep.subr.mxu0 0.0
    %2490 = vmatpush1.msra.mxu0 0.0
    %2491 = vmatprep.subr.mxu0 0.0
    %2492 = vmatpush1.msra.mxu0 0.0
    %2493 = vmatprep.subr.mxu0 0.0
    %2494 = vmatpush1.msra.mxu0 %v2461
    %2495 = vmatprep.subr.mxu0 0.0
    %2496 = vmatpush2.msra.mxu0 0.0
    %2497 = vmatprep.subr.mxu0 0.0
    %2498 = vmatpush2.msra.mxu0 0.0
    %2499 = vmatprep.subr.mxu0 0.0
    %2500 = vmatpush2.msra.mxu0 0.0
    %2501 = vmatprep.subr.mxu0 0.0
    %2502 = vmatpush2.msra.mxu0 0.0
    %2503 = vmatprep.subr.mxu0 0.0
    %2504 = vmatpush2.msra.mxu0 0.0
    %2505 = vmatprep.subr.mxu0 0.0
    %2506 = vmatpush2.msra.mxu0 0.0
    %2507 = vmatprep.subr.mxu0 0.0
    %2508 = vmatpush2.msra.mxu0 0.0
    %2509 = vmatprep.subr.mxu0 0.0
    %2510 = vmatpush2.msra.mxu0 0.0
    %2511 = vmatprep.subr.mxu0 0.0
    %2512 = vmatpush2.msra.mxu0 0.0
    %2513 = vmatprep.subr.mxu0 0.0
    %2514 = vmatpush2.msra.mxu0 0.0
    %2515 = vmatprep.subr.mxu0 0.0
    %2516 = vmatpush2.msra.mxu0 0.0
    %2517 = vmatprep.subr.mxu0 0.0
    %2518 = vmatpush2.msra.mxu0 0.0
    %2519 = vmatprep.subr.mxu0 0.0
    %2520 = vmatpush2.msra.mxu0 0.0
    %2521 = vmatprep.subr.mxu0 0.0
    %2522 = vmatpush2.msra.mxu0 0.0
    %2523 = vmatprep.subr.mxu0 0.0
    %2524 = vmatpush2.msra.mxu0 0.0
    %2525 = vmatprep.subr.mxu0 0.0
    %2526 = vmatpush2.msra.mxu0 0.0
    %2527 = vmatprep.mubr.f32.mxu0 0.0
    %2528 = vmatmul.mubr.f32.gmra.mxu0 %v2336
    %v2529 = vpop.f32.mrf.mxu0
    %v2530 = vadd.f32 0.0, %v2529
    %v2531 = vpop.f32.mrf.mxu0
    %2532 = vmatprep.mubr.f32.mxu0 0.0
    %2533 = vmatmul.mubr.f32.gmra.mxu0 %v2339
    %v2534 = vpop.f32.mrf.mxu0
    %v2535 = vadd.f32 0.0, %v2534
    %v2536 = vpop.f32.mrf.mxu0
    %2537 = vdwg.mxu0
    %2538 = vmatprep.subr.mxu0 0.0
    %2539 = vmatpush1.msra.mxu0 %v2442
    %2540 = vmatprep.subr.mxu0 0.0
    %2541 = vmatpush1.msra.mxu0 %v2441
    %2542 = vmatprep.subr.mxu0 0.0
    %2543 = vmatpush1.msra.mxu0 %v2440
    %2544 = vmatprep.subr.mxu0 0.0
    %2545 = vmatpush1.msra.mxu0 %v2439
    %2546 = vmatprep.subr.mxu0 0.0
    %2547 = vmatpush1.msra.mxu0 %v2438
    %2548 = vmatprep.subr.mxu0 0.0
    %2549 = vmatpush1.msra.mxu0 %v2437
    %2550 = vmatprep.subr.mxu0 0.0
    %2551 = vmatpush1.msra.mxu0 %v2436
    %2552 = vmatprep.subr.mxu0 0.0
    %2553 = vmatpush1.msra.mxu0 %v2435
    %2554 = vmatprep.subr.mxu0 0.0
    %2555 = vmatpush1.msra.mxu0 %v2434
    %2556 = vmatprep.subr.mxu0 0.0
    %2557 = vmatpush1.msra.mxu0 %v2433
    %2558 = vmatprep.subr.mxu0 0.0
    %2559 = vmatpush1.msra.mxu0 %v2432
    %2560 = vmatprep.subr.mxu0 0.0
    %2561 = vmatpush1.msra.mxu0 %v2431
    %2562 = vmatprep.subr.mxu0 0.0
    %2563 = vmatpush1.msra.mxu0 %v2430
    %2564 = vmatprep.subr.mxu0 0.0
    %2565 = vmatpush1.msra.mxu0 %v2429
    %2566 = vmatprep.subr.mxu0 0.0
    %2567 = vmatpush1.msra.mxu0 %v2428
    %2568 = vmatprep.subr.mxu0 0.0
    %2569 = vmatpush1.msra.mxu0 %v2427
    %2570 = vmatprep.subr.mxu0 0.0
    %2571 = vmatpush2.msra.mxu0 %v2458
    %2572 = vmatprep.subr.mxu0 0.0
    %2573 = vmatpush2.msra.mxu0 %v2457
    %2574 = vmatprep.subr.mxu0 0.0
    %2575 = vmatpush2.msra.mxu0 %v2456
    %2576 = vmatprep.subr.mxu0 0.0
    %2577 = vmatpush2.msra.mxu0 %v2455
    %2578 = vmatprep.subr.mxu0 0.0
    %2579 = vmatpush2.msra.mxu0 %v2454
    %2580 = vmatprep.subr.mxu0 0.0
    %2581 = vmatpush2.msra.mxu0 %v2453
    %2582 = vmatprep.subr.mxu0 0.0
    %2583 = vmatpush2.msra.mxu0 %v2452
    %2584 = vmatprep.subr.mxu0 0.0
    %2585 = vmatpush2.msra.mxu0 %v2451
    %2586 = vmatprep.subr.mxu0 0.0
    %2587 = vmatpush2.msra.mxu0 %v2450
    %2588 = vmatprep.subr.mxu0 0.0
    %2589 = vmatpush2.msra.mxu0 %v2449
    %2590 = vmatprep.subr.mxu0 0.0
    %2591 = vmatpush2.msra.mxu0 %v2448
    %2592 = vmatprep.subr.mxu0 0.0
    %2593 = vmatpush2.msra.mxu0 %v2447
    %2594 = vmatprep.subr.mxu0 0.0
    %2595 = vmatpush2.msra.mxu0 %v2446
    %2596 = vmatprep.subr.mxu0 0.0
    %2597 = vmatpush2.msra.mxu0 %v2445
    %2598 = vmatprep.subr.mxu0 0.0
    %2599 = vmatpush2.msra.mxu0 %v2444
    %2600 = vmatprep.subr.mxu0 0.0
    %2601 = vmatpush2.msra.mxu0 %v2443
    %2602 = vmatprep.mubr.f32.mxu0 %v2424
    %2603 = vmatmul.mubr.f32.gmra.mxu0 %v2423
    %v2604 = vpop.f32.mrf.mxu0
    %v2605 = vadd.f32 %v2530, %v2604
    %v2606 = vpop.f32.mrf.mxu0
    %2607 = vmatprep.mubr.f32.mxu0 %v2426
    %2608 = vmatmul.mubr.f32.gmra.mxu0 %v2425
    %v2609 = vpop.f32.mrf.mxu0
    %v2610 = vadd.f32 %v2535, %v2609
    %v2611 = vpop.f32.mrf.mxu0
    %2612 = vdwg.mxu0
    %v2613 = vadd.f32 %v2114, %v2605
    %v2614 = vadd.f32 %v2115, %v2610
    %v2615 = vld [vmem:[%s14] sm:$0x1]
    %v2616 = vld [vmem:[%s15] sm:$0x1]
    %v2617 = vsel %vm67, %v2613, 0.0
    %2618 = vadd.xlane.f32.xlu0 %v2617
    %v2619 = vpop.xlane.xlu0 %2618
    %v2620 = vsel %vm67, %v2614, 0.0
    %2621 = vadd.xlane.f32.xlu0 %v2620
    %v2622 = vpop.xlane.xlu0 %2621
    %v2623 = vmul.f32 %v2619, %v2079
    %v2624 = vmul.f32 %v2622, %v2079
    %v2625 = vsub.f32 %v2613, %v2623
    %v2626 = vsub.f32 %v2614, %v2624
    %v2627 = vmul.f32 %v2625, %v2625
    %v2628 = vmul.f32 %v2626, %v2626
    %v2629 = vsel %vm67, %v2627, 0.0
    %2630 = vadd.xlane.f32.xlu0 %v2629
    %v2631 = vpop.xlane.xlu0 %2630
    %v2632 = vsel %vm67, %v2628, 0.0
    %2633 = vadd.xlane.f32.xlu0 %v2632
    %v2634 = vpop.xlane.xlu0 %2633
    %v2635 = vmul.f32 %v2631, %v2079
    %v2636 = vmul.f32 %v2634, %v2079
    %v2637 = vadd.f32 %v2635, 1e-05
    %v2638 = vadd.f32 %v2636, 1e-05
    %v2639 = vrsqrt.pop %v2637
    %v2640 = vrsqrt.pop %v2638
    %v2641 = vmul.f32 %v2625, %v2639
    %v2642 = vmul.f32 %v2626, %v2640
    %v2644 = vlaneseq
    %v2645 = vshrl.u32 %v2644, 7
    %v2646 = vsub.s32 0, %v2645
    %v2647 = vrot.slane %v2615, %v2646
    %v2649 = vmul.f32 %v2641, %v2647
    %v2650 = vmul.f32 %v2642, %v2647
    %v2652 = vlaneseq
    %v2653 = vshrl.u32 %v2652, 7
    %v2654 = vsub.s32 0, %v2653
    %v2655 = vrot.slane %v2616, %v2654
    %v2657 = vadd.f32 %v2649, %v2655
    %v2658 = vadd.f32 %v2650, %v2655
    %2659 = vst.msk [vmem:[#allocation2] sm:$0xff] %vm67, %v2657
    %2660 = vst.msk [vmem:[#allocation2 + $0x8] sm:$0xff] %vm67, %v2658
    // Predicated region
    $region66: #{tpu_custom_call.1} parent=1 // pred_check
      _
    $region67: #{tpu_custom_call.1} parent=1 // pred_check_branch
      %2662 = sbr.rel (0) target = $region69
    $region68: #{tpu_custom_call.1} parent=1 // pred_region
      %s2664 = ssub.s32 256, 256
      %2665 = vsyncadd [#allocation3], %s2664
      %s2666 = sshll.u32 [#allocation2], 4
      %s2667 = int_to_ptr.vmem [resolvable:$true] %s2666
      %2672 = dma.vmem_to_hbm [thread:$0]  %s2667, 256, %s16, [#allocation3], 128, 128, 8
    $region69: #{tpu_custom_call.1} parent=1 // pred_fallthru
      _
    // Predicated region
    $region70: #{tpu_custom_call.1} parent=1 // pred_check
      _
    $region71: #{tpu_custom_call.1} parent=1 // pred_check_branch
      %2674 = sbr.rel (0) target = $region73
    $region72: #{tpu_custom_call.1} parent=1 // pred_region
      %2675 = dma.done [#allocation3], 256
    $region73: #{tpu_custom_call.1} parent=1 // pred_fallthru
      _
    %2676 = vsyncpa [#allocation3], 1

</llo_original>
